<compile_context>
chip_gen: v6e
topology: v6e:2x2x1
jax: 0.10.0
libtpu: 0.0.40
codegen_flags: <defaults>
</compile_context>

<pallas_src>
import functools

import jax
import jax.numpy as jnp
import numpy as np
from jax.experimental import pallas as pl
from jax.experimental.pallas import tpu as pltpu


def _satt2_kernel(w_ref, x_ref, o_ref, *, num_nodes, num_heads):
    """One grid step == one batch element.

    w_ref : (C, 2C)    fused [conv1 | conv2] 1x1 weights, transposed, with
                       output channels pre-permuted so head m's channels
                       {num_heads*c + m : c} occupy the contiguous column
                       range [m*g, (m+1)*g)  (and [C+m*g, C+(m+1)*g) for conv2).
    x_ref : (T*N, C)   this batch element's input; row p = t*N + n, cols = c_in.
    o_ref : (T, N*N)   lane-dense output: row t, lane n*N + q.
    """
    N = num_nodes
    TN, C = x_ref.shape
    T = TN // N
    g = C // num_heads

    x = x_ref[...]                                   # (T*N, C)
    w = w_ref[...]                                   # (C, 2C)

    # Fused 1x1 conv (both convs, every (t, n) position): a single MXU matmul.
    y = jnp.dot(x, w, preferred_element_type=jnp.float32)       # (T*N, 2C)

    # Row-major split of the position axis back into (t, n).  Rows are already
    # ordered (t, n) and the minor dim is untouched, so this is a
    # layout-preserving view (no lane/sublane relayout).
    y3 = y.reshape(T, N, 2 * C)                                  # (T, N, 2C)

    acc = jnp.zeros((T, N, N), jnp.float32)
    for m in range(num_heads):                       # 4 heads, static unroll
        a1 = y3[:, :, m * g:(m + 1) * g]             # (T, N, g)  conv1, head m
        a2 = y3[:, :, C + m * g:C + (m + 1) * g]     # (T, N, g)  conv2, head m
        # logits[t, n, q] = sum_c a1[t, n, c] * a2[t, q, c]
        # Batched (over t) matmul, contraction on the minor dim — the
        # documented flash-attention einsum pattern.
        logits = jnp.einsum('tnc,tqc->tnq', a1, a2,
                            preferred_element_type=jnp.float32)  # (T, N, N)
        acc = acc + jax.nn.sigmoid(logits)

    res = acc * (1.0 / num_heads)                    # (T, N, N)

    # Merge (n, q) into the 256-wide lane axis of the output block.  The
    # output VMEM buffer / HBM writeback are fully lane-dense; the N small
    # sub-slice stores below touch only ~4 vregs of data per batch element.
    for n in range(N):
        o_ref[:, n * N:(n + 1) * N] = res[:, n, :]


def satt_2_forward(seq_nchw, w1, w2, *, num_heads=4):
    """seq_nchw: (B, C, N, T) float32;  w1, w2: (C, C) 1x1-conv weights."""
    B, C, N, T = seq_nchw.shape
    assert C % num_heads == 0
    g = C // num_heads

    # Channel permutation: new position (m*g + c) <- original output channel
    # (num_heads*c + m), matching PyTorch's view(B, C//4, 4, N, T) head split,
    # so in-kernel head slices are contiguous.
    perm = np.array(
        [num_heads * c + m for m in range(num_heads) for c in range(g)],
        dtype=np.int32)
    # Fuse both convs into a single weight and transpose it so the (t, n)
    # position axis sits on the matmul's M / sublane axis:
    #   (T*N, C) @ (C, 2C) -> (T*N, 2C)
    wf = jnp.concatenate([w1[perm, :], w2[perm, :]], axis=0).T   # (C, 2C)

    # (B, C, N, T) -> (B, T, N, C) -> (B, T*N, C): channels last so the fused
    # conv matmul and the (T, N, 2C) view need no in-kernel relayout.  Pure
    # layout plumbing in the wrapper (no FLOPs hoisted out of the kernel).
    x = jnp.transpose(seq_nchw, (0, 3, 2, 1)).reshape(B, T * N, C)

    kernel = functools.partial(_satt2_kernel, num_nodes=N, num_heads=num_heads)

    out = pl.pallas_call(
        kernel,
        out_shape=jax.ShapeDtypeStruct((B, T, N * N), jnp.float32),
        grid_spec=pltpu.PrefetchScalarGridSpec(
            num_scalar_prefetch=0,
            grid=(B,),                                # one step per batch elem
            in_specs=[
                pl.BlockSpec((C, 2 * C), lambda b: (0, 0)),
                pl.BlockSpec((pl.Squeezed(), T * N, C), lambda b: (b, 0, 0)),
            ],
            out_specs=pl.BlockSpec((pl.Squeezed(), T, N * N),
                                   lambda b: (b, 0, 0)),
        ),
        compiler_params=pltpu.CompilerParams(
            # v7x: one batch element per TensorCore; harmless on v5e/v6e.
            dimension_semantics=("parallel",)),
    )(wf, x)

    # Lane-dense slab -> PyTorch output layout.
    return out.reshape(B, T, N, N)


def satt_2_reference(seq, w1, w2):
    """Pure-JAX transcription of the PyTorch forward (for verification)."""
    B, C, N, T = seq.shape
    f1 = jnp.einsum('oc,bcnt->bont', w1, seq)                  # conv1 (1x1, no bias)
    f2 = jnp.einsum('oc,bcnt->bont', w2, seq)                  # conv2
    f1 = f1.reshape(B, C // 4, 4, N, T).transpose(0, 3, 1, 4, 2)   # b n c l m
    f2 = f2.reshape(B, C // 4, 4, N, T).transpose(0, 1, 3, 4, 2)   # b c q l m
    logits = jnp.einsum('bnclm,bcqlm->bnqlm', f1, f2)
    logits = logits.transpose(0, 3, 1, 2, 4)                   # (B, T, N, N, 4)
    return jnp.mean(jax.nn.sigmoid(logits), axis=-1)           # (B, T, N, N)


if __name__ == "__main__":
    # batch, c_in, num_nodes, time (T=12 matches LayerNorm([N, N, 12]) in DGCN).
    B, C, N, T = 2, 16, 16, 12

    key = jax.random.PRNGKey(0)
    k_seq, k_w1, k_w2 = jax.random.split(key, 3)

    seq = jax.random.normal(k_seq, (B, C, N, T), dtype=jnp.float32)
    # Conv2d(c_in, c_in, kernel_size=(1,1), bias=False) weight is (C, C, 1, 1);
    # the trivial spatial dims are dropped.
    w1 = 0.1 * jax.random.normal(k_w1, (C, C), dtype=jnp.float32)
    w2 = 0.1 * jax.random.normal(k_w2, (C, C), dtype=jnp.float32)

    out = satt_2_forward(seq, w1, w2)
    out = jax.block_until_ready(out)

    ref = satt_2_reference(seq, w1, w2)
    np.testing.assert_allclose(np.asarray(out), np.asarray(ref),
                               rtol=1e-4, atol=1e-5)

    print("KERNEL_OK")
</pallas_src>

<mosaic_0001>
module attributes {stable_mosaic.version = 11 : i64} {
  func.func @_satt2_kernel(%arg0: i32, %arg1: memref<16x32xf32, #tpu.memory_space<vmem>>, %arg2: memref<1x192x16xf32, #tpu.memory_space<vmem>>, %arg3: memref<1x12x256xf32, #tpu.memory_space<vmem>>) attributes {dimension_semantics = [#tpu.dimension_semantics<parallel>], iteration_bounds = array<i64: 2>, scalar_prefetch = 0 : i64, scratch_operands = 0 : i64, tpu.core_type = #tpu.core_type<tc>, window_params = [{pipeline_mode = #tpu.pipeline_mode<synchronous>, transform_indices = @transform_0, window_bounds = array<i64: 16, 32>}, {transform_indices = @transform_1, window_bounds = array<i64: 1, 192, 16>}, {transform_indices = @transform_2, window_bounds = array<i64: 1, 12, 256>}]} {
    %c0 = arith.constant 0 : index
    %c0_0 = arith.constant 0 : index
    %c0_1 = arith.constant 0 : index
    %0 = vector.load %arg2[%c0, %c0_0, %c0_1] : memref<1x192x16xf32, #tpu.memory_space<vmem>>, vector<1x192x16xf32>
    %1 = vector.shape_cast %0 : vector<1x192x16xf32> to vector<192x16xf32>
    %c0_2 = arith.constant 0 : index
    %c0_3 = arith.constant 0 : index
    %2 = vector.load %arg1[%c0_2, %c0_3] : memref<16x32xf32, #tpu.memory_space<vmem>>, vector<16x32xf32>
    %cst = arith.constant dense<0.000000e+00> : vector<192x32xf32>
    %3 = tpu.matmul %1, %2, %cst {dimension_numbers = #tpu.dot_dimension_numbers<[1], [0], [0], [1], [0, 0, 1, 1], [], []>} : vector<192x16xf32>, vector<16x32xf32>, vector<192x32xf32> -> vector<192x32xf32>
    %4 = vector.shape_cast %3 : vector<192x32xf32> to vector<12x16x32xf32>
    %cst_4 = arith.constant 0.000000e+00 : f32
    %5 = vector.broadcast %cst_4 : f32 to vector<12x16x16xf32>
    %6 = vector.extract_strided_slice %4 {offsets = [0, 0, 0], sizes = [12, 16, 4], strides = [1, 1, 1]} : vector<12x16x32xf32> to vector<12x16x4xf32>
    %7 = vector.extract_strided_slice %4 {offsets = [0, 0, 16], sizes = [12, 16, 4], strides = [1, 1, 1]} : vector<12x16x32xf32> to vector<12x16x4xf32>
    "tpu.trace_start"() <{level = 10 : i32, message = "tnc,tqc->tnq"}> : () -> ()
    %cst_5 = arith.constant dense<0.000000e+00> : vector<12x16x16xf32>
    %8 = tpu.matmul %6, %7, %cst_5 {dimension_numbers = #tpu.dot_dimension_numbers<[2], [2], [1], [1], [0, 0, 0, 1, 1, 1], [0], [0]>} : vector<12x16x4xf32>, vector<12x16x4xf32>, vector<12x16x16xf32> -> vector<12x16x16xf32>
    "tpu.trace_stop"() : () -> ()
    %9 = arith.negf %8 : vector<12x16x16xf32>
    %10 = math.exp %9 : vector<12x16x16xf32>
    %cst_6 = arith.constant 1.000000e+00 : f32
    %11 = vector.broadcast %cst_6 : f32 to vector<12x16x16xf32>
    %12 = arith.addf %11, %10 : vector<12x16x16xf32>
    %13 = arith.divf %11, %12 : vector<12x16x16xf32>
    %14 = arith.addf %5, %13 : vector<12x16x16xf32>
    %15 = vector.extract_strided_slice %4 {offsets = [0, 0, 4], sizes = [12, 16, 4], strides = [1, 1, 1]} : vector<12x16x32xf32> to vector<12x16x4xf32>
    %16 = vector.extract_strided_slice %4 {offsets = [0, 0, 20], sizes = [12, 16, 4], strides = [1, 1, 1]} : vector<12x16x32xf32> to vector<12x16x4xf32>
    "tpu.trace_start"() <{level = 10 : i32, message = "tnc,tqc->tnq"}> : () -> ()
    %cst_7 = arith.constant dense<0.000000e+00> : vector<12x16x16xf32>
    %17 = tpu.matmul %15, %16, %cst_7 {dimension_numbers = #tpu.dot_dimension_numbers<[2], [2], [1], [1], [0, 0, 0, 1, 1, 1], [0], [0]>} : vector<12x16x4xf32>, vector<12x16x4xf32>, vector<12x16x16xf32> -> vector<12x16x16xf32>
    "tpu.trace_stop"() : () -> ()
    %18 = arith.negf %17 : vector<12x16x16xf32>
    %19 = math.exp %18 : vector<12x16x16xf32>
    %cst_8 = arith.constant 1.000000e+00 : f32
    %20 = vector.broadcast %cst_8 : f32 to vector<12x16x16xf32>
    %21 = arith.addf %20, %19 : vector<12x16x16xf32>
    %22 = arith.divf %20, %21 : vector<12x16x16xf32>
    %23 = arith.addf %14, %22 : vector<12x16x16xf32>
    %24 = vector.extract_strided_slice %4 {offsets = [0, 0, 8], sizes = [12, 16, 4], strides = [1, 1, 1]} : vector<12x16x32xf32> to vector<12x16x4xf32>
    %25 = vector.extract_strided_slice %4 {offsets = [0, 0, 24], sizes = [12, 16, 4], strides = [1, 1, 1]} : vector<12x16x32xf32> to vector<12x16x4xf32>
    "tpu.trace_start"() <{level = 10 : i32, message = "tnc,tqc->tnq"}> : () -> ()
    %cst_9 = arith.constant dense<0.000000e+00> : vector<12x16x16xf32>
    %26 = tpu.matmul %24, %25, %cst_9 {dimension_numbers = #tpu.dot_dimension_numbers<[2], [2], [1], [1], [0, 0, 0, 1, 1, 1], [0], [0]>} : vector<12x16x4xf32>, vector<12x16x4xf32>, vector<12x16x16xf32> -> vector<12x16x16xf32>
    "tpu.trace_stop"() : () -> ()
    %27 = arith.negf %26 : vector<12x16x16xf32>
    %28 = math.exp %27 : vector<12x16x16xf32>
    %cst_10 = arith.constant 1.000000e+00 : f32
    %29 = vector.broadcast %cst_10 : f32 to vector<12x16x16xf32>
    %30 = arith.addf %29, %28 : vector<12x16x16xf32>
    %31 = arith.divf %29, %30 : vector<12x16x16xf32>
    %32 = arith.addf %23, %31 : vector<12x16x16xf32>
    %33 = vector.extract_strided_slice %4 {offsets = [0, 0, 12], sizes = [12, 16, 4], strides = [1, 1, 1]} : vector<12x16x32xf32> to vector<12x16x4xf32>
    %34 = vector.extract_strided_slice %4 {offsets = [0, 0, 28], sizes = [12, 16, 4], strides = [1, 1, 1]} : vector<12x16x32xf32> to vector<12x16x4xf32>
    "tpu.trace_start"() <{level = 10 : i32, message = "tnc,tqc->tnq"}> : () -> ()
    %cst_11 = arith.constant dense<0.000000e+00> : vector<12x16x16xf32>
    %35 = tpu.matmul %33, %34, %cst_11 {dimension_numbers = #tpu.dot_dimension_numbers<[2], [2], [1], [1], [0, 0, 0, 1, 1, 1], [0], [0]>} : vector<12x16x4xf32>, vector<12x16x4xf32>, vector<12x16x16xf32> -> vector<12x16x16xf32>
    "tpu.trace_stop"() : () -> ()
    %36 = arith.negf %35 : vector<12x16x16xf32>
    %37 = math.exp %36 : vector<12x16x16xf32>
    %cst_12 = arith.constant 1.000000e+00 : f32
    %38 = vector.broadcast %cst_12 : f32 to vector<12x16x16xf32>
    %39 = arith.addf %38, %37 : vector<12x16x16xf32>
    %40 = arith.divf %38, %39 : vector<12x16x16xf32>
    %41 = arith.addf %32, %40 : vector<12x16x16xf32>
    %cst_13 = arith.constant 2.500000e-01 : f32
    %42 = vector.broadcast %cst_13 : f32 to vector<12x16x16xf32>
    %43 = arith.mulf %41, %42 : vector<12x16x16xf32>
    %44 = vector.extract_strided_slice %43 {offsets = [0, 0, 0], sizes = [12, 1, 16], strides = [1, 1, 1]} : vector<12x16x16xf32> to vector<12x1x16xf32>
    %45 = vector.shape_cast %44 : vector<12x1x16xf32> to vector<12x16xf32>
    %c0_14 = arith.constant 0 : index
    %c0_15 = arith.constant 0 : index
    %c0_16 = arith.constant 0 : index
    %46 = vector.load %arg3[%c0_14, %c0_15, %c0_16] : memref<1x12x256xf32, #tpu.memory_space<vmem>>, vector<1x12x16xf32>
    %47 = vector.shape_cast %46 : vector<1x12x16xf32> to vector<12x16xf32>
    %48 = vector.shape_cast %45 : vector<12x16xf32> to vector<1x12x16xf32>
    tpu.vector_store %arg3[%c0_14, %c0_15, %c0_16], %48 {strides = array<i32>} : memref<1x12x256xf32, #tpu.memory_space<vmem>>, vector<1x12x16xf32>,
    %49 = vector.extract_strided_slice %43 {offsets = [0, 1, 0], sizes = [12, 1, 16], strides = [1, 1, 1]} : vector<12x16x16xf32> to vector<12x1x16xf32>
    %50 = vector.shape_cast %49 : vector<12x1x16xf32> to vector<12x16xf32>
    %c0_17 = arith.constant 0 : index
    %c0_18 = arith.constant 0 : index
    %c16 = arith.constant 16 : index
    %51 = vector.load %arg3[%c0_17, %c0_18, %c16] : memref<1x12x256xf32, #tpu.memory_space<vmem>>, vector<1x12x16xf32>
    %52 = vector.shape_cast %51 : vector<1x12x16xf32> to vector<12x16xf32>
    %53 = vector.shape_cast %50 : vector<12x16xf32> to vector<1x12x16xf32>
    tpu.vector_store %arg3[%c0_17, %c0_18, %c16], %53 {strides = array<i32>} : memref<1x12x256xf32, #tpu.memory_space<vmem>>, vector<1x12x16xf32>,
    %54 = vector.extract_strided_slice %43 {offsets = [0, 2, 0], sizes = [12, 1, 16], strides = [1, 1, 1]} : vector<12x16x16xf32> to vector<12x1x16xf32>
    %55 = vector.shape_cast %54 : vector<12x1x16xf32> to vector<12x16xf32>
    %c0_19 = arith.constant 0 : index
    %c0_20 = arith.constant 0 : index
    %c32 = arith.constant 32 : index
    %56 = vector.load %arg3[%c0_19, %c0_20, %c32] : memref<1x12x256xf32, #tpu.memory_space<vmem>>, vector<1x12x16xf32>
    %57 = vector.shape_cast %56 : vector<1x12x16xf32> to vector<12x16xf32>
    %58 = vector.shape_cast %55 : vector<12x16xf32> to vector<1x12x16xf32>
    tpu.vector_store %arg3[%c0_19, %c0_20, %c32], %58 {strides = array<i32>} : memref<1x12x256xf32, #tpu.memory_space<vmem>>, vector<1x12x16xf32>,
    %59 = vector.extract_strided_slice %43 {offsets = [0, 3, 0], sizes = [12, 1, 16], strides = [1, 1, 1]} : vector<12x16x16xf32> to vector<12x1x16xf32>
    %60 = vector.shape_cast %59 : vector<12x1x16xf32> to vector<12x16xf32>
    %c0_21 = arith.constant 0 : index
    %c0_22 = arith.constant 0 : index
    %c48 = arith.constant 48 : index
    %61 = vector.load %arg3[%c0_21, %c0_22, %c48] : memref<1x12x256xf32, #tpu.memory_space<vmem>>, vector<1x12x16xf32>
    %62 = vector.shape_cast %61 : vector<1x12x16xf32> to vector<12x16xf32>
    %63 = vector.shape_cast %60 : vector<12x16xf32> to vector<1x12x16xf32>
    tpu.vector_store %arg3[%c0_21, %c0_22, %c48], %63 {strides = array<i32>} : memref<1x12x256xf32, #tpu.memory_space<vmem>>, vector<1x12x16xf32>,
    %64 = vector.extract_strided_slice %43 {offsets = [0, 4, 0], sizes = [12, 1, 16], strides = [1, 1, 1]} : vector<12x16x16xf32> to vector<12x1x16xf32>
    %65 = vector.shape_cast %64 : vector<12x1x16xf32> to vector<12x16xf32>
    %c0_23 = arith.constant 0 : index
    %c0_24 = arith.constant 0 : index
    %c64 = arith.constant 64 : index
    %66 = vector.load %arg3[%c0_23, %c0_24, %c64] : memref<1x12x256xf32, #tpu.memory_space<vmem>>, vector<1x12x16xf32>
    %67 = vector.shape_cast %66 : vector<1x12x16xf32> to vector<12x16xf32>
    %68 = vector.shape_cast %65 : vector<12x16xf32> to vector<1x12x16xf32>
    tpu.vector_store %arg3[%c0_23, %c0_24, %c64], %68 {strides = array<i32>} : memref<1x12x256xf32, #tpu.memory_space<vmem>>, vector<1x12x16xf32>,
    %69 = vector.extract_strided_slice %43 {offsets = [0, 5, 0], sizes = [12, 1, 16], strides = [1, 1, 1]} : vector<12x16x16xf32> to vector<12x1x16xf32>
    %70 = vector.shape_cast %69 : vector<12x1x16xf32> to vector<12x16xf32>
    %c0_25 = arith.constant 0 : index
    %c0_26 = arith.constant 0 : index
    %c80 = arith.constant 80 : index
    %71 = vector.load %arg3[%c0_25, %c0_26, %c80] : memref<1x12x256xf32, #tpu.memory_space<vmem>>, vector<1x12x16xf32>
    %72 = vector.shape_cast %71 : vector<1x12x16xf32> to vector<12x16xf32>
    %73 = vector.shape_cast %70 : vector<12x16xf32> to vector<1x12x16xf32>
    tpu.vector_store %arg3[%c0_25, %c0_26, %c80], %73 {strides = array<i32>} : memref<1x12x256xf32, #tpu.memory_space<vmem>>, vector<1x12x16xf32>,
    %74 = vector.extract_strided_slice %43 {offsets = [0, 6, 0], sizes = [12, 1, 16], strides = [1, 1, 1]} : vector<12x16x16xf32> to vector<12x1x16xf32>
    %75 = vector.shape_cast %74 : vector<12x1x16xf32> to vector<12x16xf32>
    %c0_27 = arith.constant 0 : index
    %c0_28 = arith.constant 0 : index
    %c96 = arith.constant 96 : index
    %76 = vector.load %arg3[%c0_27, %c0_28, %c96] : memref<1x12x256xf32, #tpu.memory_space<vmem>>, vector<1x12x16xf32>
    %77 = vector.shape_cast %76 : vector<1x12x16xf32> to vector<12x16xf32>
    %78 = vector.shape_cast %75 : vector<12x16xf32> to vector<1x12x16xf32>
    tpu.vector_store %arg3[%c0_27, %c0_28, %c96], %78 {strides = array<i32>} : memref<1x12x256xf32, #tpu.memory_space<vmem>>, vector<1x12x16xf32>,
    %79 = vector.extract_strided_slice %43 {offsets = [0, 7, 0], sizes = [12, 1, 16], strides = [1, 1, 1]} : vector<12x16x16xf32> to vector<12x1x16xf32>
    %80 = vector.shape_cast %79 : vector<12x1x16xf32> to vector<12x16xf32>
    %c0_29 = arith.constant 0 : index
    %c0_30 = arith.constant 0 : index
    %c112 = arith.constant 112 : index
    %81 = vector.load %arg3[%c0_29, %c0_30, %c112] : memref<1x12x256xf32, #tpu.memory_space<vmem>>, vector<1x12x16xf32>
    %82 = vector.shape_cast %81 : vector<1x12x16xf32> to vector<12x16xf32>
    %83 = vector.shape_cast %80 : vector<12x16xf32> to vector<1x12x16xf32>
    tpu.vector_store %arg3[%c0_29, %c0_30, %c112], %83 {strides = array<i32>} : memref<1x12x256xf32, #tpu.memory_space<vmem>>, vector<1x12x16xf32>,
    %84 = vector.extract_strided_slice %43 {offsets = [0, 8, 0], sizes = [12, 1, 16], strides = [1, 1, 1]} : vector<12x16x16xf32> to vector<12x1x16xf32>
    %85 = vector.shape_cast %84 : vector<12x1x16xf32> to vector<12x16xf32>
    %c0_31 = arith.constant 0 : index
    %c0_32 = arith.constant 0 : index
    %c128 = arith.constant 128 : index
    %86 = vector.load %arg3[%c0_31, %c0_32, %c128] : memref<1x12x256xf32, #tpu.memory_space<vmem>>, vector<1x12x16xf32>
    %87 = vector.shape_cast %86 : vector<1x12x16xf32> to vector<12x16xf32>
    %88 = vector.shape_cast %85 : vector<12x16xf32> to vector<1x12x16xf32>
    tpu.vector_store %arg3[%c0_31, %c0_32, %c128], %88 {strides = array<i32>} : memref<1x12x256xf32, #tpu.memory_space<vmem>>, vector<1x12x16xf32>,
    %89 = vector.extract_strided_slice %43 {offsets = [0, 9, 0], sizes = [12, 1, 16], strides = [1, 1, 1]} : vector<12x16x16xf32> to vector<12x1x16xf32>
    %90 = vector.shape_cast %89 : vector<12x1x16xf32> to vector<12x16xf32>
    %c0_33 = arith.constant 0 : index
    %c0_34 = arith.constant 0 : index
    %c144 = arith.constant 144 : index
    %91 = vector.load %arg3[%c0_33, %c0_34, %c144] : memref<1x12x256xf32, #tpu.memory_space<vmem>>, vector<1x12x16xf32>
    %92 = vector.shape_cast %91 : vector<1x12x16xf32> to vector<12x16xf32>
    %93 = vector.shape_cast %90 : vector<12x16xf32> to vector<1x12x16xf32>
    tpu.vector_store %arg3[%c0_33, %c0_34, %c144], %93 {strides = array<i32>} : memref<1x12x256xf32, #tpu.memory_space<vmem>>, vector<1x12x16xf32>,
    %94 = vector.extract_strided_slice %43 {offsets = [0, 10, 0], sizes = [12, 1, 16], strides = [1, 1, 1]} : vector<12x16x16xf32> to vector<12x1x16xf32>
    %95 = vector.shape_cast %94 : vector<12x1x16xf32> to vector<12x16xf32>
    %c0_35 = arith.constant 0 : index
    %c0_36 = arith.constant 0 : index
    %c160 = arith.constant 160 : index
    %96 = vector.load %arg3[%c0_35, %c0_36, %c160] : memref<1x12x256xf32, #tpu.memory_space<vmem>>, vector<1x12x16xf32>
    %97 = vector.shape_cast %96 : vector<1x12x16xf32> to vector<12x16xf32>
    %98 = vector.shape_cast %95 : vector<12x16xf32> to vector<1x12x16xf32>
    tpu.vector_store %arg3[%c0_35, %c0_36, %c160], %98 {strides = array<i32>} : memref<1x12x256xf32, #tpu.memory_space<vmem>>, vector<1x12x16xf32>,
    %99 = vector.extract_strided_slice %43 {offsets = [0, 11, 0], sizes = [12, 1, 16], strides = [1, 1, 1]} : vector<12x16x16xf32> to vector<12x1x16xf32>
    %100 = vector.shape_cast %99 : vector<12x1x16xf32> to vector<12x16xf32>
    %c0_37 = arith.constant 0 : index
    %c0_38 = arith.constant 0 : index
    %c176 = arith.constant 176 : index
    %101 = vector.load %arg3[%c0_37, %c0_38, %c176] : memref<1x12x256xf32, #tpu.memory_space<vmem>>, vector<1x12x16xf32>
    %102 = vector.shape_cast %101 : vector<1x12x16xf32> to vector<12x16xf32>
    %103 = vector.shape_cast %100 : vector<12x16xf32> to vector<1x12x16xf32>
    tpu.vector_store %arg3[%c0_37, %c0_38, %c176], %103 {strides = array<i32>} : memref<1x12x256xf32, #tpu.memory_space<vmem>>, vector<1x12x16xf32>,
    %104 = vector.extract_strided_slice %43 {offsets = [0, 12, 0], sizes = [12, 1, 16], strides = [1, 1, 1]} : vector<12x16x16xf32> to vector<12x1x16xf32>
    %105 = vector.shape_cast %104 : vector<12x1x16xf32> to vector<12x16xf32>
    %c0_39 = arith.constant 0 : index
    %c0_40 = arith.constant 0 : index
    %c192 = arith.constant 192 : index
    %106 = vector.load %arg3[%c0_39, %c0_40, %c192] : memref<1x12x256xf32, #tpu.memory_space<vmem>>, vector<1x12x16xf32>
    %107 = vector.shape_cast %106 : vector<1x12x16xf32> to vector<12x16xf32>
    %108 = vector.shape_cast %105 : vector<12x16xf32> to vector<1x12x16xf32>
    tpu.vector_store %arg3[%c0_39, %c0_40, %c192], %108 {strides = array<i32>} : memref<1x12x256xf32, #tpu.memory_space<vmem>>, vector<1x12x16xf32>,
    %109 = vector.extract_strided_slice %43 {offsets = [0, 13, 0], sizes = [12, 1, 16], strides = [1, 1, 1]} : vector<12x16x16xf32> to vector<12x1x16xf32>
    %110 = vector.shape_cast %109 : vector<12x1x16xf32> to vector<12x16xf32>
    %c0_41 = arith.constant 0 : index
    %c0_42 = arith.constant 0 : index
    %c208 = arith.constant 208 : index
    %111 = vector.load %arg3[%c0_41, %c0_42, %c208] : memref<1x12x256xf32, #tpu.memory_space<vmem>>, vector<1x12x16xf32>
    %112 = vector.shape_cast %111 : vector<1x12x16xf32> to vector<12x16xf32>
    %113 = vector.shape_cast %110 : vector<12x16xf32> to vector<1x12x16xf32>
    tpu.vector_store %arg3[%c0_41, %c0_42, %c208], %113 {strides = array<i32>} : memref<1x12x256xf32, #tpu.memory_space<vmem>>, vector<1x12x16xf32>,
    %114 = vector.extract_strided_slice %43 {offsets = [0, 14, 0], sizes = [12, 1, 16], strides = [1, 1, 1]} : vector<12x16x16xf32> to vector<12x1x16xf32>
    %115 = vector.shape_cast %114 : vector<12x1x16xf32> to vector<12x16xf32>
    %c0_43 = arith.constant 0 : index
    %c0_44 = arith.constant 0 : index
    %c224 = arith.constant 224 : index
    %116 = vector.load %arg3[%c0_43, %c0_44, %c224] : memref<1x12x256xf32, #tpu.memory_space<vmem>>, vector<1x12x16xf32>
    %117 = vector.shape_cast %116 : vector<1x12x16xf32> to vector<12x16xf32>
    %118 = vector.shape_cast %115 : vector<12x16xf32> to vector<1x12x16xf32>
    tpu.vector_store %arg3[%c0_43, %c0_44, %c224], %118 {strides = array<i32>} : memref<1x12x256xf32, #tpu.memory_space<vmem>>, vector<1x12x16xf32>,
    %119 = vector.extract_strided_slice %43 {offsets = [0, 15, 0], sizes = [12, 1, 16], strides = [1, 1, 1]} : vector<12x16x16xf32> to vector<12x1x16xf32>
    %120 = vector.shape_cast %119 : vector<12x1x16xf32> to vector<12x16xf32>
    %c0_45 = arith.constant 0 : index
    %c0_46 = arith.constant 0 : index
    %c240 = arith.constant 240 : index
    %121 = vector.load %arg3[%c0_45, %c0_46, %c240] : memref<1x12x256xf32, #tpu.memory_space<vmem>>, vector<1x12x16xf32>
    %122 = vector.shape_cast %121 : vector<1x12x16xf32> to vector<12x16xf32>
    %123 = vector.shape_cast %120 : vector<12x16xf32> to vector<1x12x16xf32>
    tpu.vector_store %arg3[%c0_45, %c0_46, %c240], %123 {strides = array<i32>} : memref<1x12x256xf32, #tpu.memory_space<vmem>>, vector<1x12x16xf32>,
    return
  }
  func.func @transform_0(%arg0: i32) -> (i32, i32) {
    %c0_i32 = arith.constant 0 : i32
    %c0_i32_0 = arith.constant 0 : i32
    %c0_i32_1 = arith.constant 0 : i32
    return %c0_i32, %c0_i32_0 : i32, i32
  }
  func.func @transform_1(%arg0: i32) -> (i32, i32, i32) {
    %c0_i32 = arith.constant 0 : i32
    %c0_i32_0 = arith.constant 0 : i32
    %c0_i32_1 = arith.constant 0 : i32
    return %arg0, %c0_i32, %c0_i32_0 : i32, i32, i32
  }
  func.func @transform_2(%arg0: i32) -> (i32, i32, i32) {
    %c0_i32 = arith.constant 0 : i32
    %c0_i32_0 = arith.constant 0 : i32
    %c0_i32_1 = arith.constant 0 : i32
    return %arg0, %c0_i32, %c0_i32_0 : i32, i32, i32
  }
}

</mosaic_0001>

<llo_original>
// kernel: tpu_custom_call.1
$region0: #{tpu_custom_call.1}
  #allocation0 [shape = 'u32[]', space=smem, size = 0x4, offset = 0x4, fixed_abs, tag = 'smem constant byte address 0x4 - core index']
  #allocation1 [shape = 'u32[144,128]{1,0:T(1,128)}', space=vmem, size = 0x12000, scoped, tag = 'internal scratch']
  %s0 = inlined_call_operand.vmem [shape: f32[16,32], index: 0, kind: input, shape index: {}]
  %s1 = inlined_call_operand.vmem [shape: f32[2,192,16], index: 1, kind: input, shape index: {}]
  %s2 = inlined_call_operand.vmem [shape: f32[2,12,256], index: 2, kind: output, shape index: {}]
  %s3 = sld [smem:[#allocation0]]
  $region41: #{tpu_custom_call.1} parent=0
    _
  %s5 = ssub.s32 1, %s3
  %s6 = scalar_select 0, %s5, %s3
  loop: start=0, step=1, limit=4
  $region2: #{tpu_custom_call.1} parent=0 // loop_pre_header
    _
  $region3: #{tpu_custom_call.1} parent=0 // loop_header
    %s8 = sphi 0, %s12
    %p9 = scmp.ge.s32.totalorder %s8, 4
    %s16 = sphi 0, %s16
    %s18 = sphi 0, %s16
    %s19 = sphi 0, %s18
    %s33 = sphi 0, %s19
    %s39 = sphi 0, %s41
    %s42 = sphi 0, %s39
    %s43 = sphi 0, %s42
    %s59 = sphi 0, %s43
    %s65 = sphi 0, %s67
    %s68 = sphi 0, %s65
    %s69 = sphi 0, %s68
    %s85 = sphi 0, %s69
  $region4: #{tpu_custom_call.1} parent=0 // loop_header_branch
    %11 = sbr.rel (%p9) target = $region8
  $region5: #{tpu_custom_call.1} parent=0 // loop_body
    %s13 = ssub.s32 %s8, 1
    %s14 = ssub.s32 %s8, 2
    %s15 = sadd.s32 %s8, 1
    %s17 = sadd.s32 %s16, 1
    %p20 = scmp.eq.s32.totalorder %s8, 1
    %p21 = scmp.ne.s32.totalorder %s16, %s18
    %p22 = scmp.eq.s32.totalorder %s8, 0
    %p23 = por %p21, %p22
    %p24 = scmp.ne.s32.totalorder %s16, %s18
    %p25 = scmp.eq.s32.totalorder %s13, 1
    %p26 = por %p24, %p25
    %p27 = scmp.ne.s32.totalorder %s18, %s19
    %p28 = scmp.eq.s32.totalorder %s13, 0
    %p29 = por %p27, %p28
    %p30 = scmp.ne.s32.totalorder %s18, %s19
    %p31 = scmp.eq.s32.totalorder %s14, 1
    %p32 = por %p30, %p31
    %p34 = scmp.ne.s32.totalorder %s19, %s33
    %p35 = scmp.eq.s32.totalorder %s14, 0
    %p36 = por %p34, %p35
    %s37 = ssub.s32 %s8, %s15
    %p38 = scmp.eq.s32.totalorder %s37, 0
    %s40 = sadd.s32 %s39, 1
    %s41 = scalar_select %p38, %s39, %s40
    %p44 = pneg %p38
    %p45 = scmp.eq.s32.totalorder %s8, 1
    %p46 = por %p44, %p45
    %p47 = scmp.ne.s32.totalorder %s39, %s42
    %p48 = scmp.eq.s32.totalorder %s8, 0
    %p49 = por %p47, %p48
    %p50 = scmp.ne.s32.totalorder %s39, %s42
    %p51 = scmp.eq.s32.totalorder %s13, 1
    %p52 = por %p50, %p51
    %p53 = scmp.ne.s32.totalorder %s42, %s43
    %p54 = scmp.eq.s32.totalorder %s13, 0
    %p55 = por %p53, %p54
    %p56 = scmp.ne.s32.totalorder %s42, %s43
    %p57 = scmp.eq.s32.totalorder %s14, 1
    %p58 = por %p56, %p57
    %p60 = scmp.ne.s32.totalorder %s43, %s59
    %p61 = scmp.eq.s32.totalorder %s14, 0
    %p62 = por %p60, %p61
    %s63 = ssub.s32 %s8, %s15
    %p64 = scmp.eq.s32.totalorder %s63, 0
    %s66 = sadd.s32 %s65, 1
    %s67 = scalar_select %p64, %s65, %s66
    %p70 = pneg %p64
    %p71 = scmp.eq.s32.totalorder %s8, 1
    %p72 = por %p70, %p71
    %p73 = scmp.ne.s32.totalorder %s65, %s68
    %p74 = scmp.eq.s32.totalorder %s8, 0
    %p75 = por %p73, %p74
    %p76 = scmp.ne.s32.totalorder %s65, %s68
    %p77 = scmp.eq.s32.totalorder %s13, 1
    %p78 = por %p76, %p77
    %p79 = scmp.ne.s32.totalorder %s68, %s69
    %p80 = scmp.eq.s32.totalorder %s13, 0
    %p81 = por %p79, %p80
    %p82 = scmp.ne.s32.totalorder %s68, %s69
    %p83 = scmp.eq.s32.totalorder %s14, 1
    %p84 = por %p82, %p83
    %p86 = scmp.ne.s32.totalorder %s69, %s85
    %p87 = scmp.eq.s32.totalorder %s14, 0
    %p88 = por %p86, %p87
    %p89 = scmp.le.s32.totalorder 1, %s8
    %p90 = scmp.lt.s32.totalorder %s8, 3
    %p91 = pnand %p89, %p90
    %p92 = pneg %p91
    // Predicated region
    $region9: #{tpu_custom_call.1} parent=5 // pred_check
      _
    $region10: #{tpu_custom_call.1} parent=5 // pred_check_branch
      %94 = sbr.rel (%p91) target = $region12
    $region11: #{tpu_custom_call.1} parent=5 // pred_region
      %s95 = ssub.s32 %s8, 1
      // Predicated region
      $region13: #{tpu_custom_call.1} parent=11 // pred_check
        %p96 = pneg %p29
      $region14: #{tpu_custom_call.1} parent=11 // pred_check_branch
        %98 = sbr.rel (%p96) target = $region16
      $region15: #{tpu_custom_call.1} parent=11 // pred_region
        _
      $region16: #{tpu_custom_call.1} parent=11 // pred_fallthru
        _
    $region12: #{tpu_custom_call.1} parent=5 // pred_fallthru
      _
    %p99 = scmp.lt.s32.totalorder %s8, 2
    // Predicated region
    $region17: #{tpu_custom_call.1} parent=5 // pred_check
      %p100 = pneg %p99
    $region18: #{tpu_custom_call.1} parent=5 // pred_check_branch
      %102 = sbr.rel (%p100) target = $region20
    $region19: #{tpu_custom_call.1} parent=5 // pred_region
      // Predicated region
      $region21: #{tpu_custom_call.1} parent=19 // pred_check
        %p103 = pneg %p49
      $region22: #{tpu_custom_call.1} parent=19 // pred_check_branch
        %105 = sbr.rel (%p103) target = $region24
      $region23: #{tpu_custom_call.1} parent=19 // pred_region
        %p106 = scmp.lt.s32.totalorder %s8, 1
        %s107 = scalar_select %p106, %s8, 1
        %s108 = smul.addr %s107, 24
        %s109 = smul.addr %s108, 8
        %s110 = scalar_lea.vmem %s1, %s109
      $region24: #{tpu_custom_call.1} parent=19 // pred_fallthru
        _
    $region20: #{tpu_custom_call.1} parent=5 // pred_fallthru
      _
    %p111 = scmp.le.s32.totalorder 1, %s8
    %p112 = scmp.lt.s32.totalorder %s8, 3
    %p113 = pnand %p111, %p112
    %p114 = pneg %p113
    // Predicated region
    $region25: #{tpu_custom_call.1} parent=5 // pred_check
      _
    $region26: #{tpu_custom_call.1} parent=5 // pred_check_branch
      %116 = sbr.rel (%p113) target = $region28
    $region27: #{tpu_custom_call.1} parent=5 // pred_region
      %s117 = ssub.s32 %s8, 1
      %p118 = pneg %p29
      %p119 = pneg %p26
      %p120 = scmp.lt.s32.totalorder %s13, 1
      %s121 = scalar_select %p120, %s13, 1
      %s122 = smul.addr %s121, 24
      %s123 = smul.addr %s122, 8
      %s124 = scalar_lea.vmem %s1, %s123
      %p125 = pneg %p55
      %p126 = pneg %p52
      %p127 = pneg %p81
      %p128 = pneg %p78
      %p129 = scmp.lt.s32.totalorder %s13, 1
      %s130 = scalar_select %p129, %s13, 1
      %s131 = smul.addr %s130, 4
      %s132 = smul.addr %s131, 8
      %s133 = scalar_lea.vmem %s2, %s132
      %p134 = scmp.lt.s32.totalorder %s13, 1
      %s135 = scalar_select %p134, %s13, 1
      %s136 = smul.addr %s135, 24
      %s137 = smul.addr %s136, 8
      %s138 = scalar_lea.vmem %s1, %s137
      %p139 = scmp.lt.s32.totalorder %s13, 1
      %s140 = scalar_select %p139, %s13, 1
      %s141 = smul.addr %s140, 4
      %s142 = smul.addr %s141, 8
      %s143 = scalar_lea.vmem %s2, %s142
      %v144 = vld [vmem:[%s138] sm:$0xff]
      %v145 = vld [vmem:[%s138 + $0x8] sm:$0xff]
      %v146 = vld [vmem:[%s138 + $0x10] sm:$0xff]
      %v147 = vld [vmem:[%s138 + $0x18] sm:$0xff]
      %v148 = vld [vmem:[%s138 + $0x20] sm:$0xff]
      %v149 = vld [vmem:[%s138 + $0x28] sm:$0xff]
      %v150 = vld [vmem:[%s138 + $0x30] sm:$0xff]
      %v151 = vld [vmem:[%s138 + $0x38] sm:$0xff]
      %v152 = vld [vmem:[%s138 + $0x40] sm:$0xff]
      %v153 = vld [vmem:[%s138 + $0x48] sm:$0xff]
      %v154 = vld [vmem:[%s138 + $0x50] sm:$0xff]
      %v155 = vld [vmem:[%s138 + $0x58] sm:$0xff]
      %v156 = vld [vmem:[%s138 + $0x60] sm:$0xff]
      %v157 = vld [vmem:[%s138 + $0x68] sm:$0xff]
      %v158 = vld [vmem:[%s138 + $0x70] sm:$0xff]
      %v159 = vld [vmem:[%s138 + $0x78] sm:$0xff]
      %v160 = vld [vmem:[%s138 + $0x80] sm:$0xff]
      %v161 = vld [vmem:[%s138 + $0x88] sm:$0xff]
      %v162 = vld [vmem:[%s138 + $0x90] sm:$0xff]
      %v163 = vld [vmem:[%s138 + $0x98] sm:$0xff]
      %v164 = vld [vmem:[%s138 + $0xa0] sm:$0xff]
      %v165 = vld [vmem:[%s138 + $0xa8] sm:$0xff]
      %v166 = vld [vmem:[%s138 + $0xb0] sm:$0xff]
      %v167 = vld [vmem:[%s138 + $0xb8] sm:$0xff]
      %v168 = vld [vmem:[%s0] sm:$0xff]
      %v169 = vld [vmem:[%s0 + $0x8] sm:$0xff]
      %vm170 = vcmask 130048
      %v172 = vsel %vm170, %v144, 0
      %v175 = vsel %vm170, %v145, 0
      %v178 = vsel %vm170, %v146, 0
      %v181 = vsel %vm170, %v147, 0
      %v184 = vsel %vm170, %v148, 0
      %v187 = vsel %vm170, %v149, 0
      %v190 = vsel %vm170, %v150, 0
      %v193 = vsel %vm170, %v151, 0
      %v196 = vsel %vm170, %v152, 0
      %v199 = vsel %vm170, %v153, 0
      %v202 = vsel %vm170, %v154, 0
      %v205 = vsel %vm170, %v155, 0
      %v208 = vsel %vm170, %v156, 0
      %v211 = vsel %vm170, %v157, 0
      %v214 = vsel %vm170, %v158, 0
      %v217 = vsel %vm170, %v159, 0
      %v220 = vsel %vm170, %v160, 0
      %v223 = vsel %vm170, %v161, 0
      %v226 = vsel %vm170, %v162, 0
      %v229 = vsel %vm170, %v163, 0
      %v232 = vsel %vm170, %v164, 0
      %v235 = vsel %vm170, %v165, 0
      %v238 = vsel %vm170, %v166, 0
      %v241 = vsel %vm170, %v167, 0
      %243 = vmatprep.subr.mxu0 0.0
      %244 = vmatpush1.msra.mxu0 0.0
      %245 = vmatprep.subr.mxu0 0.0
      %246 = vmatpush1.msra.mxu0 0.0
      %247 = vmatprep.subr.mxu0 0.0
      %248 = vmatpush1.msra.mxu0 0.0
      %249 = vmatprep.subr.mxu0 0.0
      %250 = vmatpush1.msra.mxu0 0.0
      %251 = vmatprep.subr.mxu0 0.0
      %252 = vmatpush1.msra.mxu0 0.0
      %253 = vmatprep.subr.mxu0 0.0
      %254 = vmatpush1.msra.mxu0 0.0
      %255 = vmatprep.subr.mxu0 0.0
      %256 = vmatpush1.msra.mxu0 0.0
      %257 = vmatprep.subr.mxu0 0.0
      %258 = vmatpush1.msra.mxu0 0.0
      %259 = vmatprep.subr.mxu0 0.0
      %260 = vmatpush1.msra.mxu0 0.0
      %261 = vmatprep.subr.mxu0 0.0
      %262 = vmatpush1.msra.mxu0 0.0
      %263 = vmatprep.subr.mxu0 0.0
      %264 = vmatpush1.msra.mxu0 0.0
      %265 = vmatprep.subr.mxu0 0.0
      %266 = vmatpush1.msra.mxu0 0.0
      %267 = vmatprep.subr.mxu0 0.0
      %268 = vmatpush1.msra.mxu0 0.0
      %269 = vmatprep.subr.mxu0 0.0
      %270 = vmatpush1.msra.mxu0 0.0
      %271 = vmatprep.subr.mxu0 0.0
      %272 = vmatpush1.msra.mxu0 %v169
      %273 = vmatprep.subr.mxu0 0.0
      %274 = vmatpush1.msra.mxu0 %v168
      %275 = vmatprep.subr.mxu0 0.0
      %276 = vmatpush2.msra.mxu0 0.0
      %277 = vmatprep.subr.mxu0 0.0
      %278 = vmatpush2.msra.mxu0 0.0
      %279 = vmatprep.subr.mxu0 0.0
      %280 = vmatpush2.msra.mxu0 0.0
      %281 = vmatprep.subr.mxu0 0.0
      %282 = vmatpush2.msra.mxu0 0.0
      %283 = vmatprep.subr.mxu0 0.0
      %284 = vmatpush2.msra.mxu0 0.0
      %285 = vmatprep.subr.mxu0 0.0
      %286 = vmatpush2.msra.mxu0 0.0
      %287 = vmatprep.subr.mxu0 0.0
      %288 = vmatpush2.msra.mxu0 0.0
      %289 = vmatprep.subr.mxu0 0.0
      %290 = vmatpush2.msra.mxu0 0.0
      %291 = vmatprep.subr.mxu0 0.0
      %292 = vmatpush2.msra.mxu0 0.0
      %293 = vmatprep.subr.mxu0 0.0
      %294 = vmatpush2.msra.mxu0 0.0
      %295 = vmatprep.subr.mxu0 0.0
      %296 = vmatpush2.msra.mxu0 0.0
      %297 = vmatprep.subr.mxu0 0.0
      %298 = vmatpush2.msra.mxu0 0.0
      %299 = vmatprep.subr.mxu0 0.0
      %300 = vmatpush2.msra.mxu0 0.0
      %301 = vmatprep.subr.mxu0 0.0
      %302 = vmatpush2.msra.mxu0 0.0
      %303 = vmatprep.subr.mxu0 0.0
      %304 = vmatpush2.msra.mxu0 0.0
      %305 = vmatprep.subr.mxu0 0.0
      %306 = vmatpush2.msra.mxu0 0.0
      %307 = vmatprep.mubr.f32.mxu0 0.0
      %308 = vmatmul.mubr.f32.gmra.mxu0 %v172
      %v309 = vpop.f32.mrf.mxu0
      %v310 = vadd.f32 0.0, %v309
      %v311 = vpop.f32.mrf.mxu0
      %312 = vmatprep.mubr.f32.mxu0 0.0
      %313 = vmatmul.mubr.f32.gmra.mxu0 %v175
      %v314 = vpop.f32.mrf.mxu0
      %v315 = vadd.f32 0.0, %v314
      %v316 = vpop.f32.mrf.mxu0
      %317 = vmatprep.mubr.f32.mxu0 0.0
      %318 = vmatmul.mubr.f32.gmra.mxu0 %v178
      %v319 = vpop.f32.mrf.mxu0
      %v320 = vadd.f32 0.0, %v319
      %v321 = vpop.f32.mrf.mxu0
      %322 = vmatprep.mubr.f32.mxu0 0.0
      %323 = vmatmul.mubr.f32.gmra.mxu0 %v181
      %v324 = vpop.f32.mrf.mxu0
      %v325 = vadd.f32 0.0, %v324
      %v326 = vpop.f32.mrf.mxu0
      %327 = vmatprep.mubr.f32.mxu0 0.0
      %328 = vmatmul.mubr.f32.gmra.mxu0 %v184
      %v329 = vpop.f32.mrf.mxu0
      %v330 = vadd.f32 0.0, %v329
      %v331 = vpop.f32.mrf.mxu0
      %332 = vmatprep.mubr.f32.mxu0 0.0
      %333 = vmatmul.mubr.f32.gmra.mxu0 %v187
      %v334 = vpop.f32.mrf.mxu0
      %v335 = vadd.f32 0.0, %v334
      %v336 = vpop.f32.mrf.mxu0
      %337 = vmatprep.mubr.f32.mxu0 0.0
      %338 = vmatmul.mubr.f32.gmra.mxu0 %v190
      %v339 = vpop.f32.mrf.mxu0
      %v340 = vadd.f32 0.0, %v339
      %v341 = vpop.f32.mrf.mxu0
      %342 = vmatprep.mubr.f32.mxu0 0.0
      %343 = vmatmul.mubr.f32.gmra.mxu0 %v193
      %v344 = vpop.f32.mrf.mxu0
      %v345 = vadd.f32 0.0, %v344
      %v346 = vpop.f32.mrf.mxu0
      %347 = vmatprep.mubr.f32.mxu0 0.0
      %348 = vmatmul.mubr.f32.gmra.mxu0 %v196
      %v349 = vpop.f32.mrf.mxu0
      %v350 = vadd.f32 0.0, %v349
      %v351 = vpop.f32.mrf.mxu0
      %352 = vmatprep.mubr.f32.mxu0 0.0
      %353 = vmatmul.mubr.f32.gmra.mxu0 %v199
      %v354 = vpop.f32.mrf.mxu0
      %v355 = vadd.f32 0.0, %v354
      %v356 = vpop.f32.mrf.mxu0
      %357 = vmatprep.mubr.f32.mxu0 0.0
      %358 = vmatmul.mubr.f32.gmra.mxu0 %v202
      %v359 = vpop.f32.mrf.mxu0
      %v360 = vadd.f32 0.0, %v359
      %v361 = vpop.f32.mrf.mxu0
      %362 = vmatprep.mubr.f32.mxu0 0.0
      %363 = vmatmul.mubr.f32.gmra.mxu0 %v205
      %v364 = vpop.f32.mrf.mxu0
      %v365 = vadd.f32 0.0, %v364
      %v366 = vpop.f32.mrf.mxu0
      %367 = vmatprep.mubr.f32.mxu0 0.0
      %368 = vmatmul.mubr.f32.gmra.mxu0 %v208
      %v369 = vpop.f32.mrf.mxu0
      %v370 = vadd.f32 0.0, %v369
      %v371 = vpop.f32.mrf.mxu0
      %372 = vmatprep.mubr.f32.mxu0 0.0
      %373 = vmatmul.mubr.f32.gmra.mxu0 %v211
      %v374 = vpop.f32.mrf.mxu0
      %v375 = vadd.f32 0.0, %v374
      %v376 = vpop.f32.mrf.mxu0
      %377 = vmatprep.mubr.f32.mxu0 0.0
      %378 = vmatmul.mubr.f32.gmra.mxu0 %v214
      %v379 = vpop.f32.mrf.mxu0
      %v380 = vadd.f32 0.0, %v379
      %v381 = vpop.f32.mrf.mxu0
      %382 = vmatprep.mubr.f32.mxu0 0.0
      %383 = vmatmul.mubr.f32.gmra.mxu0 %v217
      %v384 = vpop.f32.mrf.mxu0
      %v385 = vadd.f32 0.0, %v384
      %v386 = vpop.f32.mrf.mxu0
      %387 = vmatprep.mubr.f32.mxu0 0.0
      %388 = vmatmul.mubr.f32.gmra.mxu0 %v220
      %v389 = vpop.f32.mrf.mxu0
      %v390 = vadd.f32 0.0, %v389
      %v391 = vpop.f32.mrf.mxu0
      %392 = vmatprep.mubr.f32.mxu0 0.0
      %393 = vmatmul.mubr.f32.gmra.mxu0 %v223
      %v394 = vpop.f32.mrf.mxu0
      %v395 = vadd.f32 0.0, %v394
      %v396 = vpop.f32.mrf.mxu0
      %397 = vmatprep.mubr.f32.mxu0 0.0
      %398 = vmatmul.mubr.f32.gmra.mxu0 %v226
      %v399 = vpop.f32.mrf.mxu0
      %v400 = vadd.f32 0.0, %v399
      %v401 = vpop.f32.mrf.mxu0
      %402 = vmatprep.mubr.f32.mxu0 0.0
      %403 = vmatmul.mubr.f32.gmra.mxu0 %v229
      %v404 = vpop.f32.mrf.mxu0
      %v405 = vadd.f32 0.0, %v404
      %v406 = vpop.f32.mrf.mxu0
      %407 = vmatprep.mubr.f32.mxu0 0.0
      %408 = vmatmul.mubr.f32.gmra.mxu0 %v232
      %v409 = vpop.f32.mrf.mxu0
      %v410 = vadd.f32 0.0, %v409
      %v411 = vpop.f32.mrf.mxu0
      %412 = vmatprep.mubr.f32.mxu0 0.0
      %413 = vmatmul.mubr.f32.gmra.mxu0 %v235
      %v414 = vpop.f32.mrf.mxu0
      %v415 = vadd.f32 0.0, %v414
      %v416 = vpop.f32.mrf.mxu0
      %417 = vmatprep.mubr.f32.mxu0 0.0
      %418 = vmatmul.mubr.f32.gmra.mxu0 %v238
      %v419 = vpop.f32.mrf.mxu0
      %v420 = vadd.f32 0.0, %v419
      %v421 = vpop.f32.mrf.mxu0
      %422 = vmatprep.mubr.f32.mxu0 0.0
      %423 = vmatmul.mubr.f32.gmra.mxu0 %v241
      %v424 = vpop.f32.mrf.mxu0
      %v425 = vadd.f32 0.0, %v424
      %v426 = vpop.f32.mrf.mxu0
      %427 = vdwg.mxu0
      %430 = vrot.lane.b32.xlu0 %v310, 112
      %v431 = vpop.permute.xlu0 %430
      %432 = vrot.lane.b32.xlu0 %v315, 112
      %v433 = vpop.permute.xlu0 %432
      %vm434 = vcmask 31744
      %v435 = vsel %vm434, %v310, 0
      %v437 = vsel %vm434, %v315, 0
      %v439 = vsel %vm434, %v431, 0
      %v441 = vsel %vm434, %v433, 0
      %443 = vmatprep.subr.mxu0 0.0
      %444 = vmatpush1.xpose.msra.mxu0 0.0
      %445 = vmatprep.subr.mxu0 0.0
      %446 = vmatpush1.xpose.msra.mxu0 0.0
      %447 = vmatprep.subr.mxu0 0.0
      %448 = vmatpush1.xpose.msra.mxu0 0.0
      %449 = vmatprep.subr.mxu0 0.0
      %450 = vmatpush1.xpose.msra.mxu0 0.0
      %451 = vmatprep.subr.mxu0 0.0
      %452 = vmatpush1.xpose.msra.mxu0 0.0
      %453 = vmatprep.subr.mxu0 0.0
      %454 = vmatpush1.xpose.msra.mxu0 0.0
      %455 = vmatprep.subr.mxu0 0.0
      %456 = vmatpush1.xpose.msra.mxu0 0.0
      %457 = vmatprep.subr.mxu0 0.0
      %458 = vmatpush1.xpose.msra.mxu0 0.0
      %459 = vmatprep.subr.mxu0 0.0
      %460 = vmatpush1.xpose.msra.mxu0 0.0
      %461 = vmatprep.subr.mxu0 0.0
      %462 = vmatpush1.xpose.msra.mxu0 0.0
      %463 = vmatprep.subr.mxu0 0.0
      %464 = vmatpush1.xpose.msra.mxu0 0.0
      %465 = vmatprep.subr.mxu0 0.0
      %466 = vmatpush1.xpose.msra.mxu0 0.0
      %467 = vmatprep.subr.mxu0 0.0
      %468 = vmatpush1.xpose.msra.mxu0 0.0
      %469 = vmatprep.subr.mxu0 0.0
      %470 = vmatpush1.xpose.msra.mxu0 0.0
      %471 = vmatprep.subr.mxu0 0.0
      %472 = vmatpush1.xpose.msra.mxu0 %v441
      %473 = vmatprep.subr.mxu0 0.0
      %474 = vmatpush1.xpose.msra.mxu0 %v439
      %475 = vmatprep.subr.mxu0 0.0
      %476 = vmatpush2.xpose.msra.mxu0 0.0
      %477 = vmatprep.subr.mxu0 0.0
      %478 = vmatpush2.xpose.msra.mxu0 0.0
      %479 = vmatprep.subr.mxu0 0.0
      %480 = vmatpush2.xpose.msra.mxu0 0.0
      %481 = vmatprep.subr.mxu0 0.0
      %482 = vmatpush2.xpose.msra.mxu0 0.0
      %483 = vmatprep.subr.mxu0 0.0
      %484 = vmatpush2.xpose.msra.mxu0 0.0
      %485 = vmatprep.subr.mxu0 0.0
      %486 = vmatpush2.xpose.msra.mxu0 0.0
      %487 = vmatprep.subr.mxu0 0.0
      %488 = vmatpush2.xpose.msra.mxu0 0.0
      %489 = vmatprep.subr.mxu0 0.0
      %490 = vmatpush2.xpose.msra.mxu0 0.0
      %491 = vmatprep.subr.mxu0 0.0
      %492 = vmatpush2.xpose.msra.mxu0 0.0
      %493 = vmatprep.subr.mxu0 0.0
      %494 = vmatpush2.xpose.msra.mxu0 0.0
      %495 = vmatprep.subr.mxu0 0.0
      %496 = vmatpush2.xpose.msra.mxu0 0.0
      %497 = vmatprep.subr.mxu0 0.0
      %498 = vmatpush2.xpose.msra.mxu0 0.0
      %499 = vmatprep.subr.mxu0 0.0
      %500 = vmatpush2.xpose.msra.mxu0 0.0
      %501 = vmatprep.subr.mxu0 0.0
      %502 = vmatpush2.xpose.msra.mxu0 0.0
      %503 = vmatprep.subr.mxu0 0.0
      %504 = vmatpush2.xpose.msra.mxu0 0.0
      %505 = vmatprep.subr.mxu0 0.0
      %506 = vmatpush2.xpose.msra.mxu0 0.0
      %507 = vmatprep.mubr.f32.mxu0 0.0
      %508 = vmatmul.mubr.f32.gmra.mxu0 %v435
      %v509 = vpop.f32.mrf.mxu0
      %v510 = vadd.f32 0.0, %v509
      %v511 = vpop.f32.mrf.mxu0
      %512 = vmatprep.mubr.f32.mxu0 0.0
      %513 = vmatmul.mubr.f32.gmra.mxu0 %v437
      %v514 = vpop.f32.mrf.mxu0
      %v515 = vadd.f32 0.0, %v514
      %v516 = vpop.f32.mrf.mxu0
      %517 = vdwg.mxu0
      %520 = vrot.lane.b32.xlu0 %v320, 112
      %v521 = vpop.permute.xlu0 %520
      %522 = vrot.lane.b32.xlu0 %v325, 112
      %v523 = vpop.permute.xlu0 %522
      %v524 = vsel %vm434, %v320, 0
      %v526 = vsel %vm434, %v325, 0
      %v528 = vsel %vm434, %v521, 0
      %v530 = vsel %vm434, %v523, 0
      %532 = vmatprep.subr.mxu0 0.0
      %533 = vmatpush1.xpose.msra.mxu0 0.0
      %534 = vmatprep.subr.mxu0 0.0
      %535 = vmatpush1.xpose.msra.mxu0 0.0
      %536 = vmatprep.subr.mxu0 0.0
      %537 = vmatpush1.xpose.msra.mxu0 0.0
      %538 = vmatprep.subr.mxu0 0.0
      %539 = vmatpush1.xpose.msra.mxu0 0.0
      %540 = vmatprep.subr.mxu0 0.0
      %541 = vmatpush1.xpose.msra.mxu0 0.0
      %542 = vmatprep.subr.mxu0 0.0
      %543 = vmatpush1.xpose.msra.mxu0 0.0
      %544 = vmatprep.subr.mxu0 0.0
      %545 = vmatpush1.xpose.msra.mxu0 0.0
      %546 = vmatprep.subr.mxu0 0.0
      %547 = vmatpush1.xpose.msra.mxu0 0.0
      %548 = vmatprep.subr.mxu0 0.0
      %549 = vmatpush1.xpose.msra.mxu0 0.0
      %550 = vmatprep.subr.mxu0 0.0
      %551 = vmatpush1.xpose.msra.mxu0 0.0
      %552 = vmatprep.subr.mxu0 0.0
      %553 = vmatpush1.xpose.msra.mxu0 0.0
      %554 = vmatprep.subr.mxu0 0.0
      %555 = vmatpush1.xpose.msra.mxu0 0.0
      %556 = vmatprep.subr.mxu0 0.0
      %557 = vmatpush1.xpose.msra.mxu0 0.0
      %558 = vmatprep.subr.mxu0 0.0
      %559 = vmatpush1.xpose.msra.mxu0 0.0
      %560 = vmatprep.subr.mxu0 0.0
      %561 = vmatpush1.xpose.msra.mxu0 %v530
      %562 = vmatprep.subr.mxu0 0.0
      %563 = vmatpush1.xpose.msra.mxu0 %v528
      %564 = vmatprep.subr.mxu0 0.0
      %565 = vmatpush2.xpose.msra.mxu0 0.0
      %566 = vmatprep.subr.mxu0 0.0
      %567 = vmatpush2.xpose.msra.mxu0 0.0
      %568 = vmatprep.subr.mxu0 0.0
      %569 = vmatpush2.xpose.msra.mxu0 0.0
      %570 = vmatprep.subr.mxu0 0.0
      %571 = vmatpush2.xpose.msra.mxu0 0.0
      %572 = vmatprep.subr.mxu0 0.0
      %573 = vmatpush2.xpose.msra.mxu0 0.0
      %574 = vmatprep.subr.mxu0 0.0
      %575 = vmatpush2.xpose.msra.mxu0 0.0
      %576 = vmatprep.subr.mxu0 0.0
      %577 = vmatpush2.xpose.msra.mxu0 0.0
      %578 = vmatprep.subr.mxu0 0.0
      %579 = vmatpush2.xpose.msra.mxu0 0.0
      %580 = vmatprep.subr.mxu0 0.0
      %581 = vmatpush2.xpose.msra.mxu0 0.0
      %582 = vmatprep.subr.mxu0 0.0
      %583 = vmatpush2.xpose.msra.mxu0 0.0
      %584 = vmatprep.subr.mxu0 0.0
      %585 = vmatpush2.xpose.msra.mxu0 0.0
      %586 = vmatprep.subr.mxu0 0.0
      %587 = vmatpush2.xpose.msra.mxu0 0.0
      %588 = vmatprep.subr.mxu0 0.0
      %589 = vmatpush2.xpose.msra.mxu0 0.0
      %590 = vmatprep.subr.mxu0 0.0
      %591 = vmatpush2.xpose.msra.mxu0 0.0
      %592 = vmatprep.subr.mxu0 0.0
      %593 = vmatpush2.xpose.msra.mxu0 0.0
      %594 = vmatprep.subr.mxu0 0.0
      %595 = vmatpush2.xpose.msra.mxu0 0.0
      %596 = vmatprep.mubr.f32.mxu0 0.0
      %597 = vmatmul.mubr.f32.gmra.mxu0 %v524
      %v598 = vpop.f32.mrf.mxu0
      %v599 = vadd.f32 0.0, %v598
      %v600 = vpop.f32.mrf.mxu0
      %601 = vmatprep.mubr.f32.mxu0 0.0
      %602 = vmatmul.mubr.f32.gmra.mxu0 %v526
      %v603 = vpop.f32.mrf.mxu0
      %v604 = vadd.f32 0.0, %v603
      %v605 = vpop.f32.mrf.mxu0
      %606 = vdwg.mxu0
      %609 = vrot.lane.b32.xlu0 %v330, 112
      %v610 = vpop.permute.xlu0 %609
      %611 = vrot.lane.b32.xlu0 %v335, 112
      %v612 = vpop.permute.xlu0 %611
      %v613 = vsel %vm434, %v330, 0
      %v615 = vsel %vm434, %v335, 0
      %v617 = vsel %vm434, %v610, 0
      %v619 = vsel %vm434, %v612, 0
      %621 = vmatprep.subr.mxu0 0.0
      %622 = vmatpush1.xpose.msra.mxu0 0.0
      %623 = vmatprep.subr.mxu0 0.0
      %624 = vmatpush1.xpose.msra.mxu0 0.0
      %625 = vmatprep.subr.mxu0 0.0
      %626 = vmatpush1.xpose.msra.mxu0 0.0
      %627 = vmatprep.subr.mxu0 0.0
      %628 = vmatpush1.xpose.msra.mxu0 0.0
      %629 = vmatprep.subr.mxu0 0.0
      %630 = vmatpush1.xpose.msra.mxu0 0.0
      %631 = vmatprep.subr.mxu0 0.0
      %632 = vmatpush1.xpose.msra.mxu0 0.0
      %633 = vmatprep.subr.mxu0 0.0
      %634 = vmatpush1.xpose.msra.mxu0 0.0
      %635 = vmatprep.subr.mxu0 0.0
      %636 = vmatpush1.xpose.msra.mxu0 0.0
      %637 = vmatprep.subr.mxu0 0.0
      %638 = vmatpush1.xpose.msra.mxu0 0.0
      %639 = vmatprep.subr.mxu0 0.0
      %640 = vmatpush1.xpose.msra.mxu0 0.0
      %641 = vmatprep.subr.mxu0 0.0
      %642 = vmatpush1.xpose.msra.mxu0 0.0
      %643 = vmatprep.subr.mxu0 0.0
      %644 = vmatpush1.xpose.msra.mxu0 0.0
      %645 = vmatprep.subr.mxu0 0.0
      %646 = vmatpush1.xpose.msra.mxu0 0.0
      %647 = vmatprep.subr.mxu0 0.0
      %648 = vmatpush1.xpose.msra.mxu0 0.0
      %649 = vmatprep.subr.mxu0 0.0
      %650 = vmatpush1.xpose.msra.mxu0 %v619
      %651 = vmatprep.subr.mxu0 0.0
      %652 = vmatpush1.xpose.msra.mxu0 %v617
      %653 = vmatprep.subr.mxu0 0.0
      %654 = vmatpush2.xpose.msra.mxu0 0.0
      %655 = vmatprep.subr.mxu0 0.0
      %656 = vmatpush2.xpose.msra.mxu0 0.0
      %657 = vmatprep.subr.mxu0 0.0
      %658 = vmatpush2.xpose.msra.mxu0 0.0
      %659 = vmatprep.subr.mxu0 0.0
      %660 = vmatpush2.xpose.msra.mxu0 0.0
      %661 = vmatprep.subr.mxu0 0.0
      %662 = vmatpush2.xpose.msra.mxu0 0.0
      %663 = vmatprep.subr.mxu0 0.0
      %664 = vmatpush2.xpose.msra.mxu0 0.0
      %665 = vmatprep.subr.mxu0 0.0
      %666 = vmatpush2.xpose.msra.mxu0 0.0
      %667 = vmatprep.subr.mxu0 0.0
      %668 = vmatpush2.xpose.msra.mxu0 0.0
      %669 = vmatprep.subr.mxu0 0.0
      %670 = vmatpush2.xpose.msra.mxu0 0.0
      %671 = vmatprep.subr.mxu0 0.0
      %672 = vmatpush2.xpose.msra.mxu0 0.0
      %673 = vmatprep.subr.mxu0 0.0
      %674 = vmatpush2.xpose.msra.mxu0 0.0
      %675 = vmatprep.subr.mxu0 0.0
      %676 = vmatpush2.xpose.msra.mxu0 0.0
      %677 = vmatprep.subr.mxu0 0.0
      %678 = vmatpush2.xpose.msra.mxu0 0.0
      %679 = vmatprep.subr.mxu0 0.0
      %680 = vmatpush2.xpose.msra.mxu0 0.0
      %681 = vmatprep.subr.mxu0 0.0
      %682 = vmatpush2.xpose.msra.mxu0 0.0
      %683 = vmatprep.subr.mxu0 0.0
      %684 = vmatpush2.xpose.msra.mxu0 0.0
      %685 = vmatprep.mubr.f32.mxu0 0.0
      %686 = vmatmul.mubr.f32.gmra.mxu0 %v613
      %v687 = vpop.f32.mrf.mxu0
      %v688 = vadd.f32 0.0, %v687
      %v689 = vpop.f32.mrf.mxu0
      %690 = vmatprep.mubr.f32.mxu0 0.0
      %691 = vmatmul.mubr.f32.gmra.mxu0 %v615
      %v692 = vpop.f32.mrf.mxu0
      %v693 = vadd.f32 0.0, %v692
      %v694 = vpop.f32.mrf.mxu0
      %695 = vdwg.mxu0
      %698 = vrot.lane.b32.xlu0 %v340, 112
      %v699 = vpop.permute.xlu0 %698
      %700 = vrot.lane.b32.xlu0 %v345, 112
      %v701 = vpop.permute.xlu0 %700
      %v702 = vsel %vm434, %v340, 0
      %v704 = vsel %vm434, %v345, 0
      %v706 = vsel %vm434, %v699, 0
      %v708 = vsel %vm434, %v701, 0
      %710 = vmatprep.subr.mxu0 0.0
      %711 = vmatpush1.xpose.msra.mxu0 0.0
      %712 = vmatprep.subr.mxu0 0.0
      %713 = vmatpush1.xpose.msra.mxu0 0.0
      %714 = vmatprep.subr.mxu0 0.0
      %715 = vmatpush1.xpose.msra.mxu0 0.0
      %716 = vmatprep.subr.mxu0 0.0
      %717 = vmatpush1.xpose.msra.mxu0 0.0
      %718 = vmatprep.subr.mxu0 0.0
      %719 = vmatpush1.xpose.msra.mxu0 0.0
      %720 = vmatprep.subr.mxu0 0.0
      %721 = vmatpush1.xpose.msra.mxu0 0.0
      %722 = vmatprep.subr.mxu0 0.0
      %723 = vmatpush1.xpose.msra.mxu0 0.0
      %724 = vmatprep.subr.mxu0 0.0
      %725 = vmatpush1.xpose.msra.mxu0 0.0
      %726 = vmatprep.subr.mxu0 0.0
      %727 = vmatpush1.xpose.msra.mxu0 0.0
      %728 = vmatprep.subr.mxu0 0.0
      %729 = vmatpush1.xpose.msra.mxu0 0.0
      %730 = vmatprep.subr.mxu0 0.0
      %731 = vmatpush1.xpose.msra.mxu0 0.0
      %732 = vmatprep.subr.mxu0 0.0
      %733 = vmatpush1.xpose.msra.mxu0 0.0
      %734 = vmatprep.subr.mxu0 0.0
      %735 = vmatpush1.xpose.msra.mxu0 0.0
      %736 = vmatprep.subr.mxu0 0.0
      %737 = vmatpush1.xpose.msra.mxu0 0.0
      %738 = vmatprep.subr.mxu0 0.0
      %739 = vmatpush1.xpose.msra.mxu0 %v708
      %740 = vmatprep.subr.mxu0 0.0
      %741 = vmatpush1.xpose.msra.mxu0 %v706
      %742 = vmatprep.subr.mxu0 0.0
      %743 = vmatpush2.xpose.msra.mxu0 0.0
      %744 = vmatprep.subr.mxu0 0.0
      %745 = vmatpush2.xpose.msra.mxu0 0.0
      %746 = vmatprep.subr.mxu0 0.0
      %747 = vmatpush2.xpose.msra.mxu0 0.0
      %748 = vmatprep.subr.mxu0 0.0
      %749 = vmatpush2.xpose.msra.mxu0 0.0
      %750 = vmatprep.subr.mxu0 0.0
      %751 = vmatpush2.xpose.msra.mxu0 0.0
      %752 = vmatprep.subr.mxu0 0.0
      %753 = vmatpush2.xpose.msra.mxu0 0.0
      %754 = vmatprep.subr.mxu0 0.0
      %755 = vmatpush2.xpose.msra.mxu0 0.0
      %756 = vmatprep.subr.mxu0 0.0
      %757 = vmatpush2.xpose.msra.mxu0 0.0
      %758 = vmatprep.subr.mxu0 0.0
      %759 = vmatpush2.xpose.msra.mxu0 0.0
      %760 = vmatprep.subr.mxu0 0.0
      %761 = vmatpush2.xpose.msra.mxu0 0.0
      %762 = vmatprep.subr.mxu0 0.0
      %763 = vmatpush2.xpose.msra.mxu0 0.0
      %764 = vmatprep.subr.mxu0 0.0
      %765 = vmatpush2.xpose.msra.mxu0 0.0
      %766 = vmatprep.subr.mxu0 0.0
      %767 = vmatpush2.xpose.msra.mxu0 0.0
      %768 = vmatprep.subr.mxu0 0.0
      %769 = vmatpush2.xpose.msra.mxu0 0.0
      %770 = vmatprep.subr.mxu0 0.0
      %771 = vmatpush2.xpose.msra.mxu0 0.0
      %772 = vmatprep.subr.mxu0 0.0
      %773 = vmatpush2.xpose.msra.mxu0 0.0
      %774 = vmatprep.mubr.f32.mxu0 0.0
      %775 = vmatmul.mubr.f32.gmra.mxu0 %v702
      %v776 = vpop.f32.mrf.mxu0
      %v777 = vadd.f32 0.0, %v776
      %v778 = vpop.f32.mrf.mxu0
      %779 = vmatprep.mubr.f32.mxu0 0.0
      %780 = vmatmul.mubr.f32.gmra.mxu0 %v704
      %v781 = vpop.f32.mrf.mxu0
      %v782 = vadd.f32 0.0, %v781
      %v783 = vpop.f32.mrf.mxu0
      %784 = vdwg.mxu0
      %787 = vrot.lane.b32.xlu0 %v350, 112
      %v788 = vpop.permute.xlu0 %787
      %789 = vrot.lane.b32.xlu0 %v355, 112
      %v790 = vpop.permute.xlu0 %789
      %v791 = vsel %vm434, %v350, 0
      %v793 = vsel %vm434, %v355, 0
      %v795 = vsel %vm434, %v788, 0
      %v797 = vsel %vm434, %v790, 0
      %799 = vmatprep.subr.mxu0 0.0
      %800 = vmatpush1.xpose.msra.mxu0 0.0
      %801 = vmatprep.subr.mxu0 0.0
      %802 = vmatpush1.xpose.msra.mxu0 0.0
      %803 = vmatprep.subr.mxu0 0.0
      %804 = vmatpush1.xpose.msra.mxu0 0.0
      %805 = vmatprep.subr.mxu0 0.0
      %806 = vmatpush1.xpose.msra.mxu0 0.0
      %807 = vmatprep.subr.mxu0 0.0
      %808 = vmatpush1.xpose.msra.mxu0 0.0
      %809 = vmatprep.subr.mxu0 0.0
      %810 = vmatpush1.xpose.msra.mxu0 0.0
      %811 = vmatprep.subr.mxu0 0.0
      %812 = vmatpush1.xpose.msra.mxu0 0.0
      %813 = vmatprep.subr.mxu0 0.0
      %814 = vmatpush1.xpose.msra.mxu0 0.0
      %815 = vmatprep.subr.mxu0 0.0
      %816 = vmatpush1.xpose.msra.mxu0 0.0
      %817 = vmatprep.subr.mxu0 0.0
      %818 = vmatpush1.xpose.msra.mxu0 0.0
      %819 = vmatprep.subr.mxu0 0.0
      %820 = vmatpush1.xpose.msra.mxu0 0.0
      %821 = vmatprep.subr.mxu0 0.0
      %822 = vmatpush1.xpose.msra.mxu0 0.0
      %823 = vmatprep.subr.mxu0 0.0
      %824 = vmatpush1.xpose.msra.mxu0 0.0
      %825 = vmatprep.subr.mxu0 0.0
      %826 = vmatpush1.xpose.msra.mxu0 0.0
      %827 = vmatprep.subr.mxu0 0.0
      %828 = vmatpush1.xpose.msra.mxu0 %v797
      %829 = vmatprep.subr.mxu0 0.0
      %830 = vmatpush1.xpose.msra.mxu0 %v795
      %831 = vmatprep.subr.mxu0 0.0
      %832 = vmatpush2.xpose.msra.mxu0 0.0
      %833 = vmatprep.subr.mxu0 0.0
      %834 = vmatpush2.xpose.msra.mxu0 0.0
      %835 = vmatprep.subr.mxu0 0.0
      %836 = vmatpush2.xpose.msra.mxu0 0.0
      %837 = vmatprep.subr.mxu0 0.0
      %838 = vmatpush2.xpose.msra.mxu0 0.0
      %839 = vmatprep.subr.mxu0 0.0
      %840 = vmatpush2.xpose.msra.mxu0 0.0
      %841 = vmatprep.subr.mxu0 0.0
      %842 = vmatpush2.xpose.msra.mxu0 0.0
      %843 = vmatprep.subr.mxu0 0.0
      %844 = vmatpush2.xpose.msra.mxu0 0.0
      %845 = vmatprep.subr.mxu0 0.0
      %846 = vmatpush2.xpose.msra.mxu0 0.0
      %847 = vmatprep.subr.mxu0 0.0
      %848 = vmatpush2.xpose.msra.mxu0 0.0
      %849 = vmatprep.subr.mxu0 0.0
      %850 = vmatpush2.xpose.msra.mxu0 0.0
      %851 = vmatprep.subr.mxu0 0.0
      %852 = vmatpush2.xpose.msra.mxu0 0.0
      %853 = vmatprep.subr.mxu0 0.0
      %854 = vmatpush2.xpose.msra.mxu0 0.0
      %855 = vmatprep.subr.mxu0 0.0
      %856 = vmatpush2.xpose.msra.mxu0 0.0
      %857 = vmatprep.subr.mxu0 0.0
      %858 = vmatpush2.xpose.msra.mxu0 0.0
      %859 = vmatprep.subr.mxu0 0.0
      %860 = vmatpush2.xpose.msra.mxu0 0.0
      %861 = vmatprep.subr.mxu0 0.0
      %862 = vmatpush2.xpose.msra.mxu0 0.0
      %863 = vmatprep.mubr.f32.mxu0 0.0
      %864 = vmatmul.mubr.f32.gmra.mxu0 %v791
      %v865 = vpop.f32.mrf.mxu0
      %v866 = vadd.f32 0.0, %v865
      %v867 = vpop.f32.mrf.mxu0
      %868 = vmatprep.mubr.f32.mxu0 0.0
      %869 = vmatmul.mubr.f32.gmra.mxu0 %v793
      %v870 = vpop.f32.mrf.mxu0
      %v871 = vadd.f32 0.0, %v870
      %v872 = vpop.f32.mrf.mxu0
      %873 = vdwg.mxu0
      %876 = vrot.lane.b32.xlu0 %v360, 112
      %v877 = vpop.permute.xlu0 %876
      %878 = vrot.lane.b32.xlu0 %v365, 112
      %v879 = vpop.permute.xlu0 %878
      %v880 = vsel %vm434, %v360, 0
      %v882 = vsel %vm434, %v365, 0
      %v884 = vsel %vm434, %v877, 0
      %v886 = vsel %vm434, %v879, 0
      %888 = vmatprep.subr.mxu0 0.0
      %889 = vmatpush1.xpose.msra.mxu0 0.0
      %890 = vmatprep.subr.mxu0 0.0
      %891 = vmatpush1.xpose.msra.mxu0 0.0
      %892 = vmatprep.subr.mxu0 0.0
      %893 = vmatpush1.xpose.msra.mxu0 0.0
      %894 = vmatprep.subr.mxu0 0.0
      %895 = vmatpush1.xpose.msra.mxu0 0.0
      %896 = vmatprep.subr.mxu0 0.0
      %897 = vmatpush1.xpose.msra.mxu0 0.0
      %898 = vmatprep.subr.mxu0 0.0
      %899 = vmatpush1.xpose.msra.mxu0 0.0
      %900 = vmatprep.subr.mxu0 0.0
      %901 = vmatpush1.xpose.msra.mxu0 0.0
      %902 = vmatprep.subr.mxu0 0.0
      %903 = vmatpush1.xpose.msra.mxu0 0.0
      %904 = vmatprep.subr.mxu0 0.0
      %905 = vmatpush1.xpose.msra.mxu0 0.0
      %906 = vmatprep.subr.mxu0 0.0
      %907 = vmatpush1.xpose.msra.mxu0 0.0
      %908 = vmatprep.subr.mxu0 0.0
      %909 = vmatpush1.xpose.msra.mxu0 0.0
      %910 = vmatprep.subr.mxu0 0.0
      %911 = vmatpush1.xpose.msra.mxu0 0.0
      %912 = vmatprep.subr.mxu0 0.0
      %913 = vmatpush1.xpose.msra.mxu0 0.0
      %914 = vmatprep.subr.mxu0 0.0
      %915 = vmatpush1.xpose.msra.mxu0 0.0
      %916 = vmatprep.subr.mxu0 0.0
      %917 = vmatpush1.xpose.msra.mxu0 %v886
      %918 = vmatprep.subr.mxu0 0.0
      %919 = vmatpush1.xpose.msra.mxu0 %v884
      %920 = vmatprep.subr.mxu0 0.0
      %921 = vmatpush2.xpose.msra.mxu0 0.0
      %922 = vmatprep.subr.mxu0 0.0
      %923 = vmatpush2.xpose.msra.mxu0 0.0
      %924 = vmatprep.subr.mxu0 0.0
      %925 = vmatpush2.xpose.msra.mxu0 0.0
      %926 = vmatprep.subr.mxu0 0.0
      %927 = vmatpush2.xpose.msra.mxu0 0.0
      %928 = vmatprep.subr.mxu0 0.0
      %929 = vmatpush2.xpose.msra.mxu0 0.0
      %930 = vmatprep.subr.mxu0 0.0
      %931 = vmatpush2.xpose.msra.mxu0 0.0
      %932 = vmatprep.subr.mxu0 0.0
      %933 = vmatpush2.xpose.msra.mxu0 0.0
      %934 = vmatprep.subr.mxu0 0.0
      %935 = vmatpush2.xpose.msra.mxu0 0.0
      %936 = vmatprep.subr.mxu0 0.0
      %937 = vmatpush2.xpose.msra.mxu0 0.0
      %938 = vmatprep.subr.mxu0 0.0
      %939 = vmatpush2.xpose.msra.mxu0 0.0
      %940 = vmatprep.subr.mxu0 0.0
      %941 = vmatpush2.xpose.msra.mxu0 0.0
      %942 = vmatprep.subr.mxu0 0.0
      %943 = vmatpush2.xpose.msra.mxu0 0.0
      %944 = vmatprep.subr.mxu0 0.0
      %945 = vmatpush2.xpose.msra.mxu0 0.0
      %946 = vmatprep.subr.mxu0 0.0
      %947 = vmatpush2.xpose.msra.mxu0 0.0
      %948 = vmatprep.subr.mxu0 0.0
      %949 = vmatpush2.xpose.msra.mxu0 0.0
      %950 = vmatprep.subr.mxu0 0.0
      %951 = vmatpush2.xpose.msra.mxu0 0.0
      %952 = vmatprep.mubr.f32.mxu0 0.0
      %953 = vmatmul.mubr.f32.gmra.mxu0 %v880
      %v954 = vpop.f32.mrf.mxu0
      %v955 = vadd.f32 0.0, %v954
      %v956 = vpop.f32.mrf.mxu0
      %957 = vmatprep.mubr.f32.mxu0 0.0
      %958 = vmatmul.mubr.f32.gmra.mxu0 %v882
      %v959 = vpop.f32.mrf.mxu0
      %v960 = vadd.f32 0.0, %v959
      %v961 = vpop.f32.mrf.mxu0
      %962 = vdwg.mxu0
      %965 = vrot.lane.b32.xlu0 %v370, 112
      %v966 = vpop.permute.xlu0 %965
      %967 = vrot.lane.b32.xlu0 %v375, 112
      %v968 = vpop.permute.xlu0 %967
      %v969 = vsel %vm434, %v370, 0
      %v971 = vsel %vm434, %v375, 0
      %v973 = vsel %vm434, %v966, 0
      %v975 = vsel %vm434, %v968, 0
      %977 = vmatprep.subr.mxu0 0.0
      %978 = vmatpush1.xpose.msra.mxu0 0.0
      %979 = vmatprep.subr.mxu0 0.0
      %980 = vmatpush1.xpose.msra.mxu0 0.0
      %981 = vmatprep.subr.mxu0 0.0
      %982 = vmatpush1.xpose.msra.mxu0 0.0
      %983 = vmatprep.subr.mxu0 0.0
      %984 = vmatpush1.xpose.msra.mxu0 0.0
      %985 = vmatprep.subr.mxu0 0.0
      %986 = vmatpush1.xpose.msra.mxu0 0.0
      %987 = vmatprep.subr.mxu0 0.0
      %988 = vmatpush1.xpose.msra.mxu0 0.0
      %989 = vmatprep.subr.mxu0 0.0
      %990 = vmatpush1.xpose.msra.mxu0 0.0
      %991 = vmatprep.subr.mxu0 0.0
      %992 = vmatpush1.xpose.msra.mxu0 0.0
      %993 = vmatprep.subr.mxu0 0.0
      %994 = vmatpush1.xpose.msra.mxu0 0.0
      %995 = vmatprep.subr.mxu0 0.0
      %996 = vmatpush1.xpose.msra.mxu0 0.0
      %997 = vmatprep.subr.mxu0 0.0
      %998 = vmatpush1.xpose.msra.mxu0 0.0
      %999 = vmatprep.subr.mxu0 0.0
      %1000 = vmatpush1.xpose.msra.mxu0 0.0
      %1001 = vmatprep.subr.mxu0 0.0
      %1002 = vmatpush1.xpose.msra.mxu0 0.0
      %1003 = vmatprep.subr.mxu0 0.0
      %1004 = vmatpush1.xpose.msra.mxu0 0.0
      %1005 = vmatprep.subr.mxu0 0.0
      %1006 = vmatpush1.xpose.msra.mxu0 %v975
      %1007 = vmatprep.subr.mxu0 0.0
      %1008 = vmatpush1.xpose.msra.mxu0 %v973
      %1009 = vmatprep.subr.mxu0 0.0
      %1010 = vmatpush2.xpose.msra.mxu0 0.0
      %1011 = vmatprep.subr.mxu0 0.0
      %1012 = vmatpush2.xpose.msra.mxu0 0.0
      %1013 = vmatprep.subr.mxu0 0.0
      %1014 = vmatpush2.xpose.msra.mxu0 0.0
      %1015 = vmatprep.subr.mxu0 0.0
      %1016 = vmatpush2.xpose.msra.mxu0 0.0
      %1017 = vmatprep.subr.mxu0 0.0
      %1018 = vmatpush2.xpose.msra.mxu0 0.0
      %1019 = vmatprep.subr.mxu0 0.0
      %1020 = vmatpush2.xpose.msra.mxu0 0.0
      %1021 = vmatprep.subr.mxu0 0.0
      %1022 = vmatpush2.xpose.msra.mxu0 0.0
      %1023 = vmatprep.subr.mxu0 0.0
      %1024 = vmatpush2.xpose.msra.mxu0 0.0
      %1025 = vmatprep.subr.mxu0 0.0
      %1026 = vmatpush2.xpose.msra.mxu0 0.0
      %1027 = vmatprep.subr.mxu0 0.0
      %1028 = vmatpush2.xpose.msra.mxu0 0.0
      %1029 = vmatprep.subr.mxu0 0.0
      %1030 = vmatpush2.xpose.msra.mxu0 0.0
      %1031 = vmatprep.subr.mxu0 0.0
      %1032 = vmatpush2.xpose.msra.mxu0 0.0
      %1033 = vmatprep.subr.mxu0 0.0
      %1034 = vmatpush2.xpose.msra.mxu0 0.0
      %1035 = vmatprep.subr.mxu0 0.0
      %1036 = vmatpush2.xpose.msra.mxu0 0.0
      %1037 = vmatprep.subr.mxu0 0.0
      %1038 = vmatpush2.xpose.msra.mxu0 0.0
      %1039 = vmatprep.subr.mxu0 0.0
      %1040 = vmatpush2.xpose.msra.mxu0 0.0
      %1041 = vmatprep.mubr.f32.mxu0 0.0
      %1042 = vmatmul.mubr.f32.gmra.mxu0 %v969
      %v1043 = vpop.f32.mrf.mxu0
      %v1044 = vadd.f32 0.0, %v1043
      %v1045 = vpop.f32.mrf.mxu0
      %1046 = vmatprep.mubr.f32.mxu0 0.0
      %1047 = vmatmul.mubr.f32.gmra.mxu0 %v971
      %v1048 = vpop.f32.mrf.mxu0
      %v1049 = vadd.f32 0.0, %v1048
      %v1050 = vpop.f32.mrf.mxu0
      %1051 = vdwg.mxu0
      %1054 = vrot.lane.b32.xlu0 %v380, 112
      %v1055 = vpop.permute.xlu0 %1054
      %1056 = vrot.lane.b32.xlu0 %v385, 112
      %v1057 = vpop.permute.xlu0 %1056
      %v1058 = vsel %vm434, %v380, 0
      %v1060 = vsel %vm434, %v385, 0
      %v1062 = vsel %vm434, %v1055, 0
      %v1064 = vsel %vm434, %v1057, 0
      %1066 = vmatprep.subr.mxu0 0.0
      %1067 = vmatpush1.xpose.msra.mxu0 0.0
      %1068 = vmatprep.subr.mxu0 0.0
      %1069 = vmatpush1.xpose.msra.mxu0 0.0
      %1070 = vmatprep.subr.mxu0 0.0
      %1071 = vmatpush1.xpose.msra.mxu0 0.0
      %1072 = vmatprep.subr.mxu0 0.0
      %1073 = vmatpush1.xpose.msra.mxu0 0.0
      %1074 = vmatprep.subr.mxu0 0.0
      %1075 = vmatpush1.xpose.msra.mxu0 0.0
      %1076 = vmatprep.subr.mxu0 0.0
      %1077 = vmatpush1.xpose.msra.mxu0 0.0
      %1078 = vmatprep.subr.mxu0 0.0
      %1079 = vmatpush1.xpose.msra.mxu0 0.0
      %1080 = vmatprep.subr.mxu0 0.0
      %1081 = vmatpush1.xpose.msra.mxu0 0.0
      %1082 = vmatprep.subr.mxu0 0.0
      %1083 = vmatpush1.xpose.msra.mxu0 0.0
      %1084 = vmatprep.subr.mxu0 0.0
      %1085 = vmatpush1.xpose.msra.mxu0 0.0
      %1086 = vmatprep.subr.mxu0 0.0
      %1087 = vmatpush1.xpose.msra.mxu0 0.0
      %1088 = vmatprep.subr.mxu0 0.0
      %1089 = vmatpush1.xpose.msra.mxu0 0.0
      %1090 = vmatprep.subr.mxu0 0.0
      %1091 = vmatpush1.xpose.msra.mxu0 0.0
      %1092 = vmatprep.subr.mxu0 0.0
      %1093 = vmatpush1.xpose.msra.mxu0 0.0
      %1094 = vmatprep.subr.mxu0 0.0
      %1095 = vmatpush1.xpose.msra.mxu0 %v1064
      %1096 = vmatprep.subr.mxu0 0.0
      %1097 = vmatpush1.xpose.msra.mxu0 %v1062
      %1098 = vmatprep.subr.mxu0 0.0
      %1099 = vmatpush2.xpose.msra.mxu0 0.0
      %1100 = vmatprep.subr.mxu0 0.0
      %1101 = vmatpush2.xpose.msra.mxu0 0.0
      %1102 = vmatprep.subr.mxu0 0.0
      %1103 = vmatpush2.xpose.msra.mxu0 0.0
      %1104 = vmatprep.subr.mxu0 0.0
      %1105 = vmatpush2.xpose.msra.mxu0 0.0
      %1106 = vmatprep.subr.mxu0 0.0
      %1107 = vmatpush2.xpose.msra.mxu0 0.0
      %1108 = vmatprep.subr.mxu0 0.0
      %1109 = vmatpush2.xpose.msra.mxu0 0.0
      %1110 = vmatprep.subr.mxu0 0.0
      %1111 = vmatpush2.xpose.msra.mxu0 0.0
      %1112 = vmatprep.subr.mxu0 0.0
      %1113 = vmatpush2.xpose.msra.mxu0 0.0
      %1114 = vmatprep.subr.mxu0 0.0
      %1115 = vmatpush2.xpose.msra.mxu0 0.0
      %1116 = vmatprep.subr.mxu0 0.0
      %1117 = vmatpush2.xpose.msra.mxu0 0.0
      %1118 = vmatprep.subr.mxu0 0.0
      %1119 = vmatpush2.xpose.msra.mxu0 0.0
      %1120 = vmatprep.subr.mxu0 0.0
      %1121 = vmatpush2.xpose.msra.mxu0 0.0
      %1122 = vmatprep.subr.mxu0 0.0
      %1123 = vmatpush2.xpose.msra.mxu0 0.0
      %1124 = vmatprep.subr.mxu0 0.0
      %1125 = vmatpush2.xpose.msra.mxu0 0.0
      %1126 = vmatprep.subr.mxu0 0.0
      %1127 = vmatpush2.xpose.msra.mxu0 0.0
      %1128 = vmatprep.subr.mxu0 0.0
      %1129 = vmatpush2.xpose.msra.mxu0 0.0
      %1130 = vmatprep.mubr.f32.mxu0 0.0
      %1131 = vmatmul.mubr.f32.gmra.mxu0 %v1058
      %v1132 = vpop.f32.mrf.mxu0
      %v1133 = vadd.f32 0.0, %v1132
      %v1134 = vpop.f32.mrf.mxu0
      %1135 = vmatprep.mubr.f32.mxu0 0.0
      %1136 = vmatmul.mubr.f32.gmra.mxu0 %v1060
      %v1137 = vpop.f32.mrf.mxu0
      %v1138 = vadd.f32 0.0, %v1137
      %v1139 = vpop.f32.mrf.mxu0
      %1140 = vdwg.mxu0
      %1143 = vrot.lane.b32.xlu0 %v390, 112
      %v1144 = vpop.permute.xlu0 %1143
      %1145 = vrot.lane.b32.xlu0 %v395, 112
      %v1146 = vpop.permute.xlu0 %1145
      %v1147 = vsel %vm434, %v390, 0
      %v1149 = vsel %vm434, %v395, 0
      %v1151 = vsel %vm434, %v1144, 0
      %v1153 = vsel %vm434, %v1146, 0
      %1155 = vmatprep.subr.mxu0 0.0
      %1156 = vmatpush1.xpose.msra.mxu0 0.0
      %1157 = vmatprep.subr.mxu0 0.0
      %1158 = vmatpush1.xpose.msra.mxu0 0.0
      %1159 = vmatprep.subr.mxu0 0.0
      %1160 = vmatpush1.xpose.msra.mxu0 0.0
      %1161 = vmatprep.subr.mxu0 0.0
      %1162 = vmatpush1.xpose.msra.mxu0 0.0
      %1163 = vmatprep.subr.mxu0 0.0
      %1164 = vmatpush1.xpose.msra.mxu0 0.0
      %1165 = vmatprep.subr.mxu0 0.0
      %1166 = vmatpush1.xpose.msra.mxu0 0.0
      %1167 = vmatprep.subr.mxu0 0.0
      %1168 = vmatpush1.xpose.msra.mxu0 0.0
      %1169 = vmatprep.subr.mxu0 0.0
      %1170 = vmatpush1.xpose.msra.mxu0 0.0
      %1171 = vmatprep.subr.mxu0 0.0
      %1172 = vmatpush1.xpose.msra.mxu0 0.0
      %1173 = vmatprep.subr.mxu0 0.0
      %1174 = vmatpush1.xpose.msra.mxu0 0.0
      %1175 = vmatprep.subr.mxu0 0.0
      %1176 = vmatpush1.xpose.msra.mxu0 0.0
      %1177 = vmatprep.subr.mxu0 0.0
      %1178 = vmatpush1.xpose.msra.mxu0 0.0
      %1179 = vmatprep.subr.mxu0 0.0
      %1180 = vmatpush1.xpose.msra.mxu0 0.0
      %1181 = vmatprep.subr.mxu0 0.0
      %1182 = vmatpush1.xpose.msra.mxu0 0.0
      %1183 = vmatprep.subr.mxu0 0.0
      %1184 = vmatpush1.xpose.msra.mxu0 %v1153
      %1185 = vmatprep.subr.mxu0 0.0
      %1186 = vmatpush1.xpose.msra.mxu0 %v1151
      %1187 = vmatprep.subr.mxu0 0.0
      %1188 = vmatpush2.xpose.msra.mxu0 0.0
      %1189 = vmatprep.subr.mxu0 0.0
      %1190 = vmatpush2.xpose.msra.mxu0 0.0
      %1191 = vmatprep.subr.mxu0 0.0
      %1192 = vmatpush2.xpose.msra.mxu0 0.0
      %1193 = vmatprep.subr.mxu0 0.0
      %1194 = vmatpush2.xpose.msra.mxu0 0.0
      %1195 = vmatprep.subr.mxu0 0.0
      %1196 = vmatpush2.xpose.msra.mxu0 0.0
      %1197 = vmatprep.subr.mxu0 0.0
      %1198 = vmatpush2.xpose.msra.mxu0 0.0
      %1199 = vmatprep.subr.mxu0 0.0
      %1200 = vmatpush2.xpose.msra.mxu0 0.0
      %1201 = vmatprep.subr.mxu0 0.0
      %1202 = vmatpush2.xpose.msra.mxu0 0.0
      %1203 = vmatprep.subr.mxu0 0.0
      %1204 = vmatpush2.xpose.msra.mxu0 0.0
      %1205 = vmatprep.subr.mxu0 0.0
      %1206 = vmatpush2.xpose.msra.mxu0 0.0
      %1207 = vmatprep.subr.mxu0 0.0
      %1208 = vmatpush2.xpose.msra.mxu0 0.0
      %1209 = vmatprep.subr.mxu0 0.0
      %1210 = vmatpush2.xpose.msra.mxu0 0.0
      %1211 = vmatprep.subr.mxu0 0.0
      %1212 = vmatpush2.xpose.msra.mxu0 0.0
      %1213 = vmatprep.subr.mxu0 0.0
      %1214 = vmatpush2.xpose.msra.mxu0 0.0
      %1215 = vmatprep.subr.mxu0 0.0
      %1216 = vmatpush2.xpose.msra.mxu0 0.0
      %1217 = vmatprep.subr.mxu0 0.0
      %1218 = vmatpush2.xpose.msra.mxu0 0.0
      %1219 = vmatprep.mubr.f32.mxu0 0.0
      %1220 = vmatmul.mubr.f32.gmra.mxu0 %v1147
      %v1221 = vpop.f32.mrf.mxu0
      %v1222 = vadd.f32 0.0, %v1221
      %v1223 = vpop.f32.mrf.mxu0
      %1224 = vmatprep.mubr.f32.mxu0 0.0
      %1225 = vmatmul.mubr.f32.gmra.mxu0 %v1149
      %v1226 = vpop.f32.mrf.mxu0
      %v1227 = vadd.f32 0.0, %v1226
      %v1228 = vpop.f32.mrf.mxu0
      %1229 = vdwg.mxu0
      %1232 = vrot.lane.b32.xlu0 %v400, 112
      %v1233 = vpop.permute.xlu0 %1232
      %1234 = vrot.lane.b32.xlu0 %v405, 112
      %v1235 = vpop.permute.xlu0 %1234
      %v1236 = vsel %vm434, %v400, 0
      %v1238 = vsel %vm434, %v405, 0
      %v1240 = vsel %vm434, %v1233, 0
      %v1242 = vsel %vm434, %v1235, 0
      %1244 = vmatprep.subr.mxu0 0.0
      %1245 = vmatpush1.xpose.msra.mxu0 0.0
      %1246 = vmatprep.subr.mxu0 0.0
      %1247 = vmatpush1.xpose.msra.mxu0 0.0
      %1248 = vmatprep.subr.mxu0 0.0
      %1249 = vmatpush1.xpose.msra.mxu0 0.0
      %1250 = vmatprep.subr.mxu0 0.0
      %1251 = vmatpush1.xpose.msra.mxu0 0.0
      %1252 = vmatprep.subr.mxu0 0.0
      %1253 = vmatpush1.xpose.msra.mxu0 0.0
      %1254 = vmatprep.subr.mxu0 0.0
      %1255 = vmatpush1.xpose.msra.mxu0 0.0
      %1256 = vmatprep.subr.mxu0 0.0
      %1257 = vmatpush1.xpose.msra.mxu0 0.0
      %1258 = vmatprep.subr.mxu0 0.0
      %1259 = vmatpush1.xpose.msra.mxu0 0.0
      %1260 = vmatprep.subr.mxu0 0.0
      %1261 = vmatpush1.xpose.msra.mxu0 0.0
      %1262 = vmatprep.subr.mxu0 0.0
      %1263 = vmatpush1.xpose.msra.mxu0 0.0
      %1264 = vmatprep.subr.mxu0 0.0
      %1265 = vmatpush1.xpose.msra.mxu0 0.0
      %1266 = vmatprep.subr.mxu0 0.0
      %1267 = vmatpush1.xpose.msra.mxu0 0.0
      %1268 = vmatprep.subr.mxu0 0.0
      %1269 = vmatpush1.xpose.msra.mxu0 0.0
      %1270 = vmatprep.subr.mxu0 0.0
      %1271 = vmatpush1.xpose.msra.mxu0 0.0
      %1272 = vmatprep.subr.mxu0 0.0
      %1273 = vmatpush1.xpose.msra.mxu0 %v1242
      %1274 = vmatprep.subr.mxu0 0.0
      %1275 = vmatpush1.xpose.msra.mxu0 %v1240
      %1276 = vmatprep.subr.mxu0 0.0
      %1277 = vmatpush2.xpose.msra.mxu0 0.0
      %1278 = vmatprep.subr.mxu0 0.0
      %1279 = vmatpush2.xpose.msra.mxu0 0.0
      %1280 = vmatprep.subr.mxu0 0.0
      %1281 = vmatpush2.xpose.msra.mxu0 0.0
      %1282 = vmatprep.subr.mxu0 0.0
      %1283 = vmatpush2.xpose.msra.mxu0 0.0
      %1284 = vmatprep.subr.mxu0 0.0
      %1285 = vmatpush2.xpose.msra.mxu0 0.0
      %1286 = vmatprep.subr.mxu0 0.0
      %1287 = vmatpush2.xpose.msra.mxu0 0.0
      %1288 = vmatprep.subr.mxu0 0.0
      %1289 = vmatpush2.xpose.msra.mxu0 0.0
      %1290 = vmatprep.subr.mxu0 0.0
      %1291 = vmatpush2.xpose.msra.mxu0 0.0
      %1292 = vmatprep.subr.mxu0 0.0
      %1293 = vmatpush2.xpose.msra.mxu0 0.0
      %1294 = vmatprep.subr.mxu0 0.0
      %1295 = vmatpush2.xpose.msra.mxu0 0.0
      %1296 = vmatprep.subr.mxu0 0.0
      %1297 = vmatpush2.xpose.msra.mxu0 0.0
      %1298 = vmatprep.subr.mxu0 0.0
      %1299 = vmatpush2.xpose.msra.mxu0 0.0
      %1300 = vmatprep.subr.mxu0 0.0
      %1301 = vmatpush2.xpose.msra.mxu0 0.0
      %1302 = vmatprep.subr.mxu0 0.0
      %1303 = vmatpush2.xpose.msra.mxu0 0.0
      %1304 = vmatprep.subr.mxu0 0.0
      %1305 = vmatpush2.xpose.msra.mxu0 0.0
      %1306 = vmatprep.subr.mxu0 0.0
      %1307 = vmatpush2.xpose.msra.mxu0 0.0
      %1308 = vmatprep.mubr.f32.mxu0 0.0
      %1309 = vmatmul.mubr.f32.gmra.mxu0 %v1236
      %v1310 = vpop.f32.mrf.mxu0
      %v1311 = vadd.f32 0.0, %v1310
      %v1312 = vpop.f32.mrf.mxu0
      %1313 = vmatprep.mubr.f32.mxu0 0.0
      %1314 = vmatmul.mubr.f32.gmra.mxu0 %v1238
      %v1315 = vpop.f32.mrf.mxu0
      %v1316 = vadd.f32 0.0, %v1315
      %v1317 = vpop.f32.mrf.mxu0
      %1318 = vdwg.mxu0
      %1321 = vrot.lane.b32.xlu0 %v410, 112
      %v1322 = vpop.permute.xlu0 %1321
      %1323 = vrot.lane.b32.xlu0 %v415, 112
      %v1324 = vpop.permute.xlu0 %1323
      %v1325 = vsel %vm434, %v410, 0
      %v1327 = vsel %vm434, %v415, 0
      %v1329 = vsel %vm434, %v1322, 0
      %v1331 = vsel %vm434, %v1324, 0
      %1333 = vmatprep.subr.mxu0 0.0
      %1334 = vmatpush1.xpose.msra.mxu0 0.0
      %1335 = vmatprep.subr.mxu0 0.0
      %1336 = vmatpush1.xpose.msra.mxu0 0.0
      %1337 = vmatprep.subr.mxu0 0.0
      %1338 = vmatpush1.xpose.msra.mxu0 0.0
      %1339 = vmatprep.subr.mxu0 0.0
      %1340 = vmatpush1.xpose.msra.mxu0 0.0
      %1341 = vmatprep.subr.mxu0 0.0
      %1342 = vmatpush1.xpose.msra.mxu0 0.0
      %1343 = vmatprep.subr.mxu0 0.0
      %1344 = vmatpush1.xpose.msra.mxu0 0.0
      %1345 = vmatprep.subr.mxu0 0.0
      %1346 = vmatpush1.xpose.msra.mxu0 0.0
      %1347 = vmatprep.subr.mxu0 0.0
      %1348 = vmatpush1.xpose.msra.mxu0 0.0
      %1349 = vmatprep.subr.mxu0 0.0
      %1350 = vmatpush1.xpose.msra.mxu0 0.0
      %1351 = vmatprep.subr.mxu0 0.0
      %1352 = vmatpush1.xpose.msra.mxu0 0.0
      %1353 = vmatprep.subr.mxu0 0.0
      %1354 = vmatpush1.xpose.msra.mxu0 0.0
      %1355 = vmatprep.subr.mxu0 0.0
      %1356 = vmatpush1.xpose.msra.mxu0 0.0
      %1357 = vmatprep.subr.mxu0 0.0
      %1358 = vmatpush1.xpose.msra.mxu0 0.0
      %1359 = vmatprep.subr.mxu0 0.0
      %1360 = vmatpush1.xpose.msra.mxu0 0.0
      %1361 = vmatprep.subr.mxu0 0.0
      %1362 = vmatpush1.xpose.msra.mxu0 %v1331
      %1363 = vmatprep.subr.mxu0 0.0
      %1364 = vmatpush1.xpose.msra.mxu0 %v1329
      %1365 = vmatprep.subr.mxu0 0.0
      %1366 = vmatpush2.xpose.msra.mxu0 0.0
      %1367 = vmatprep.subr.mxu0 0.0
      %1368 = vmatpush2.xpose.msra.mxu0 0.0
      %1369 = vmatprep.subr.mxu0 0.0
      %1370 = vmatpush2.xpose.msra.mxu0 0.0
      %1371 = vmatprep.subr.mxu0 0.0
      %1372 = vmatpush2.xpose.msra.mxu0 0.0
      %1373 = vmatprep.subr.mxu0 0.0
      %1374 = vmatpush2.xpose.msra.mxu0 0.0
      %1375 = vmatprep.subr.mxu0 0.0
      %1376 = vmatpush2.xpose.msra.mxu0 0.0
      %1377 = vmatprep.subr.mxu0 0.0
      %1378 = vmatpush2.xpose.msra.mxu0 0.0
      %1379 = vmatprep.subr.mxu0 0.0
      %1380 = vmatpush2.xpose.msra.mxu0 0.0
      %1381 = vmatprep.subr.mxu0 0.0
      %1382 = vmatpush2.xpose.msra.mxu0 0.0
      %1383 = vmatprep.subr.mxu0 0.0
      %1384 = vmatpush2.xpose.msra.mxu0 0.0
      %1385 = vmatprep.subr.mxu0 0.0
      %1386 = vmatpush2.xpose.msra.mxu0 0.0
      %1387 = vmatprep.subr.mxu0 0.0
      %1388 = vmatpush2.xpose.msra.mxu0 0.0
      %1389 = vmatprep.subr.mxu0 0.0
      %1390 = vmatpush2.xpose.msra.mxu0 0.0
      %1391 = vmatprep.subr.mxu0 0.0
      %1392 = vmatpush2.xpose.msra.mxu0 0.0
      %1393 = vmatprep.subr.mxu0 0.0
      %1394 = vmatpush2.xpose.msra.mxu0 0.0
      %1395 = vmatprep.subr.mxu0 0.0
      %1396 = vmatpush2.xpose.msra.mxu0 0.0
      %1397 = vmatprep.mubr.f32.mxu0 0.0
      %1398 = vmatmul.mubr.f32.gmra.mxu0 %v1325
      %v1399 = vpop.f32.mrf.mxu0
      %v1400 = vadd.f32 0.0, %v1399
      %v1401 = vpop.f32.mrf.mxu0
      %1402 = vmatprep.mubr.f32.mxu0 0.0
      %1403 = vmatmul.mubr.f32.gmra.mxu0 %v1327
      %v1404 = vpop.f32.mrf.mxu0
      %v1405 = vadd.f32 0.0, %v1404
      %v1406 = vpop.f32.mrf.mxu0
      %1407 = vdwg.mxu0
      %1410 = vrot.lane.b32.xlu0 %v420, 112
      %v1411 = vpop.permute.xlu0 %1410
      %1412 = vrot.lane.b32.xlu0 %v425, 112
      %v1413 = vpop.permute.xlu0 %1412
      %v1414 = vsel %vm434, %v420, 0
      %v1416 = vsel %vm434, %v425, 0
      %v1418 = vsel %vm434, %v1411, 0
      %v1420 = vsel %vm434, %v1413, 0
      %1422 = vmatprep.subr.mxu0 0.0
      %1423 = vmatpush1.xpose.msra.mxu0 0.0
      %1424 = vmatprep.subr.mxu0 0.0
      %1425 = vmatpush1.xpose.msra.mxu0 0.0
      %1426 = vmatprep.subr.mxu0 0.0
      %1427 = vmatpush1.xpose.msra.mxu0 0.0
      %1428 = vmatprep.subr.mxu0 0.0
      %1429 = vmatpush1.xpose.msra.mxu0 0.0
      %1430 = vmatprep.subr.mxu0 0.0
      %1431 = vmatpush1.xpose.msra.mxu0 0.0
      %1432 = vmatprep.subr.mxu0 0.0
      %1433 = vmatpush1.xpose.msra.mxu0 0.0
      %1434 = vmatprep.subr.mxu0 0.0
      %1435 = vmatpush1.xpose.msra.mxu0 0.0
      %1436 = vmatprep.subr.mxu0 0.0
      %1437 = vmatpush1.xpose.msra.mxu0 0.0
      %1438 = vmatprep.subr.mxu0 0.0
      %1439 = vmatpush1.xpose.msra.mxu0 0.0
      %1440 = vmatprep.subr.mxu0 0.0
      %1441 = vmatpush1.xpose.msra.mxu0 0.0
      %1442 = vmatprep.subr.mxu0 0.0
      %1443 = vmatpush1.xpose.msra.mxu0 0.0
      %1444 = vmatprep.subr.mxu0 0.0
      %1445 = vmatpush1.xpose.msra.mxu0 0.0
      %1446 = vmatprep.subr.mxu0 0.0
      %1447 = vmatpush1.xpose.msra.mxu0 0.0
      %1448 = vmatprep.subr.mxu0 0.0
      %1449 = vmatpush1.xpose.msra.mxu0 0.0
      %1450 = vmatprep.subr.mxu0 0.0
      %1451 = vmatpush1.xpose.msra.mxu0 %v1420
      %1452 = vmatprep.subr.mxu0 0.0
      %1453 = vmatpush1.xpose.msra.mxu0 %v1418
      %1454 = vmatprep.subr.mxu0 0.0
      %1455 = vmatpush2.xpose.msra.mxu0 0.0
      %1456 = vmatprep.subr.mxu0 0.0
      %1457 = vmatpush2.xpose.msra.mxu0 0.0
      %1458 = vmatprep.subr.mxu0 0.0
      %1459 = vmatpush2.xpose.msra.mxu0 0.0
      %1460 = vmatprep.subr.mxu0 0.0
      %1461 = vmatpush2.xpose.msra.mxu0 0.0
      %1462 = vmatprep.subr.mxu0 0.0
      %1463 = vmatpush2.xpose.msra.mxu0 0.0
      %1464 = vmatprep.subr.mxu0 0.0
      %1465 = vmatpush2.xpose.msra.mxu0 0.0
      %1466 = vmatprep.subr.mxu0 0.0
      %1467 = vmatpush2.xpose.msra.mxu0 0.0
      %1468 = vmatprep.subr.mxu0 0.0
      %1469 = vmatpush2.xpose.msra.mxu0 0.0
      %1470 = vmatprep.subr.mxu0 0.0
      %1471 = vmatpush2.xpose.msra.mxu0 0.0
      %1472 = vmatprep.subr.mxu0 0.0
      %1473 = vmatpush2.xpose.msra.mxu0 0.0
      %1474 = vmatprep.subr.mxu0 0.0
      %1475 = vmatpush2.xpose.msra.mxu0 0.0
      %1476 = vmatprep.subr.mxu0 0.0
      %1477 = vmatpush2.xpose.msra.mxu0 0.0
      %1478 = vmatprep.subr.mxu0 0.0
      %1479 = vmatpush2.xpose.msra.mxu0 0.0
      %1480 = vmatprep.subr.mxu0 0.0
      %1481 = vmatpush2.xpose.msra.mxu0 0.0
      %1482 = vmatprep.subr.mxu0 0.0
      %1483 = vmatpush2.xpose.msra.mxu0 0.0
      %1484 = vmatprep.subr.mxu0 0.0
      %1485 = vmatpush2.xpose.msra.mxu0 0.0
      %1486 = vmatprep.mubr.f32.mxu0 0.0
      %1487 = vmatmul.mubr.f32.gmra.mxu0 %v1414
      %v1488 = vpop.f32.mrf.mxu0
      %v1489 = vadd.f32 0.0, %v1488
      %v1490 = vpop.f32.mrf.mxu0
      %1491 = vmatprep.mubr.f32.mxu0 0.0
      %1492 = vmatmul.mubr.f32.gmra.mxu0 %v1416
      %v1493 = vpop.f32.mrf.mxu0
      %v1494 = vadd.f32 0.0, %v1493
      %v1495 = vpop.f32.mrf.mxu0
      %1496 = vdwg.mxu0
      %v1497 = vxor.u32 %v510, 2147483648
      %v1498 = vxor.u32 %v515, 2147483648
      %v1499 = vxor.u32 %v599, 2147483648
      %v1500 = vxor.u32 %v604, 2147483648
      %v1501 = vxor.u32 %v688, 2147483648
      %v1502 = vxor.u32 %v693, 2147483648
      %v1503 = vxor.u32 %v777, 2147483648
      %v1504 = vxor.u32 %v782, 2147483648
      %v1505 = vxor.u32 %v866, 2147483648
      %v1506 = vxor.u32 %v871, 2147483648
      %v1507 = vxor.u32 %v955, 2147483648
      %v1508 = vxor.u32 %v960, 2147483648
      %v1509 = vxor.u32 %v1044, 2147483648
      %v1510 = vxor.u32 %v1049, 2147483648
      %v1511 = vxor.u32 %v1133, 2147483648
      %v1512 = vxor.u32 %v1138, 2147483648
      %v1513 = vxor.u32 %v1222, 2147483648
      %v1514 = vxor.u32 %v1227, 2147483648
      %v1515 = vxor.u32 %v1311, 2147483648
      %v1516 = vxor.u32 %v1316, 2147483648
      %v1517 = vxor.u32 %v1400, 2147483648
      %v1518 = vxor.u32 %v1405, 2147483648
      %v1519 = vxor.u32 %v1489, 2147483648
      %v1520 = vxor.u32 %v1494, 2147483648
      %v1521 = vmul.f32 %v1497, 1.442695
      %v1522 = vpow.pop %v1521
      %v1523 = vmul.f32 %v1498, 1.442695
      %v1524 = vpow.pop %v1523
      %v1525 = vmul.f32 %v1499, 1.442695
      %v1526 = vpow.pop %v1525
      %v1527 = vmul.f32 %v1500, 1.442695
      %v1528 = vpow.pop %v1527
      %v1529 = vmul.f32 %v1501, 1.442695
      %v1530 = vpow.pop %v1529
      %v1531 = vmul.f32 %v1502, 1.442695
      %v1532 = vpow.pop %v1531
      %v1533 = vmul.f32 %v1503, 1.442695
      %v1534 = vpow.pop %v1533
      %v1535 = vmul.f32 %v1504, 1.442695
      %v1536 = vpow.pop %v1535
      %v1537 = vmul.f32 %v1505, 1.442695
      %v1538 = vpow.pop %v1537
      %v1539 = vmul.f32 %v1506, 1.442695
      %v1540 = vpow.pop %v1539
      %v1541 = vmul.f32 %v1507, 1.442695
      %v1542 = vpow.pop %v1541
      %v1543 = vmul.f32 %v1508, 1.442695
      %v1544 = vpow.pop %v1543
      %v1545 = vmul.f32 %v1509, 1.442695
      %v1546 = vpow.pop %v1545
      %v1547 = vmul.f32 %v1510, 1.442695
      %v1548 = vpow.pop %v1547
      %v1549 = vmul.f32 %v1511, 1.442695
      %v1550 = vpow.pop %v1549
      %v1551 = vmul.f32 %v1512, 1.442695
      %v1552 = vpow.pop %v1551
      %v1553 = vmul.f32 %v1513, 1.442695
      %v1554 = vpow.pop %v1553
      %v1555 = vmul.f32 %v1514, 1.442695
      %v1556 = vpow.pop %v1555
      %v1557 = vmul.f32 %v1515, 1.442695
      %v1558 = vpow.pop %v1557
      %v1559 = vmul.f32 %v1516, 1.442695
      %v1560 = vpow.pop %v1559
      %v1561 = vmul.f32 %v1517, 1.442695
      %v1562 = vpow.pop %v1561
      %v1563 = vmul.f32 %v1518, 1.442695
      %v1564 = vpow.pop %v1563
      %v1565 = vmul.f32 %v1519, 1.442695
      %v1566 = vpow.pop %v1565
      %v1567 = vmul.f32 %v1520, 1.442695
      %v1568 = vpow.pop %v1567
      %v1569 = vadd.f32 %v1522, 1.0
      %v1570 = vadd.f32 %v1524, 1.0
      %v1571 = vadd.f32 %v1526, 1.0
      %v1572 = vadd.f32 %v1528, 1.0
      %v1573 = vadd.f32 %v1530, 1.0
      %v1574 = vadd.f32 %v1532, 1.0
      %v1575 = vadd.f32 %v1534, 1.0
      %v1576 = vadd.f32 %v1536, 1.0
      %v1577 = vadd.f32 %v1538, 1.0
      %v1578 = vadd.f32 %v1540, 1.0
      %v1579 = vadd.f32 %v1542, 1.0
      %v1580 = vadd.f32 %v1544, 1.0
      %v1581 = vadd.f32 %v1546, 1.0
      %v1582 = vadd.f32 %v1548, 1.0
      %v1583 = vadd.f32 %v1550, 1.0
      %v1584 = vadd.f32 %v1552, 1.0
      %v1585 = vadd.f32 %v1554, 1.0
      %v1586 = vadd.f32 %v1556, 1.0
      %v1587 = vadd.f32 %v1558, 1.0
      %v1588 = vadd.f32 %v1560, 1.0
      %v1589 = vadd.f32 %v1562, 1.0
      %v1590 = vadd.f32 %v1564, 1.0
      %v1591 = vadd.f32 %v1566, 1.0
      %v1592 = vadd.f32 %v1568, 1.0
      %v1593 = vrcp.pop %v1569
      %v1594 = vmul.f32 1.0, %v1593
      %v1595 = vrcp.pop %v1570
      %v1596 = vmul.f32 1.0, %v1595
      %v1597 = vrcp.pop %v1571
      %v1598 = vmul.f32 1.0, %v1597
      %v1599 = vrcp.pop %v1572
      %v1600 = vmul.f32 1.0, %v1599
      %v1601 = vrcp.pop %v1573
      %v1602 = vmul.f32 1.0, %v1601
      %v1603 = vrcp.pop %v1574
      %v1604 = vmul.f32 1.0, %v1603
      %v1605 = vrcp.pop %v1575
      %v1606 = vmul.f32 1.0, %v1605
      %v1607 = vrcp.pop %v1576
      %v1608 = vmul.f32 1.0, %v1607
      %v1609 = vrcp.pop %v1577
      %v1610 = vmul.f32 1.0, %v1609
      %v1611 = vrcp.pop %v1578
      %v1612 = vmul.f32 1.0, %v1611
      %v1613 = vrcp.pop %v1579
      %v1614 = vmul.f32 1.0, %v1613
      %v1615 = vrcp.pop %v1580
      %v1616 = vmul.f32 1.0, %v1615
      %v1617 = vrcp.pop %v1581
      %v1618 = vmul.f32 1.0, %v1617
      %v1619 = vrcp.pop %v1582
      %v1620 = vmul.f32 1.0, %v1619
      %v1621 = vrcp.pop %v1583
      %v1622 = vmul.f32 1.0, %v1621
      %v1623 = vrcp.pop %v1584
      %v1624 = vmul.f32 1.0, %v1623
      %v1625 = vrcp.pop %v1585
      %v1626 = vmul.f32 1.0, %v1625
      %v1627 = vrcp.pop %v1586
      %v1628 = vmul.f32 1.0, %v1627
      %v1629 = vrcp.pop %v1587
      %v1630 = vmul.f32 1.0, %v1629
      %v1631 = vrcp.pop %v1588
      %v1632 = vmul.f32 1.0, %v1631
      %v1633 = vrcp.pop %v1589
      %v1634 = vmul.f32 1.0, %v1633
      %v1635 = vrcp.pop %v1590
      %v1636 = vmul.f32 1.0, %v1635
      %v1637 = vrcp.pop %v1591
      %v1638 = vmul.f32 1.0, %v1637
      %v1639 = vrcp.pop %v1592
      %v1640 = vmul.f32 1.0, %v1639
      %v1641 = vadd.f32 %v1594, 0.0
      %v1642 = vadd.f32 %v1596, 0.0
      %v1643 = vadd.f32 %v1598, 0.0
      %v1644 = vadd.f32 %v1600, 0.0
      %v1645 = vadd.f32 %v1602, 0.0
      %v1646 = vadd.f32 %v1604, 0.0
      %v1647 = vadd.f32 %v1606, 0.0
      %v1648 = vadd.f32 %v1608, 0.0
      %v1649 = vadd.f32 %v1610, 0.0
      %v1650 = vadd.f32 %v1612, 0.0
      %v1651 = vadd.f32 %v1614, 0.0
      %v1652 = vadd.f32 %v1616, 0.0
      %v1653 = vadd.f32 %v1618, 0.0
      %v1654 = vadd.f32 %v1620, 0.0
      %v1655 = vadd.f32 %v1622, 0.0
      %v1656 = vadd.f32 %v1624, 0.0
      %v1657 = vadd.f32 %v1626, 0.0
      %v1658 = vadd.f32 %v1628, 0.0
      %v1659 = vadd.f32 %v1630, 0.0
      %v1660 = vadd.f32 %v1632, 0.0
      %v1661 = vadd.f32 %v1634, 0.0
      %v1662 = vadd.f32 %v1636, 0.0
      %v1663 = vadd.f32 %v1638, 0.0
      %v1664 = vadd.f32 %v1640, 0.0
      %1665 = vrot.lane.b32.xlu0 %v310, 124
      %v1666 = vpop.permute.xlu0 %1665
      %1667 = vrot.lane.b32.xlu0 %v315, 124
      %v1668 = vpop.permute.xlu0 %1667
      %1669 = vrot.lane.b32.xlu0 %v310, 108
      %v1670 = vpop.permute.xlu0 %1669
      %1671 = vrot.lane.b32.xlu0 %v315, 108
      %v1672 = vpop.permute.xlu0 %1671
      %v1673 = vsel %vm434, %v1666, 0
      %v1675 = vsel %vm434, %v1668, 0
      %v1677 = vsel %vm434, %v1670, 0
      %v1679 = vsel %vm434, %v1672, 0
      %1681 = vmatprep.subr.mxu0 0.0
      %1682 = vmatpush1.xpose.msra.mxu0 0.0
      %1683 = vmatprep.subr.mxu0 0.0
      %1684 = vmatpush1.xpose.msra.mxu0 0.0
      %1685 = vmatprep.subr.mxu0 0.0
      %1686 = vmatpush1.xpose.msra.mxu0 0.0
      %1687 = vmatprep.subr.mxu0 0.0
      %1688 = vmatpush1.xpose.msra.mxu0 0.0
      %1689 = vmatprep.subr.mxu0 0.0
      %1690 = vmatpush1.xpose.msra.mxu0 0.0
      %1691 = vmatprep.subr.mxu0 0.0
      %1692 = vmatpush1.xpose.msra.mxu0 0.0
      %1693 = vmatprep.subr.mxu0 0.0
      %1694 = vmatpush1.xpose.msra.mxu0 0.0
      %1695 = vmatprep.subr.mxu0 0.0
      %1696 = vmatpush1.xpose.msra.mxu0 0.0
      %1697 = vmatprep.subr.mxu0 0.0
      %1698 = vmatpush1.xpose.msra.mxu0 0.0
      %1699 = vmatprep.subr.mxu0 0.0
      %1700 = vmatpush1.xpose.msra.mxu0 0.0
      %1701 = vmatprep.subr.mxu0 0.0
      %1702 = vmatpush1.xpose.msra.mxu0 0.0
      %1703 = vmatprep.subr.mxu0 0.0
      %1704 = vmatpush1.xpose.msra.mxu0 0.0
      %1705 = vmatprep.subr.mxu0 0.0
      %1706 = vmatpush1.xpose.msra.mxu0 0.0
      %1707 = vmatprep.subr.mxu0 0.0
      %1708 = vmatpush1.xpose.msra.mxu0 0.0
      %1709 = vmatprep.subr.mxu0 0.0
      %1710 = vmatpush1.xpose.msra.mxu0 %v1679
      %1711 = vmatprep.subr.mxu0 0.0
      %1712 = vmatpush1.xpose.msra.mxu0 %v1677
      %1713 = vmatprep.subr.mxu0 0.0
      %1714 = vmatpush2.xpose.msra.mxu0 0.0
      %1715 = vmatprep.subr.mxu0 0.0
      %1716 = vmatpush2.xpose.msra.mxu0 0.0
      %1717 = vmatprep.subr.mxu0 0.0
      %1718 = vmatpush2.xpose.msra.mxu0 0.0
      %1719 = vmatprep.subr.mxu0 0.0
      %1720 = vmatpush2.xpose.msra.mxu0 0.0
      %1721 = vmatprep.subr.mxu0 0.0
      %1722 = vmatpush2.xpose.msra.mxu0 0.0
      %1723 = vmatprep.subr.mxu0 0.0
      %1724 = vmatpush2.xpose.msra.mxu0 0.0
      %1725 = vmatprep.subr.mxu0 0.0
      %1726 = vmatpush2.xpose.msra.mxu0 0.0
      %1727 = vmatprep.subr.mxu0 0.0
      %1728 = vmatpush2.xpose.msra.mxu0 0.0
      %1729 = vmatprep.subr.mxu0 0.0
      %1730 = vmatpush2.xpose.msra.mxu0 0.0
      %1731 = vmatprep.subr.mxu0 0.0
      %1732 = vmatpush2.xpose.msra.mxu0 0.0
      %1733 = vmatprep.subr.mxu0 0.0
      %1734 = vmatpush2.xpose.msra.mxu0 0.0
      %1735 = vmatprep.subr.mxu0 0.0
      %1736 = vmatpush2.xpose.msra.mxu0 0.0
      %1737 = vmatprep.subr.mxu0 0.0
      %1738 = vmatpush2.xpose.msra.mxu0 0.0
      %1739 = vmatprep.subr.mxu0 0.0
      %1740 = vmatpush2.xpose.msra.mxu0 0.0
      %1741 = vmatprep.subr.mxu0 0.0
      %1742 = vmatpush2.xpose.msra.mxu0 0.0
      %1743 = vmatprep.subr.mxu0 0.0
      %1744 = vmatpush2.xpose.msra.mxu0 0.0
      %1745 = vmatprep.mubr.f32.mxu0 0.0
      %1746 = vmatmul.mubr.f32.gmra.mxu0 %v1673
      %v1747 = vpop.f32.mrf.mxu0
      %v1748 = vadd.f32 0.0, %v1747
      %v1749 = vpop.f32.mrf.mxu0
      %1750 = vmatprep.mubr.f32.mxu0 0.0
      %1751 = vmatmul.mubr.f32.gmra.mxu0 %v1675
      %v1752 = vpop.f32.mrf.mxu0
      %v1753 = vadd.f32 0.0, %v1752
      %v1754 = vpop.f32.mrf.mxu0
      %1755 = vdwg.mxu0
      %1756 = vrot.lane.b32.xlu0 %v320, 124
      %v1757 = vpop.permute.xlu0 %1756
      %1758 = vrot.lane.b32.xlu0 %v325, 124
      %v1759 = vpop.permute.xlu0 %1758
      %1760 = vrot.lane.b32.xlu0 %v320, 108
      %v1761 = vpop.permute.xlu0 %1760
      %1762 = vrot.lane.b32.xlu0 %v325, 108
      %v1763 = vpop.permute.xlu0 %1762
      %v1764 = vsel %vm434, %v1757, 0
      %v1766 = vsel %vm434, %v1759, 0
      %v1768 = vsel %vm434, %v1761, 0
      %v1770 = vsel %vm434, %v1763, 0
      %1772 = vmatprep.subr.mxu0 0.0
      %1773 = vmatpush1.xpose.msra.mxu0 0.0
      %1774 = vmatprep.subr.mxu0 0.0
      %1775 = vmatpush1.xpose.msra.mxu0 0.0
      %1776 = vmatprep.subr.mxu0 0.0
      %1777 = vmatpush1.xpose.msra.mxu0 0.0
      %1778 = vmatprep.subr.mxu0 0.0
      %1779 = vmatpush1.xpose.msra.mxu0 0.0
      %1780 = vmatprep.subr.mxu0 0.0
      %1781 = vmatpush1.xpose.msra.mxu0 0.0
      %1782 = vmatprep.subr.mxu0 0.0
      %1783 = vmatpush1.xpose.msra.mxu0 0.0
      %1784 = vmatprep.subr.mxu0 0.0
      %1785 = vmatpush1.xpose.msra.mxu0 0.0
      %1786 = vmatprep.subr.mxu0 0.0
      %1787 = vmatpush1.xpose.msra.mxu0 0.0
      %1788 = vmatprep.subr.mxu0 0.0
      %1789 = vmatpush1.xpose.msra.mxu0 0.0
      %1790 = vmatprep.subr.mxu0 0.0
      %1791 = vmatpush1.xpose.msra.mxu0 0.0
      %1792 = vmatprep.subr.mxu0 0.0
      %1793 = vmatpush1.xpose.msra.mxu0 0.0
      %1794 = vmatprep.subr.mxu0 0.0
      %1795 = vmatpush1.xpose.msra.mxu0 0.0
      %1796 = vmatprep.subr.mxu0 0.0
      %1797 = vmatpush1.xpose.msra.mxu0 0.0
      %1798 = vmatprep.subr.mxu0 0.0
      %1799 = vmatpush1.xpose.msra.mxu0 0.0
      %1800 = vmatprep.subr.mxu0 0.0
      %1801 = vmatpush1.xpose.msra.mxu0 %v1770
      %1802 = vmatprep.subr.mxu0 0.0
      %1803 = vmatpush1.xpose.msra.mxu0 %v1768
      %1804 = vmatprep.subr.mxu0 0.0
      %1805 = vmatpush2.xpose.msra.mxu0 0.0
      %1806 = vmatprep.subr.mxu0 0.0
      %1807 = vmatpush2.xpose.msra.mxu0 0.0
      %1808 = vmatprep.subr.mxu0 0.0
      %1809 = vmatpush2.xpose.msra.mxu0 0.0
      %1810 = vmatprep.subr.mxu0 0.0
      %1811 = vmatpush2.xpose.msra.mxu0 0.0
      %1812 = vmatprep.subr.mxu0 0.0
      %1813 = vmatpush2.xpose.msra.mxu0 0.0
      %1814 = vmatprep.subr.mxu0 0.0
      %1815 = vmatpush2.xpose.msra.mxu0 0.0
      %1816 = vmatprep.subr.mxu0 0.0
      %1817 = vmatpush2.xpose.msra.mxu0 0.0
      %1818 = vmatprep.subr.mxu0 0.0
      %1819 = vmatpush2.xpose.msra.mxu0 0.0
      %1820 = vmatprep.subr.mxu0 0.0
      %1821 = vmatpush2.xpose.msra.mxu0 0.0
      %1822 = vmatprep.subr.mxu0 0.0
      %1823 = vmatpush2.xpose.msra.mxu0 0.0
      %1824 = vmatprep.subr.mxu0 0.0
      %1825 = vmatpush2.xpose.msra.mxu0 0.0
      %1826 = vmatprep.subr.mxu0 0.0
      %1827 = vmatpush2.xpose.msra.mxu0 0.0
      %1828 = vmatprep.subr.mxu0 0.0
      %1829 = vmatpush2.xpose.msra.mxu0 0.0
      %1830 = vmatprep.subr.mxu0 0.0
      %1831 = vmatpush2.xpose.msra.mxu0 0.0
      %1832 = vmatprep.subr.mxu0 0.0
      %1833 = vmatpush2.xpose.msra.mxu0 0.0
      %1834 = vmatprep.subr.mxu0 0.0
      %1835 = vmatpush2.xpose.msra.mxu0 0.0
      %1836 = vmatprep.mubr.f32.mxu0 0.0
      %1837 = vmatmul.mubr.f32.gmra.mxu0 %v1764
      %v1838 = vpop.f32.mrf.mxu0
      %v1839 = vadd.f32 0.0, %v1838
      %v1840 = vpop.f32.mrf.mxu0
      %1841 = vmatprep.mubr.f32.mxu0 0.0
      %1842 = vmatmul.mubr.f32.gmra.mxu0 %v1766
      %v1843 = vpop.f32.mrf.mxu0
      %v1844 = vadd.f32 0.0, %v1843
      %v1845 = vpop.f32.mrf.mxu0
      %1846 = vdwg.mxu0
      %1847 = vrot.lane.b32.xlu0 %v330, 124
      %v1848 = vpop.permute.xlu0 %1847
      %1849 = vrot.lane.b32.xlu0 %v335, 124
      %v1850 = vpop.permute.xlu0 %1849
      %1851 = vrot.lane.b32.xlu0 %v330, 108
      %v1852 = vpop.permute.xlu0 %1851
      %1853 = vrot.lane.b32.xlu0 %v335, 108
      %v1854 = vpop.permute.xlu0 %1853
      %v1855 = vsel %vm434, %v1848, 0
      %v1857 = vsel %vm434, %v1850, 0
      %v1859 = vsel %vm434, %v1852, 0
      %v1861 = vsel %vm434, %v1854, 0
      %1863 = vmatprep.subr.mxu0 0.0
      %1864 = vmatpush1.xpose.msra.mxu0 0.0
      %1865 = vmatprep.subr.mxu0 0.0
      %1866 = vmatpush1.xpose.msra.mxu0 0.0
      %1867 = vmatprep.subr.mxu0 0.0
      %1868 = vmatpush1.xpose.msra.mxu0 0.0
      %1869 = vmatprep.subr.mxu0 0.0
      %1870 = vmatpush1.xpose.msra.mxu0 0.0
      %1871 = vmatprep.subr.mxu0 0.0
      %1872 = vmatpush1.xpose.msra.mxu0 0.0
      %1873 = vmatprep.subr.mxu0 0.0
      %1874 = vmatpush1.xpose.msra.mxu0 0.0
      %1875 = vmatprep.subr.mxu0 0.0
      %1876 = vmatpush1.xpose.msra.mxu0 0.0
      %1877 = vmatprep.subr.mxu0 0.0
      %1878 = vmatpush1.xpose.msra.mxu0 0.0
      %1879 = vmatprep.subr.mxu0 0.0
      %1880 = vmatpush1.xpose.msra.mxu0 0.0
      %1881 = vmatprep.subr.mxu0 0.0
      %1882 = vmatpush1.xpose.msra.mxu0 0.0
      %1883 = vmatprep.subr.mxu0 0.0
      %1884 = vmatpush1.xpose.msra.mxu0 0.0
      %1885 = vmatprep.subr.mxu0 0.0
      %1886 = vmatpush1.xpose.msra.mxu0 0.0
      %1887 = vmatprep.subr.mxu0 0.0
      %1888 = vmatpush1.xpose.msra.mxu0 0.0
      %1889 = vmatprep.subr.mxu0 0.0
      %1890 = vmatpush1.xpose.msra.mxu0 0.0
      %1891 = vmatprep.subr.mxu0 0.0
      %1892 = vmatpush1.xpose.msra.mxu0 %v1861
      %1893 = vmatprep.subr.mxu0 0.0
      %1894 = vmatpush1.xpose.msra.mxu0 %v1859
      %1895 = vmatprep.subr.mxu0 0.0
      %1896 = vmatpush2.xpose.msra.mxu0 0.0
      %1897 = vmatprep.subr.mxu0 0.0
      %1898 = vmatpush2.xpose.msra.mxu0 0.0
      %1899 = vmatprep.subr.mxu0 0.0
      %1900 = vmatpush2.xpose.msra.mxu0 0.0
      %1901 = vmatprep.subr.mxu0 0.0
      %1902 = vmatpush2.xpose.msra.mxu0 0.0
      %1903 = vmatprep.subr.mxu0 0.0
      %1904 = vmatpush2.xpose.msra.mxu0 0.0
      %1905 = vmatprep.subr.mxu0 0.0
      %1906 = vmatpush2.xpose.msra.mxu0 0.0
      %1907 = vmatprep.subr.mxu0 0.0
      %1908 = vmatpush2.xpose.msra.mxu0 0.0
      %1909 = vmatprep.subr.mxu0 0.0
      %1910 = vmatpush2.xpose.msra.mxu0 0.0
      %1911 = vmatprep.subr.mxu0 0.0
      %1912 = vmatpush2.xpose.msra.mxu0 0.0
      %1913 = vmatprep.subr.mxu0 0.0
      %1914 = vmatpush2.xpose.msra.mxu0 0.0
      %1915 = vmatprep.subr.mxu0 0.0
      %1916 = vmatpush2.xpose.msra.mxu0 0.0
      %1917 = vmatprep.subr.mxu0 0.0
      %1918 = vmatpush2.xpose.msra.mxu0 0.0
      %1919 = vmatprep.subr.mxu0 0.0
      %1920 = vmatpush2.xpose.msra.mxu0 0.0
      %1921 = vmatprep.subr.mxu0 0.0
      %1922 = vmatpush2.xpose.msra.mxu0 0.0
      %1923 = vmatprep.subr.mxu0 0.0
      %1924 = vmatpush2.xpose.msra.mxu0 0.0
      %1925 = vmatprep.subr.mxu0 0.0
      %1926 = vmatpush2.xpose.msra.mxu0 0.0
      %1927 = vmatprep.mubr.f32.mxu0 0.0
      %1928 = vmatmul.mubr.f32.gmra.mxu0 %v1855
      %v1929 = vpop.f32.mrf.mxu0
      %v1930 = vadd.f32 0.0, %v1929
      %v1931 = vpop.f32.mrf.mxu0
      %1932 = vmatprep.mubr.f32.mxu0 0.0
      %1933 = vmatmul.mubr.f32.gmra.mxu0 %v1857
      %v1934 = vpop.f32.mrf.mxu0
      %v1935 = vadd.f32 0.0, %v1934
      %v1936 = vpop.f32.mrf.mxu0
      %1937 = vdwg.mxu0
      %1938 = vrot.lane.b32.xlu0 %v340, 124
      %v1939 = vpop.permute.xlu0 %1938
      %1940 = vrot.lane.b32.xlu0 %v345, 124
      %v1941 = vpop.permute.xlu0 %1940
      %1942 = vrot.lane.b32.xlu0 %v340, 108
      %v1943 = vpop.permute.xlu0 %1942
      %1944 = vrot.lane.b32.xlu0 %v345, 108
      %v1945 = vpop.permute.xlu0 %1944
      %v1946 = vsel %vm434, %v1939, 0
      %v1948 = vsel %vm434, %v1941, 0
      %v1950 = vsel %vm434, %v1943, 0
      %v1952 = vsel %vm434, %v1945, 0
      %1954 = vmatprep.subr.mxu0 0.0
      %1955 = vmatpush1.xpose.msra.mxu0 0.0
      %1956 = vmatprep.subr.mxu0 0.0
      %1957 = vmatpush1.xpose.msra.mxu0 0.0
      %1958 = vmatprep.subr.mxu0 0.0
      %1959 = vmatpush1.xpose.msra.mxu0 0.0
      %1960 = vmatprep.subr.mxu0 0.0
      %1961 = vmatpush1.xpose.msra.mxu0 0.0
      %1962 = vmatprep.subr.mxu0 0.0
      %1963 = vmatpush1.xpose.msra.mxu0 0.0
      %1964 = vmatprep.subr.mxu0 0.0
      %1965 = vmatpush1.xpose.msra.mxu0 0.0
      %1966 = vmatprep.subr.mxu0 0.0
      %1967 = vmatpush1.xpose.msra.mxu0 0.0
      %1968 = vmatprep.subr.mxu0 0.0
      %1969 = vmatpush1.xpose.msra.mxu0 0.0
      %1970 = vmatprep.subr.mxu0 0.0
      %1971 = vmatpush1.xpose.msra.mxu0 0.0
      %1972 = vmatprep.subr.mxu0 0.0
      %1973 = vmatpush1.xpose.msra.mxu0 0.0
      %1974 = vmatprep.subr.mxu0 0.0
      %1975 = vmatpush1.xpose.msra.mxu0 0.0
      %1976 = vmatprep.subr.mxu0 0.0
      %1977 = vmatpush1.xpose.msra.mxu0 0.0
      %1978 = vmatprep.subr.mxu0 0.0
      %1979 = vmatpush1.xpose.msra.mxu0 0.0
      %1980 = vmatprep.subr.mxu0 0.0
      %1981 = vmatpush1.xpose.msra.mxu0 0.0
      %1982 = vmatprep.subr.mxu0 0.0
      %1983 = vmatpush1.xpose.msra.mxu0 %v1952
      %1984 = vmatprep.subr.mxu0 0.0
      %1985 = vmatpush1.xpose.msra.mxu0 %v1950
      %1986 = vmatprep.subr.mxu0 0.0
      %1987 = vmatpush2.xpose.msra.mxu0 0.0
      %1988 = vmatprep.subr.mxu0 0.0
      %1989 = vmatpush2.xpose.msra.mxu0 0.0
      %1990 = vmatprep.subr.mxu0 0.0
      %1991 = vmatpush2.xpose.msra.mxu0 0.0
      %1992 = vmatprep.subr.mxu0 0.0
      %1993 = vmatpush2.xpose.msra.mxu0 0.0
      %1994 = vmatprep.subr.mxu0 0.0
      %1995 = vmatpush2.xpose.msra.mxu0 0.0
      %1996 = vmatprep.subr.mxu0 0.0
      %1997 = vmatpush2.xpose.msra.mxu0 0.0
      %1998 = vmatprep.subr.mxu0 0.0
      %1999 = vmatpush2.xpose.msra.mxu0 0.0
      %2000 = vmatprep.subr.mxu0 0.0
      %2001 = vmatpush2.xpose.msra.mxu0 0.0
      %2002 = vmatprep.subr.mxu0 0.0
      %2003 = vmatpush2.xpose.msra.mxu0 0.0
      %2004 = vmatprep.subr.mxu0 0.0
      %2005 = vmatpush2.xpose.msra.mxu0 0.0
      %2006 = vmatprep.subr.mxu0 0.0
      %2007 = vmatpush2.xpose.msra.mxu0 0.0
      %2008 = vmatprep.subr.mxu0 0.0
      %2009 = vmatpush2.xpose.msra.mxu0 0.0
      %2010 = vmatprep.subr.mxu0 0.0
      %2011 = vmatpush2.xpose.msra.mxu0 0.0
      %2012 = vmatprep.subr.mxu0 0.0
      %2013 = vmatpush2.xpose.msra.mxu0 0.0
      %2014 = vmatprep.subr.mxu0 0.0
      %2015 = vmatpush2.xpose.msra.mxu0 0.0
      %2016 = vmatprep.subr.mxu0 0.0
      %2017 = vmatpush2.xpose.msra.mxu0 0.0
      %2018 = vmatprep.mubr.f32.mxu0 0.0
      %2019 = vmatmul.mubr.f32.gmra.mxu0 %v1946
      %v2020 = vpop.f32.mrf.mxu0
      %v2021 = vadd.f32 0.0, %v2020
      %v2022 = vpop.f32.mrf.mxu0
      %2023 = vmatprep.mubr.f32.mxu0 0.0
      %2024 = vmatmul.mubr.f32.gmra.mxu0 %v1948
      %v2025 = vpop.f32.mrf.mxu0
      %v2026 = vadd.f32 0.0, %v2025
      %v2027 = vpop.f32.mrf.mxu0
      %2028 = vdwg.mxu0
      %2029 = vrot.lane.b32.xlu0 %v350, 124
      %v2030 = vpop.permute.xlu0 %2029
      %2031 = vrot.lane.b32.xlu0 %v355, 124
      %v2032 = vpop.permute.xlu0 %2031
      %2033 = vrot.lane.b32.xlu0 %v350, 108
      %v2034 = vpop.permute.xlu0 %2033
      %2035 = vrot.lane.b32.xlu0 %v355, 108
      %v2036 = vpop.permute.xlu0 %2035
      %v2037 = vsel %vm434, %v2030, 0
      %v2039 = vsel %vm434, %v2032, 0
      %v2041 = vsel %vm434, %v2034, 0
      %v2043 = vsel %vm434, %v2036, 0
      %2045 = vmatprep.subr.mxu0 0.0
      %2046 = vmatpush1.xpose.msra.mxu0 0.0
      %2047 = vmatprep.subr.mxu0 0.0
      %2048 = vmatpush1.xpose.msra.mxu0 0.0
      %2049 = vmatprep.subr.mxu0 0.0
      %2050 = vmatpush1.xpose.msra.mxu0 0.0
      %2051 = vmatprep.subr.mxu0 0.0
      %2052 = vmatpush1.xpose.msra.mxu0 0.0
      %2053 = vmatprep.subr.mxu0 0.0
      %2054 = vmatpush1.xpose.msra.mxu0 0.0
      %2055 = vmatprep.subr.mxu0 0.0
      %2056 = vmatpush1.xpose.msra.mxu0 0.0
      %2057 = vmatprep.subr.mxu0 0.0
      %2058 = vmatpush1.xpose.msra.mxu0 0.0
      %2059 = vmatprep.subr.mxu0 0.0
      %2060 = vmatpush1.xpose.msra.mxu0 0.0
      %2061 = vmatprep.subr.mxu0 0.0
      %2062 = vmatpush1.xpose.msra.mxu0 0.0
      %2063 = vmatprep.subr.mxu0 0.0
      %2064 = vmatpush1.xpose.msra.mxu0 0.0
      %2065 = vmatprep.subr.mxu0 0.0
      %2066 = vmatpush1.xpose.msra.mxu0 0.0
      %2067 = vmatprep.subr.mxu0 0.0
      %2068 = vmatpush1.xpose.msra.mxu0 0.0
      %2069 = vmatprep.subr.mxu0 0.0
      %2070 = vmatpush1.xpose.msra.mxu0 0.0
      %2071 = vmatprep.subr.mxu0 0.0
      %2072 = vmatpush1.xpose.msra.mxu0 0.0
      %2073 = vmatprep.subr.mxu0 0.0
      %2074 = vmatpush1.xpose.msra.mxu0 %v2043
      %2075 = vmatprep.subr.mxu0 0.0
      %2076 = vmatpush1.xpose.msra.mxu0 %v2041
      %2077 = vmatprep.subr.mxu0 0.0
      %2078 = vmatpush2.xpose.msra.mxu0 0.0
      %2079 = vmatprep.subr.mxu0 0.0
      %2080 = vmatpush2.xpose.msra.mxu0 0.0
      %2081 = vmatprep.subr.mxu0 0.0
      %2082 = vmatpush2.xpose.msra.mxu0 0.0
      %2083 = vmatprep.subr.mxu0 0.0
      %2084 = vmatpush2.xpose.msra.mxu0 0.0
      %2085 = vmatprep.subr.mxu0 0.0
      %2086 = vmatpush2.xpose.msra.mxu0 0.0
      %2087 = vmatprep.subr.mxu0 0.0
      %2088 = vmatpush2.xpose.msra.mxu0 0.0
      %2089 = vmatprep.subr.mxu0 0.0
      %2090 = vmatpush2.xpose.msra.mxu0 0.0
      %2091 = vmatprep.subr.mxu0 0.0
      %2092 = vmatpush2.xpose.msra.mxu0 0.0
      %2093 = vmatprep.subr.mxu0 0.0
      %2094 = vmatpush2.xpose.msra.mxu0 0.0
      %2095 = vmatprep.subr.mxu0 0.0
      %2096 = vmatpush2.xpose.msra.mxu0 0.0
      %2097 = vmatprep.subr.mxu0 0.0
      %2098 = vmatpush2.xpose.msra.mxu0 0.0
      %2099 = vmatprep.subr.mxu0 0.0
      %2100 = vmatpush2.xpose.msra.mxu0 0.0
      %2101 = vmatprep.subr.mxu0 0.0
      %2102 = vmatpush2.xpose.msra.mxu0 0.0
      %2103 = vmatprep.subr.mxu0 0.0
      %2104 = vmatpush2.xpose.msra.mxu0 0.0
      %2105 = vmatprep.subr.mxu0 0.0
      %2106 = vmatpush2.xpose.msra.mxu0 0.0
      %2107 = vmatprep.subr.mxu0 0.0
      %2108 = vmatpush2.xpose.msra.mxu0 0.0
      %2109 = vmatprep.mubr.f32.mxu0 0.0
      %2110 = vmatmul.mubr.f32.gmra.mxu0 %v2037
      %v2111 = vpop.f32.mrf.mxu0
      %v2112 = vadd.f32 0.0, %v2111
      %v2113 = vpop.f32.mrf.mxu0
      %2114 = vmatprep.mubr.f32.mxu0 0.0
      %2115 = vmatmul.mubr.f32.gmra.mxu0 %v2039
      %v2116 = vpop.f32.mrf.mxu0
      %v2117 = vadd.f32 0.0, %v2116
      %v2118 = vpop.f32.mrf.mxu0
      %2119 = vdwg.mxu0
      %2120 = vrot.lane.b32.xlu0 %v360, 124
      %v2121 = vpop.permute.xlu0 %2120
      %2122 = vrot.lane.b32.xlu0 %v365, 124
      %v2123 = vpop.permute.xlu0 %2122
      %2124 = vrot.lane.b32.xlu0 %v360, 108
      %v2125 = vpop.permute.xlu0 %2124
      %2126 = vrot.lane.b32.xlu0 %v365, 108
      %v2127 = vpop.permute.xlu0 %2126
      %v2128 = vsel %vm434, %v2121, 0
      %v2130 = vsel %vm434, %v2123, 0
      %v2132 = vsel %vm434, %v2125, 0
      %v2134 = vsel %vm434, %v2127, 0
      %2136 = vmatprep.subr.mxu0 0.0
      %2137 = vmatpush1.xpose.msra.mxu0 0.0
      %2138 = vmatprep.subr.mxu0 0.0
      %2139 = vmatpush1.xpose.msra.mxu0 0.0
      %2140 = vmatprep.subr.mxu0 0.0
      %2141 = vmatpush1.xpose.msra.mxu0 0.0
      %2142 = vmatprep.subr.mxu0 0.0
      %2143 = vmatpush1.xpose.msra.mxu0 0.0
      %2144 = vmatprep.subr.mxu0 0.0
      %2145 = vmatpush1.xpose.msra.mxu0 0.0
      %2146 = vmatprep.subr.mxu0 0.0
      %2147 = vmatpush1.xpose.msra.mxu0 0.0
      %2148 = vmatprep.subr.mxu0 0.0
      %2149 = vmatpush1.xpose.msra.mxu0 0.0
      %2150 = vmatprep.subr.mxu0 0.0
      %2151 = vmatpush1.xpose.msra.mxu0 0.0
      %2152 = vmatprep.subr.mxu0 0.0
      %2153 = vmatpush1.xpose.msra.mxu0 0.0
      %2154 = vmatprep.subr.mxu0 0.0
      %2155 = vmatpush1.xpose.msra.mxu0 0.0
      %2156 = vmatprep.subr.mxu0 0.0
      %2157 = vmatpush1.xpose.msra.mxu0 0.0
      %2158 = vmatprep.subr.mxu0 0.0
      %2159 = vmatpush1.xpose.msra.mxu0 0.0
      %2160 = vmatprep.subr.mxu0 0.0
      %2161 = vmatpush1.xpose.msra.mxu0 0.0
      %2162 = vmatprep.subr.mxu0 0.0
      %2163 = vmatpush1.xpose.msra.mxu0 0.0
      %2164 = vmatprep.subr.mxu0 0.0
      %2165 = vmatpush1.xpose.msra.mxu0 %v2134
      %2166 = vmatprep.subr.mxu0 0.0
      %2167 = vmatpush1.xpose.msra.mxu0 %v2132
      %2168 = vmatprep.subr.mxu0 0.0
      %2169 = vmatpush2.xpose.msra.mxu0 0.0
      %2170 = vmatprep.subr.mxu0 0.0
      %2171 = vmatpush2.xpose.msra.mxu0 0.0
      %2172 = vmatprep.subr.mxu0 0.0
      %2173 = vmatpush2.xpose.msra.mxu0 0.0
      %2174 = vmatprep.subr.mxu0 0.0
      %2175 = vmatpush2.xpose.msra.mxu0 0.0
      %2176 = vmatprep.subr.mxu0 0.0
      %2177 = vmatpush2.xpose.msra.mxu0 0.0
      %2178 = vmatprep.subr.mxu0 0.0
      %2179 = vmatpush2.xpose.msra.mxu0 0.0
      %2180 = vmatprep.subr.mxu0 0.0
      %2181 = vmatpush2.xpose.msra.mxu0 0.0
      %2182 = vmatprep.subr.mxu0 0.0
      %2183 = vmatpush2.xpose.msra.mxu0 0.0
      %2184 = vmatprep.subr.mxu0 0.0
      %2185 = vmatpush2.xpose.msra.mxu0 0.0
      %2186 = vmatprep.subr.mxu0 0.0
      %2187 = vmatpush2.xpose.msra.mxu0 0.0
      %2188 = vmatprep.subr.mxu0 0.0
      %2189 = vmatpush2.xpose.msra.mxu0 0.0
      %2190 = vmatprep.subr.mxu0 0.0
      %2191 = vmatpush2.xpose.msra.mxu0 0.0
      %2192 = vmatprep.subr.mxu0 0.0
      %2193 = vmatpush2.xpose.msra.mxu0 0.0
      %2194 = vmatprep.subr.mxu0 0.0
      %2195 = vmatpush2.xpose.msra.mxu0 0.0
      %2196 = vmatprep.subr.mxu0 0.0
      %2197 = vmatpush2.xpose.msra.mxu0 0.0
      %2198 = vmatprep.subr.mxu0 0.0
      %2199 = vmatpush2.xpose.msra.mxu0 0.0
      %2200 = vmatprep.mubr.f32.mxu0 0.0
      %2201 = vmatmul.mubr.f32.gmra.mxu0 %v2128
      %v2202 = vpop.f32.mrf.mxu0
      %v2203 = vadd.f32 0.0, %v2202
      %v2204 = vpop.f32.mrf.mxu0
      %2205 = vmatprep.mubr.f32.mxu0 0.0
      %2206 = vmatmul.mubr.f32.gmra.mxu0 %v2130
      %v2207 = vpop.f32.mrf.mxu0
      %v2208 = vadd.f32 0.0, %v2207
      %v2209 = vpop.f32.mrf.mxu0
      %2210 = vdwg.mxu0
      %2211 = vrot.lane.b32.xlu0 %v370, 124
      %v2212 = vpop.permute.xlu0 %2211
      %2213 = vrot.lane.b32.xlu0 %v375, 124
      %v2214 = vpop.permute.xlu0 %2213
      %2215 = vrot.lane.b32.xlu0 %v370, 108
      %v2216 = vpop.permute.xlu0 %2215
      %2217 = vrot.lane.b32.xlu0 %v375, 108
      %v2218 = vpop.permute.xlu0 %2217
      %v2219 = vsel %vm434, %v2212, 0
      %v2221 = vsel %vm434, %v2214, 0
      %v2223 = vsel %vm434, %v2216, 0
      %v2225 = vsel %vm434, %v2218, 0
      %2227 = vmatprep.subr.mxu0 0.0
      %2228 = vmatpush1.xpose.msra.mxu0 0.0
      %2229 = vmatprep.subr.mxu0 0.0
      %2230 = vmatpush1.xpose.msra.mxu0 0.0
      %2231 = vmatprep.subr.mxu0 0.0
      %2232 = vmatpush1.xpose.msra.mxu0 0.0
      %2233 = vmatprep.subr.mxu0 0.0
      %2234 = vmatpush1.xpose.msra.mxu0 0.0
      %2235 = vmatprep.subr.mxu0 0.0
      %2236 = vmatpush1.xpose.msra.mxu0 0.0
      %2237 = vmatprep.subr.mxu0 0.0
      %2238 = vmatpush1.xpose.msra.mxu0 0.0
      %2239 = vmatprep.subr.mxu0 0.0
      %2240 = vmatpush1.xpose.msra.mxu0 0.0
      %2241 = vmatprep.subr.mxu0 0.0
      %2242 = vmatpush1.xpose.msra.mxu0 0.0
      %2243 = vmatprep.subr.mxu0 0.0
      %2244 = vmatpush1.xpose.msra.mxu0 0.0
      %2245 = vmatprep.subr.mxu0 0.0
      %2246 = vmatpush1.xpose.msra.mxu0 0.0
      %2247 = vmatprep.subr.mxu0 0.0
      %2248 = vmatpush1.xpose.msra.mxu0 0.0
      %2249 = vmatprep.subr.mxu0 0.0
      %2250 = vmatpush1.xpose.msra.mxu0 0.0
      %2251 = vmatprep.subr.mxu0 0.0
      %2252 = vmatpush1.xpose.msra.mxu0 0.0
      %2253 = vmatprep.subr.mxu0 0.0
      %2254 = vmatpush1.xpose.msra.mxu0 0.0
      %2255 = vmatprep.subr.mxu0 0.0
      %2256 = vmatpush1.xpose.msra.mxu0 %v2225
      %2257 = vmatprep.subr.mxu0 0.0
      %2258 = vmatpush1.xpose.msra.mxu0 %v2223
      %2259 = vmatprep.subr.mxu0 0.0
      %2260 = vmatpush2.xpose.msra.mxu0 0.0
      %2261 = vmatprep.subr.mxu0 0.0
      %2262 = vmatpush2.xpose.msra.mxu0 0.0
      %2263 = vmatprep.subr.mxu0 0.0
      %2264 = vmatpush2.xpose.msra.mxu0 0.0
      %2265 = vmatprep.subr.mxu0 0.0
      %2266 = vmatpush2.xpose.msra.mxu0 0.0
      %2267 = vmatprep.subr.mxu0 0.0
      %2268 = vmatpush2.xpose.msra.mxu0 0.0
      %2269 = vmatprep.subr.mxu0 0.0
      %2270 = vmatpush2.xpose.msra.mxu0 0.0
      %2271 = vmatprep.subr.mxu0 0.0
      %2272 = vmatpush2.xpose.msra.mxu0 0.0
      %2273 = vmatprep.subr.mxu0 0.0
      %2274 = vmatpush2.xpose.msra.mxu0 0.0
      %2275 = vmatprep.subr.mxu0 0.0
      %2276 = vmatpush2.xpose.msra.mxu0 0.0
      %2277 = vmatprep.subr.mxu0 0.0
      %2278 = vmatpush2.xpose.msra.mxu0 0.0
      %2279 = vmatprep.subr.mxu0 0.0
      %2280 = vmatpush2.xpose.msra.mxu0 0.0
      %2281 = vmatprep.subr.mxu0 0.0
      %2282 = vmatpush2.xpose.msra.mxu0 0.0
      %2283 = vmatprep.subr.mxu0 0.0
      %2284 = vmatpush2.xpose.msra.mxu0 0.0
      %2285 = vmatprep.subr.mxu0 0.0
      %2286 = vmatpush2.xpose.msra.mxu0 0.0
      %2287 = vmatprep.subr.mxu0 0.0
      %2288 = vmatpush2.xpose.msra.mxu0 0.0
      %2289 = vmatprep.subr.mxu0 0.0
      %2290 = vmatpush2.xpose.msra.mxu0 0.0
      %2291 = vmatprep.mubr.f32.mxu0 0.0
      %2292 = vmatmul.mubr.f32.gmra.mxu0 %v2219
      %v2293 = vpop.f32.mrf.mxu0
      %v2294 = vadd.f32 0.0, %v2293
      %v2295 = vpop.f32.mrf.mxu0
      %2296 = vmatprep.mubr.f32.mxu0 0.0
      %2297 = vmatmul.mubr.f32.gmra.mxu0 %v2221
      %v2298 = vpop.f32.mrf.mxu0
      %v2299 = vadd.f32 0.0, %v2298
      %v2300 = vpop.f32.mrf.mxu0
      %2301 = vdwg.mxu0
      %2302 = vrot.lane.b32.xlu0 %v380, 124
      %v2303 = vpop.permute.xlu0 %2302
      %2304 = vrot.lane.b32.xlu0 %v385, 124
      %v2305 = vpop.permute.xlu0 %2304
      %2306 = vrot.lane.b32.xlu0 %v380, 108
      %v2307 = vpop.permute.xlu0 %2306
      %2308 = vrot.lane.b32.xlu0 %v385, 108
      %v2309 = vpop.permute.xlu0 %2308
      %v2310 = vsel %vm434, %v2303, 0
      %v2312 = vsel %vm434, %v2305, 0
      %v2314 = vsel %vm434, %v2307, 0
      %v2316 = vsel %vm434, %v2309, 0
      %2318 = vmatprep.subr.mxu0 0.0
      %2319 = vmatpush1.xpose.msra.mxu0 0.0
      %2320 = vmatprep.subr.mxu0 0.0
      %2321 = vmatpush1.xpose.msra.mxu0 0.0
      %2322 = vmatprep.subr.mxu0 0.0
      %2323 = vmatpush1.xpose.msra.mxu0 0.0
      %2324 = vmatprep.subr.mxu0 0.0
      %2325 = vmatpush1.xpose.msra.mxu0 0.0
      %2326 = vmatprep.subr.mxu0 0.0
      %2327 = vmatpush1.xpose.msra.mxu0 0.0
      %2328 = vmatprep.subr.mxu0 0.0
      %2329 = vmatpush1.xpose.msra.mxu0 0.0
      %2330 = vmatprep.subr.mxu0 0.0
      %2331 = vmatpush1.xpose.msra.mxu0 0.0
      %2332 = vmatprep.subr.mxu0 0.0
      %2333 = vmatpush1.xpose.msra.mxu0 0.0
      %2334 = vmatprep.subr.mxu0 0.0
      %2335 = vmatpush1.xpose.msra.mxu0 0.0
      %2336 = vmatprep.subr.mxu0 0.0
      %2337 = vmatpush1.xpose.msra.mxu0 0.0
      %2338 = vmatprep.subr.mxu0 0.0
      %2339 = vmatpush1.xpose.msra.mxu0 0.0
      %2340 = vmatprep.subr.mxu0 0.0
      %2341 = vmatpush1.xpose.msra.mxu0 0.0
      %2342 = vmatprep.subr.mxu0 0.0
      %2343 = vmatpush1.xpose.msra.mxu0 0.0
      %2344 = vmatprep.subr.mxu0 0.0
      %2345 = vmatpush1.xpose.msra.mxu0 0.0
      %2346 = vmatprep.subr.mxu0 0.0
      %2347 = vmatpush1.xpose.msra.mxu0 %v2316
      %2348 = vmatprep.subr.mxu0 0.0
      %2349 = vmatpush1.xpose.msra.mxu0 %v2314
      %2350 = vmatprep.subr.mxu0 0.0
      %2351 = vmatpush2.xpose.msra.mxu0 0.0
      %2352 = vmatprep.subr.mxu0 0.0
      %2353 = vmatpush2.xpose.msra.mxu0 0.0
      %2354 = vmatprep.subr.mxu0 0.0
      %2355 = vmatpush2.xpose.msra.mxu0 0.0
      %2356 = vmatprep.subr.mxu0 0.0
      %2357 = vmatpush2.xpose.msra.mxu0 0.0
      %2358 = vmatprep.subr.mxu0 0.0
      %2359 = vmatpush2.xpose.msra.mxu0 0.0
      %2360 = vmatprep.subr.mxu0 0.0
      %2361 = vmatpush2.xpose.msra.mxu0 0.0
      %2362 = vmatprep.subr.mxu0 0.0
      %2363 = vmatpush2.xpose.msra.mxu0 0.0
      %2364 = vmatprep.subr.mxu0 0.0
      %2365 = vmatpush2.xpose.msra.mxu0 0.0
      %2366 = vmatprep.subr.mxu0 0.0
      %2367 = vmatpush2.xpose.msra.mxu0 0.0
      %2368 = vmatprep.subr.mxu0 0.0
      %2369 = vmatpush2.xpose.msra.mxu0 0.0
      %2370 = vmatprep.subr.mxu0 0.0
      %2371 = vmatpush2.xpose.msra.mxu0 0.0
      %2372 = vmatprep.subr.mxu0 0.0
      %2373 = vmatpush2.xpose.msra.mxu0 0.0
      %2374 = vmatprep.subr.mxu0 0.0
      %2375 = vmatpush2.xpose.msra.mxu0 0.0
      %2376 = vmatprep.subr.mxu0 0.0
      %2377 = vmatpush2.xpose.msra.mxu0 0.0
      %2378 = vmatprep.subr.mxu0 0.0
      %2379 = vmatpush2.xpose.msra.mxu0 0.0
      %2380 = vmatprep.subr.mxu0 0.0
      %2381 = vmatpush2.xpose.msra.mxu0 0.0
      %2382 = vmatprep.mubr.f32.mxu0 0.0
      %2383 = vmatmul.mubr.f32.gmra.mxu0 %v2310
      %v2384 = vpop.f32.mrf.mxu0
      %v2385 = vadd.f32 0.0, %v2384
      %v2386 = vpop.f32.mrf.mxu0
      %2387 = vmatprep.mubr.f32.mxu0 0.0
      %2388 = vmatmul.mubr.f32.gmra.mxu0 %v2312
      %v2389 = vpop.f32.mrf.mxu0
      %v2390 = vadd.f32 0.0, %v2389
      %v2391 = vpop.f32.mrf.mxu0
      %2392 = vdwg.mxu0
      %2393 = vrot.lane.b32.xlu0 %v390, 124
      %v2394 = vpop.permute.xlu0 %2393
      %2395 = vrot.lane.b32.xlu0 %v395, 124
      %v2396 = vpop.permute.xlu0 %2395
      %2397 = vrot.lane.b32.xlu0 %v390, 108
      %v2398 = vpop.permute.xlu0 %2397
      %2399 = vrot.lane.b32.xlu0 %v395, 108
      %v2400 = vpop.permute.xlu0 %2399
      %v2401 = vsel %vm434, %v2394, 0
      %v2403 = vsel %vm434, %v2396, 0
      %v2405 = vsel %vm434, %v2398, 0
      %v2407 = vsel %vm434, %v2400, 0
      %2409 = vmatprep.subr.mxu0 0.0
      %2410 = vmatpush1.xpose.msra.mxu0 0.0
      %2411 = vmatprep.subr.mxu0 0.0
      %2412 = vmatpush1.xpose.msra.mxu0 0.0
      %2413 = vmatprep.subr.mxu0 0.0
      %2414 = vmatpush1.xpose.msra.mxu0 0.0
      %2415 = vmatprep.subr.mxu0 0.0
      %2416 = vmatpush1.xpose.msra.mxu0 0.0
      %2417 = vmatprep.subr.mxu0 0.0
      %2418 = vmatpush1.xpose.msra.mxu0 0.0
      %2419 = vmatprep.subr.mxu0 0.0
      %2420 = vmatpush1.xpose.msra.mxu0 0.0
      %2421 = vmatprep.subr.mxu0 0.0
      %2422 = vmatpush1.xpose.msra.mxu0 0.0
      %2423 = vmatprep.subr.mxu0 0.0
      %2424 = vmatpush1.xpose.msra.mxu0 0.0
      %2425 = vmatprep.subr.mxu0 0.0
      %2426 = vmatpush1.xpose.msra.mxu0 0.0
      %2427 = vmatprep.subr.mxu0 0.0
      %2428 = vmatpush1.xpose.msra.mxu0 0.0
      %2429 = vmatprep.subr.mxu0 0.0
      %2430 = vmatpush1.xpose.msra.mxu0 0.0
      %2431 = vmatprep.subr.mxu0 0.0
      %2432 = vmatpush1.xpose.msra.mxu0 0.0
      %2433 = vmatprep.subr.mxu0 0.0
      %2434 = vmatpush1.xpose.msra.mxu0 0.0
      %2435 = vmatprep.subr.mxu0 0.0
      %2436 = vmatpush1.xpose.msra.mxu0 0.0
      %2437 = vmatprep.subr.mxu0 0.0
      %2438 = vmatpush1.xpose.msra.mxu0 %v2407
      %2439 = vmatprep.subr.mxu0 0.0
      %2440 = vmatpush1.xpose.msra.mxu0 %v2405
      %2441 = vmatprep.subr.mxu0 0.0
      %2442 = vmatpush2.xpose.msra.mxu0 0.0
      %2443 = vmatprep.subr.mxu0 0.0
      %2444 = vmatpush2.xpose.msra.mxu0 0.0
      %2445 = vmatprep.subr.mxu0 0.0
      %2446 = vmatpush2.xpose.msra.mxu0 0.0
      %2447 = vmatprep.subr.mxu0 0.0
      %2448 = vmatpush2.xpose.msra.mxu0 0.0
      %2449 = vmatprep.subr.mxu0 0.0
      %2450 = vmatpush2.xpose.msra.mxu0 0.0
      %2451 = vmatprep.subr.mxu0 0.0
      %2452 = vmatpush2.xpose.msra.mxu0 0.0
      %2453 = vmatprep.subr.mxu0 0.0
      %2454 = vmatpush2.xpose.msra.mxu0 0.0
      %2455 = vmatprep.subr.mxu0 0.0
      %2456 = vmatpush2.xpose.msra.mxu0 0.0
      %2457 = vmatprep.subr.mxu0 0.0
      %2458 = vmatpush2.xpose.msra.mxu0 0.0
      %2459 = vmatprep.subr.mxu0 0.0
      %2460 = vmatpush2.xpose.msra.mxu0 0.0
      %2461 = vmatprep.subr.mxu0 0.0
      %2462 = vmatpush2.xpose.msra.mxu0 0.0
      %2463 = vmatprep.subr.mxu0 0.0
      %2464 = vmatpush2.xpose.msra.mxu0 0.0
      %2465 = vmatprep.subr.mxu0 0.0
      %2466 = vmatpush2.xpose.msra.mxu0 0.0
      %2467 = vmatprep.subr.mxu0 0.0
      %2468 = vmatpush2.xpose.msra.mxu0 0.0
      %2469 = vmatprep.subr.mxu0 0.0
      %2470 = vmatpush2.xpose.msra.mxu0 0.0
      %2471 = vmatprep.subr.mxu0 0.0
      %2472 = vmatpush2.xpose.msra.mxu0 0.0
      %2473 = vmatprep.mubr.f32.mxu0 0.0
      %2474 = vmatmul.mubr.f32.gmra.mxu0 %v2401
      %v2475 = vpop.f32.mrf.mxu0
      %v2476 = vadd.f32 0.0, %v2475
      %v2477 = vpop.f32.mrf.mxu0
      %2478 = vmatprep.mubr.f32.mxu0 0.0
      %2479 = vmatmul.mubr.f32.gmra.mxu0 %v2403
      %v2480 = vpop.f32.mrf.mxu0
      %v2481 = vadd.f32 0.0, %v2480
      %v2482 = vpop.f32.mrf.mxu0
      %2483 = vdwg.mxu0
      %2484 = vrot.lane.b32.xlu0 %v400, 124
      %v2485 = vpop.permute.xlu0 %2484
      %2486 = vrot.lane.b32.xlu0 %v405, 124
      %v2487 = vpop.permute.xlu0 %2486
      %2488 = vrot.lane.b32.xlu0 %v400, 108
      %v2489 = vpop.permute.xlu0 %2488
      %2490 = vrot.lane.b32.xlu0 %v405, 108
      %v2491 = vpop.permute.xlu0 %2490
      %v2492 = vsel %vm434, %v2485, 0
      %v2494 = vsel %vm434, %v2487, 0
      %v2496 = vsel %vm434, %v2489, 0
      %v2498 = vsel %vm434, %v2491, 0
      %2500 = vmatprep.subr.mxu0 0.0
      %2501 = vmatpush1.xpose.msra.mxu0 0.0
      %2502 = vmatprep.subr.mxu0 0.0
      %2503 = vmatpush1.xpose.msra.mxu0 0.0
      %2504 = vmatprep.subr.mxu0 0.0
      %2505 = vmatpush1.xpose.msra.mxu0 0.0
      %2506 = vmatprep.subr.mxu0 0.0
      %2507 = vmatpush1.xpose.msra.mxu0 0.0
      %2508 = vmatprep.subr.mxu0 0.0
      %2509 = vmatpush1.xpose.msra.mxu0 0.0
      %2510 = vmatprep.subr.mxu0 0.0
      %2511 = vmatpush1.xpose.msra.mxu0 0.0
      %2512 = vmatprep.subr.mxu0 0.0
      %2513 = vmatpush1.xpose.msra.mxu0 0.0
      %2514 = vmatprep.subr.mxu0 0.0
      %2515 = vmatpush1.xpose.msra.mxu0 0.0
      %2516 = vmatprep.subr.mxu0 0.0
      %2517 = vmatpush1.xpose.msra.mxu0 0.0
      %2518 = vmatprep.subr.mxu0 0.0
      %2519 = vmatpush1.xpose.msra.mxu0 0.0
      %2520 = vmatprep.subr.mxu0 0.0
      %2521 = vmatpush1.xpose.msra.mxu0 0.0
      %2522 = vmatprep.subr.mxu0 0.0
      %2523 = vmatpush1.xpose.msra.mxu0 0.0
      %2524 = vmatprep.subr.mxu0 0.0
      %2525 = vmatpush1.xpose.msra.mxu0 0.0
      %2526 = vmatprep.subr.mxu0 0.0
      %2527 = vmatpush1.xpose.msra.mxu0 0.0
      %2528 = vmatprep.subr.mxu0 0.0
      %2529 = vmatpush1.xpose.msra.mxu0 %v2498
      %2530 = vmatprep.subr.mxu0 0.0
      %2531 = vmatpush1.xpose.msra.mxu0 %v2496
      %2532 = vmatprep.subr.mxu0 0.0
      %2533 = vmatpush2.xpose.msra.mxu0 0.0
      %2534 = vmatprep.subr.mxu0 0.0
      %2535 = vmatpush2.xpose.msra.mxu0 0.0
      %2536 = vmatprep.subr.mxu0 0.0
      %2537 = vmatpush2.xpose.msra.mxu0 0.0
      %2538 = vmatprep.subr.mxu0 0.0
      %2539 = vmatpush2.xpose.msra.mxu0 0.0
      %2540 = vmatprep.subr.mxu0 0.0
      %2541 = vmatpush2.xpose.msra.mxu0 0.0
      %2542 = vmatprep.subr.mxu0 0.0
      %2543 = vmatpush2.xpose.msra.mxu0 0.0
      %2544 = vmatprep.subr.mxu0 0.0
      %2545 = vmatpush2.xpose.msra.mxu0 0.0
      %2546 = vmatprep.subr.mxu0 0.0
      %2547 = vmatpush2.xpose.msra.mxu0 0.0
      %2548 = vmatprep.subr.mxu0 0.0
      %2549 = vmatpush2.xpose.msra.mxu0 0.0
      %2550 = vmatprep.subr.mxu0 0.0
      %2551 = vmatpush2.xpose.msra.mxu0 0.0
      %2552 = vmatprep.subr.mxu0 0.0
      %2553 = vmatpush2.xpose.msra.mxu0 0.0
      %2554 = vmatprep.subr.mxu0 0.0
      %2555 = vmatpush2.xpose.msra.mxu0 0.0
      %2556 = vmatprep.subr.mxu0 0.0
      %2557 = vmatpush2.xpose.msra.mxu0 0.0
      %2558 = vmatprep.subr.mxu0 0.0
      %2559 = vmatpush2.xpose.msra.mxu0 0.0
      %2560 = vmatprep.subr.mxu0 0.0
      %2561 = vmatpush2.xpose.msra.mxu0 0.0
      %2562 = vmatprep.subr.mxu0 0.0
      %2563 = vmatpush2.xpose.msra.mxu0 0.0
      %2564 = vmatprep.mubr.f32.mxu0 0.0
      %2565 = vmatmul.mubr.f32.gmra.mxu0 %v2492
      %v2566 = vpop.f32.mrf.mxu0
      %v2567 = vadd.f32 0.0, %v2566
      %v2568 = vpop.f32.mrf.mxu0
      %2569 = vmatprep.mubr.f32.mxu0 0.0
      %2570 = vmatmul.mubr.f32.gmra.mxu0 %v2494
      %v2571 = vpop.f32.mrf.mxu0
      %v2572 = vadd.f32 0.0, %v2571
      %v2573 = vpop.f32.mrf.mxu0
      %2574 = vdwg.mxu0
      %2575 = vrot.lane.b32.xlu0 %v410, 124
      %v2576 = vpop.permute.xlu0 %2575
      %2577 = vrot.lane.b32.xlu0 %v415, 124
      %v2578 = vpop.permute.xlu0 %2577
      %2579 = vrot.lane.b32.xlu0 %v410, 108
      %v2580 = vpop.permute.xlu0 %2579
      %2581 = vrot.lane.b32.xlu0 %v415, 108
      %v2582 = vpop.permute.xlu0 %2581
      %v2583 = vsel %vm434, %v2576, 0
      %v2585 = vsel %vm434, %v2578, 0
      %v2587 = vsel %vm434, %v2580, 0
      %v2589 = vsel %vm434, %v2582, 0
      %2591 = vmatprep.subr.mxu0 0.0
      %2592 = vmatpush1.xpose.msra.mxu0 0.0
      %2593 = vmatprep.subr.mxu0 0.0
      %2594 = vmatpush1.xpose.msra.mxu0 0.0
      %2595 = vmatprep.subr.mxu0 0.0
      %2596 = vmatpush1.xpose.msra.mxu0 0.0
      %2597 = vmatprep.subr.mxu0 0.0
      %2598 = vmatpush1.xpose.msra.mxu0 0.0
      %2599 = vmatprep.subr.mxu0 0.0
      %2600 = vmatpush1.xpose.msra.mxu0 0.0
      %2601 = vmatprep.subr.mxu0 0.0
      %2602 = vmatpush1.xpose.msra.mxu0 0.0
      %2603 = vmatprep.subr.mxu0 0.0
      %2604 = vmatpush1.xpose.msra.mxu0 0.0
      %2605 = vmatprep.subr.mxu0 0.0
      %2606 = vmatpush1.xpose.msra.mxu0 0.0
      %2607 = vmatprep.subr.mxu0 0.0
      %2608 = vmatpush1.xpose.msra.mxu0 0.0
      %2609 = vmatprep.subr.mxu0 0.0
      %2610 = vmatpush1.xpose.msra.mxu0 0.0
      %2611 = vmatprep.subr.mxu0 0.0
      %2612 = vmatpush1.xpose.msra.mxu0 0.0
      %2613 = vmatprep.subr.mxu0 0.0
      %2614 = vmatpush1.xpose.msra.mxu0 0.0
      %2615 = vmatprep.subr.mxu0 0.0
      %2616 = vmatpush1.xpose.msra.mxu0 0.0
      %2617 = vmatprep.subr.mxu0 0.0
      %2618 = vmatpush1.xpose.msra.mxu0 0.0
      %2619 = vmatprep.subr.mxu0 0.0
      %2620 = vmatpush1.xpose.msra.mxu0 %v2589
      %2621 = vmatprep.subr.mxu0 0.0
      %2622 = vmatpush1.xpose.msra.mxu0 %v2587
      %2623 = vmatprep.subr.mxu0 0.0
      %2624 = vmatpush2.xpose.msra.mxu0 0.0
      %2625 = vmatprep.subr.mxu0 0.0
      %2626 = vmatpush2.xpose.msra.mxu0 0.0
      %2627 = vmatprep.subr.mxu0 0.0
      %2628 = vmatpush2.xpose.msra.mxu0 0.0
      %2629 = vmatprep.subr.mxu0 0.0
      %2630 = vmatpush2.xpose.msra.mxu0 0.0
      %2631 = vmatprep.subr.mxu0 0.0
      %2632 = vmatpush2.xpose.msra.mxu0 0.0
      %2633 = vmatprep.subr.mxu0 0.0
      %2634 = vmatpush2.xpose.msra.mxu0 0.0
      %2635 = vmatprep.subr.mxu0 0.0
      %2636 = vmatpush2.xpose.msra.mxu0 0.0
      %2637 = vmatprep.subr.mxu0 0.0
      %2638 = vmatpush2.xpose.msra.mxu0 0.0
      %2639 = vmatprep.subr.mxu0 0.0
      %2640 = vmatpush2.xpose.msra.mxu0 0.0
      %2641 = vmatprep.subr.mxu0 0.0
      %2642 = vmatpush2.xpose.msra.mxu0 0.0
      %2643 = vmatprep.subr.mxu0 0.0
      %2644 = vmatpush2.xpose.msra.mxu0 0.0
      %2645 = vmatprep.subr.mxu0 0.0
      %2646 = vmatpush2.xpose.msra.mxu0 0.0
      %2647 = vmatprep.subr.mxu0 0.0
      %2648 = vmatpush2.xpose.msra.mxu0 0.0
      %2649 = vmatprep.subr.mxu0 0.0
      %2650 = vmatpush2.xpose.msra.mxu0 0.0
      %2651 = vmatprep.subr.mxu0 0.0
      %2652 = vmatpush2.xpose.msra.mxu0 0.0
      %2653 = vmatprep.subr.mxu0 0.0
      %2654 = vmatpush2.xpose.msra.mxu0 0.0
      %2655 = vmatprep.mubr.f32.mxu0 0.0
      %2656 = vmatmul.mubr.f32.gmra.mxu0 %v2583
      %v2657 = vpop.f32.mrf.mxu0
      %v2658 = vadd.f32 0.0, %v2657
      %v2659 = vpop.f32.mrf.mxu0
      %2660 = vmatprep.mubr.f32.mxu0 0.0
      %2661 = vmatmul.mubr.f32.gmra.mxu0 %v2585
      %v2662 = vpop.f32.mrf.mxu0
      %v2663 = vadd.f32 0.0, %v2662
      %v2664 = vpop.f32.mrf.mxu0
      %2665 = vdwg.mxu0
      %2666 = vrot.lane.b32.xlu0 %v420, 124
      %v2667 = vpop.permute.xlu0 %2666
      %2668 = vrot.lane.b32.xlu0 %v425, 124
      %v2669 = vpop.permute.xlu0 %2668
      %2670 = vrot.lane.b32.xlu0 %v420, 108
      %v2671 = vpop.permute.xlu0 %2670
      %2672 = vrot.lane.b32.xlu0 %v425, 108
      %v2673 = vpop.permute.xlu0 %2672
      %v2674 = vsel %vm434, %v2667, 0
      %v2676 = vsel %vm434, %v2669, 0
      %v2678 = vsel %vm434, %v2671, 0
      %v2680 = vsel %vm434, %v2673, 0
      %2682 = vmatprep.subr.mxu0 0.0
      %2683 = vmatpush1.xpose.msra.mxu0 0.0
      %2684 = vmatprep.subr.mxu0 0.0
      %2685 = vmatpush1.xpose.msra.mxu0 0.0
      %2686 = vmatprep.subr.mxu0 0.0
      %2687 = vmatpush1.xpose.msra.mxu0 0.0
      %2688 = vmatprep.subr.mxu0 0.0
      %2689 = vmatpush1.xpose.msra.mxu0 0.0
      %2690 = vmatprep.subr.mxu0 0.0
      %2691 = vmatpush1.xpose.msra.mxu0 0.0
      %2692 = vmatprep.subr.mxu0 0.0
      %2693 = vmatpush1.xpose.msra.mxu0 0.0
      %2694 = vmatprep.subr.mxu0 0.0
      %2695 = vmatpush1.xpose.msra.mxu0 0.0
      %2696 = vmatprep.subr.mxu0 0.0
      %2697 = vmatpush1.xpose.msra.mxu0 0.0
      %2698 = vmatprep.subr.mxu0 0.0
      %2699 = vmatpush1.xpose.msra.mxu0 0.0
      %2700 = vmatprep.subr.mxu0 0.0
      %2701 = vmatpush1.xpose.msra.mxu0 0.0
      %2702 = vmatprep.subr.mxu0 0.0
      %2703 = vmatpush1.xpose.msra.mxu0 0.0
      %2704 = vmatprep.subr.mxu0 0.0
      %2705 = vmatpush1.xpose.msra.mxu0 0.0
      %2706 = vmatprep.subr.mxu0 0.0
      %2707 = vmatpush1.xpose.msra.mxu0 0.0
      %2708 = vmatprep.subr.mxu0 0.0
      %2709 = vmatpush1.xpose.msra.mxu0 0.0
      %2710 = vmatprep.subr.mxu0 0.0
      %2711 = vmatpush1.xpose.msra.mxu0 %v2680
      %2712 = vmatprep.subr.mxu0 0.0
      %2713 = vmatpush1.xpose.msra.mxu0 %v2678
      %2714 = vmatprep.subr.mxu0 0.0
      %2715 = vmatpush2.xpose.msra.mxu0 0.0
      %2716 = vmatprep.subr.mxu0 0.0
      %2717 = vmatpush2.xpose.msra.mxu0 0.0
      %2718 = vmatprep.subr.mxu0 0.0
      %2719 = vmatpush2.xpose.msra.mxu0 0.0
      %2720 = vmatprep.subr.mxu0 0.0
      %2721 = vmatpush2.xpose.msra.mxu0 0.0
      %2722 = vmatprep.subr.mxu0 0.0
      %2723 = vmatpush2.xpose.msra.mxu0 0.0
      %2724 = vmatprep.subr.mxu0 0.0
      %2725 = vmatpush2.xpose.msra.mxu0 0.0
      %2726 = vmatprep.subr.mxu0 0.0
      %2727 = vmatpush2.xpose.msra.mxu0 0.0
      %2728 = vmatprep.subr.mxu0 0.0
      %2729 = vmatpush2.xpose.msra.mxu0 0.0
      %2730 = vmatprep.subr.mxu0 0.0
      %2731 = vmatpush2.xpose.msra.mxu0 0.0
      %2732 = vmatprep.subr.mxu0 0.0
      %2733 = vmatpush2.xpose.msra.mxu0 0.0
      %2734 = vmatprep.subr.mxu0 0.0
      %2735 = vmatpush2.xpose.msra.mxu0 0.0
      %2736 = vmatprep.subr.mxu0 0.0
      %2737 = vmatpush2.xpose.msra.mxu0 0.0
      %2738 = vmatprep.subr.mxu0 0.0
      %2739 = vmatpush2.xpose.msra.mxu0 0.0
      %2740 = vmatprep.subr.mxu0 0.0
      %2741 = vmatpush2.xpose.msra.mxu0 0.0
      %2742 = vmatprep.subr.mxu0 0.0
      %2743 = vmatpush2.xpose.msra.mxu0 0.0
      %2744 = vmatprep.subr.mxu0 0.0
      %2745 = vmatpush2.xpose.msra.mxu0 0.0
      %2746 = vmatprep.mubr.f32.mxu0 0.0
      %2747 = vmatmul.mubr.f32.gmra.mxu0 %v2674
      %v2748 = vpop.f32.mrf.mxu0
      %v2749 = vadd.f32 0.0, %v2748
      %v2750 = vpop.f32.mrf.mxu0
      %2751 = vmatprep.mubr.f32.mxu0 0.0
      %2752 = vmatmul.mubr.f32.gmra.mxu0 %v2676
      %v2753 = vpop.f32.mrf.mxu0
      %v2754 = vadd.f32 0.0, %v2753
      %v2755 = vpop.f32.mrf.mxu0
      %2756 = vdwg.mxu0
      %v2757 = vxor.u32 %v1748, 2147483648
      %v2758 = vxor.u32 %v1753, 2147483648
      %v2759 = vxor.u32 %v1839, 2147483648
      %v2760 = vxor.u32 %v1844, 2147483648
      %v2761 = vxor.u32 %v1930, 2147483648
      %v2762 = vxor.u32 %v1935, 2147483648
      %v2763 = vxor.u32 %v2021, 2147483648
      %v2764 = vxor.u32 %v2026, 2147483648
      %v2765 = vxor.u32 %v2112, 2147483648
      %v2766 = vxor.u32 %v2117, 2147483648
      %v2767 = vxor.u32 %v2203, 2147483648
      %v2768 = vxor.u32 %v2208, 2147483648
      %v2769 = vxor.u32 %v2294, 2147483648
      %v2770 = vxor.u32 %v2299, 2147483648
      %v2771 = vxor.u32 %v2385, 2147483648
      %v2772 = vxor.u32 %v2390, 2147483648
      %v2773 = vxor.u32 %v2476, 2147483648
      %v2774 = vxor.u32 %v2481, 2147483648
      %v2775 = vxor.u32 %v2567, 2147483648
      %v2776 = vxor.u32 %v2572, 2147483648
      %v2777 = vxor.u32 %v2658, 2147483648
      %v2778 = vxor.u32 %v2663, 2147483648
      %v2779 = vxor.u32 %v2749, 2147483648
      %v2780 = vxor.u32 %v2754, 2147483648
      %v2781 = vmul.f32 %v2757, 1.442695
      %v2782 = vpow.pop %v2781
      %v2783 = vmul.f32 %v2758, 1.442695
      %v2784 = vpow.pop %v2783
      %v2785 = vmul.f32 %v2759, 1.442695
      %v2786 = vpow.pop %v2785
      %v2787 = vmul.f32 %v2760, 1.442695
      %v2788 = vpow.pop %v2787
      %v2789 = vmul.f32 %v2761, 1.442695
      %v2790 = vpow.pop %v2789
      %v2791 = vmul.f32 %v2762, 1.442695
      %v2792 = vpow.pop %v2791
      %v2793 = vmul.f32 %v2763, 1.442695
      %v2794 = vpow.pop %v2793
      %v2795 = vmul.f32 %v2764, 1.442695
      %v2796 = vpow.pop %v2795
      %v2797 = vmul.f32 %v2765, 1.442695
      %v2798 = vpow.pop %v2797
      %v2799 = vmul.f32 %v2766, 1.442695
      %v2800 = vpow.pop %v2799
      %v2801 = vmul.f32 %v2767, 1.442695
      %v2802 = vpow.pop %v2801
      %v2803 = vmul.f32 %v2768, 1.442695
      %v2804 = vpow.pop %v2803
      %v2805 = vmul.f32 %v2769, 1.442695
      %v2806 = vpow.pop %v2805
      %v2807 = vmul.f32 %v2770, 1.442695
      %v2808 = vpow.pop %v2807
      %v2809 = vmul.f32 %v2771, 1.442695
      %v2810 = vpow.pop %v2809
      %v2811 = vmul.f32 %v2772, 1.442695
      %v2812 = vpow.pop %v2811
      %v2813 = vmul.f32 %v2773, 1.442695
      %v2814 = vpow.pop %v2813
      %v2815 = vmul.f32 %v2774, 1.442695
      %v2816 = vpow.pop %v2815
      %v2817 = vmul.f32 %v2775, 1.442695
      %v2818 = vpow.pop %v2817
      %v2819 = vmul.f32 %v2776, 1.442695
      %v2820 = vpow.pop %v2819
      %v2821 = vmul.f32 %v2777, 1.442695
      %v2822 = vpow.pop %v2821
      %v2823 = vmul.f32 %v2778, 1.442695
      %v2824 = vpow.pop %v2823
      %v2825 = vmul.f32 %v2779, 1.442695
      %v2826 = vpow.pop %v2825
      %v2827 = vmul.f32 %v2780, 1.442695
      %v2828 = vpow.pop %v2827
      %v2829 = vadd.f32 %v2782, 1.0
      %v2830 = vadd.f32 %v2784, 1.0
      %v2831 = vadd.f32 %v2786, 1.0
      %v2832 = vadd.f32 %v2788, 1.0
      %v2833 = vadd.f32 %v2790, 1.0
      %v2834 = vadd.f32 %v2792, 1.0
      %v2835 = vadd.f32 %v2794, 1.0
      %v2836 = vadd.f32 %v2796, 1.0
      %v2837 = vadd.f32 %v2798, 1.0
      %v2838 = vadd.f32 %v2800, 1.0
      %v2839 = vadd.f32 %v2802, 1.0
      %v2840 = vadd.f32 %v2804, 1.0
      %v2841 = vadd.f32 %v2806, 1.0
      %v2842 = vadd.f32 %v2808, 1.0
      %v2843 = vadd.f32 %v2810, 1.0
      %v2844 = vadd.f32 %v2812, 1.0
      %v2845 = vadd.f32 %v2814, 1.0
      %v2846 = vadd.f32 %v2816, 1.0
      %v2847 = vadd.f32 %v2818, 1.0
      %v2848 = vadd.f32 %v2820, 1.0
      %v2849 = vadd.f32 %v2822, 1.0
      %v2850 = vadd.f32 %v2824, 1.0
      %v2851 = vadd.f32 %v2826, 1.0
      %v2852 = vadd.f32 %v2828, 1.0
      %v2853 = vrcp.pop %v2829
      %v2854 = vmul.f32 1.0, %v2853
      %v2855 = vrcp.pop %v2830
      %v2856 = vmul.f32 1.0, %v2855
      %v2857 = vrcp.pop %v2831
      %v2858 = vmul.f32 1.0, %v2857
      %v2859 = vrcp.pop %v2832
      %v2860 = vmul.f32 1.0, %v2859
      %v2861 = vrcp.pop %v2833
      %v2862 = vmul.f32 1.0, %v2861
      %v2863 = vrcp.pop %v2834
      %v2864 = vmul.f32 1.0, %v2863
      %v2865 = vrcp.pop %v2835
      %v2866 = vmul.f32 1.0, %v2865
      %v2867 = vrcp.pop %v2836
      %v2868 = vmul.f32 1.0, %v2867
      %v2869 = vrcp.pop %v2837
      %v2870 = vmul.f32 1.0, %v2869
      %v2871 = vrcp.pop %v2838
      %v2872 = vmul.f32 1.0, %v2871
      %v2873 = vrcp.pop %v2839
      %v2874 = vmul.f32 1.0, %v2873
      %v2875 = vrcp.pop %v2840
      %v2876 = vmul.f32 1.0, %v2875
      %v2877 = vrcp.pop %v2841
      %v2878 = vmul.f32 1.0, %v2877
      %v2879 = vrcp.pop %v2842
      %v2880 = vmul.f32 1.0, %v2879
      %v2881 = vrcp.pop %v2843
      %v2882 = vmul.f32 1.0, %v2881
      %v2883 = vrcp.pop %v2844
      %v2884 = vmul.f32 1.0, %v2883
      %v2885 = vrcp.pop %v2845
      %v2886 = vmul.f32 1.0, %v2885
      %v2887 = vrcp.pop %v2846
      %v2888 = vmul.f32 1.0, %v2887
      %v2889 = vrcp.pop %v2847
      %v2890 = vmul.f32 1.0, %v2889
      %v2891 = vrcp.pop %v2848
      %v2892 = vmul.f32 1.0, %v2891
      %v2893 = vrcp.pop %v2849
      %v2894 = vmul.f32 1.0, %v2893
      %v2895 = vrcp.pop %v2850
      %v2896 = vmul.f32 1.0, %v2895
      %v2897 = vrcp.pop %v2851
      %v2898 = vmul.f32 1.0, %v2897
      %v2899 = vrcp.pop %v2852
      %v2900 = vmul.f32 1.0, %v2899
      %v2901 = vadd.f32 %v1641, %v2854
      %v2902 = vadd.f32 %v1642, %v2856
      %v2903 = vadd.f32 %v1643, %v2858
      %v2904 = vadd.f32 %v1644, %v2860
      %v2905 = vadd.f32 %v1645, %v2862
      %v2906 = vadd.f32 %v1646, %v2864
      %v2907 = vadd.f32 %v1647, %v2866
      %v2908 = vadd.f32 %v1648, %v2868
      %v2909 = vadd.f32 %v1649, %v2870
      %v2910 = vadd.f32 %v1650, %v2872
      %v2911 = vadd.f32 %v1651, %v2874
      %v2912 = vadd.f32 %v1652, %v2876
      %v2913 = vadd.f32 %v1653, %v2878
      %v2914 = vadd.f32 %v1654, %v2880
      %v2915 = vadd.f32 %v1655, %v2882
      %v2916 = vadd.f32 %v1656, %v2884
      %v2917 = vadd.f32 %v1657, %v2886
      %v2918 = vadd.f32 %v1658, %v2888
      %v2919 = vadd.f32 %v1659, %v2890
      %v2920 = vadd.f32 %v1660, %v2892
      %v2921 = vadd.f32 %v1661, %v2894
      %v2922 = vadd.f32 %v1662, %v2896
      %v2923 = vadd.f32 %v1663, %v2898
      %v2924 = vadd.f32 %v1664, %v2900
      %2925 = vrot.lane.b32.xlu0 %v310, 120
      %v2926 = vpop.permute.xlu0 %2925
      %2927 = vrot.lane.b32.xlu0 %v315, 120
      %v2928 = vpop.permute.xlu0 %2927
      %2929 = vrot.lane.b32.xlu0 %v310, 104
      %v2930 = vpop.permute.xlu0 %2929
      %2931 = vrot.lane.b32.xlu0 %v315, 104
      %v2932 = vpop.permute.xlu0 %2931
      %v2933 = vsel %vm434, %v2926, 0
      %v2935 = vsel %vm434, %v2928, 0
      %v2937 = vsel %vm434, %v2930, 0
      %v2939 = vsel %vm434, %v2932, 0
      %2941 = vmatprep.subr.mxu0 0.0
      %2942 = vmatpush1.xpose.msra.mxu0 0.0
      %2943 = vmatprep.subr.mxu0 0.0
      %2944 = vmatpush1.xpose.msra.mxu0 0.0
      %2945 = vmatprep.subr.mxu0 0.0
      %2946 = vmatpush1.xpose.msra.mxu0 0.0
      %2947 = vmatprep.subr.mxu0 0.0
      %2948 = vmatpush1.xpose.msra.mxu0 0.0
      %2949 = vmatprep.subr.mxu0 0.0
      %2950 = vmatpush1.xpose.msra.mxu0 0.0
      %2951 = vmatprep.subr.mxu0 0.0
      %2952 = vmatpush1.xpose.msra.mxu0 0.0
      %2953 = vmatprep.subr.mxu0 0.0
      %2954 = vmatpush1.xpose.msra.mxu0 0.0
      %2955 = vmatprep.subr.mxu0 0.0
      %2956 = vmatpush1.xpose.msra.mxu0 0.0
      %2957 = vmatprep.subr.mxu0 0.0
      %2958 = vmatpush1.xpose.msra.mxu0 0.0
      %2959 = vmatprep.subr.mxu0 0.0
      %2960 = vmatpush1.xpose.msra.mxu0 0.0
      %2961 = vmatprep.subr.mxu0 0.0
      %2962 = vmatpush1.xpose.msra.mxu0 0.0
      %2963 = vmatprep.subr.mxu0 0.0
      %2964 = vmatpush1.xpose.msra.mxu0 0.0
      %2965 = vmatprep.subr.mxu0 0.0
      %2966 = vmatpush1.xpose.msra.mxu0 0.0
      %2967 = vmatprep.subr.mxu0 0.0
      %2968 = vmatpush1.xpose.msra.mxu0 0.0
      %2969 = vmatprep.subr.mxu0 0.0
      %2970 = vmatpush1.xpose.msra.mxu0 %v2939
      %2971 = vmatprep.subr.mxu0 0.0
      %2972 = vmatpush1.xpose.msra.mxu0 %v2937
      %2973 = vmatprep.subr.mxu0 0.0
      %2974 = vmatpush2.xpose.msra.mxu0 0.0
      %2975 = vmatprep.subr.mxu0 0.0
      %2976 = vmatpush2.xpose.msra.mxu0 0.0
      %2977 = vmatprep.subr.mxu0 0.0
      %2978 = vmatpush2.xpose.msra.mxu0 0.0
      %2979 = vmatprep.subr.mxu0 0.0
      %2980 = vmatpush2.xpose.msra.mxu0 0.0
      %2981 = vmatprep.subr.mxu0 0.0
      %2982 = vmatpush2.xpose.msra.mxu0 0.0
      %2983 = vmatprep.subr.mxu0 0.0
      %2984 = vmatpush2.xpose.msra.mxu0 0.0
      %2985 = vmatprep.subr.mxu0 0.0
      %2986 = vmatpush2.xpose.msra.mxu0 0.0
      %2987 = vmatprep.subr.mxu0 0.0
      %2988 = vmatpush2.xpose.msra.mxu0 0.0
      %2989 = vmatprep.subr.mxu0 0.0
      %2990 = vmatpush2.xpose.msra.mxu0 0.0
      %2991 = vmatprep.subr.mxu0 0.0
      %2992 = vmatpush2.xpose.msra.mxu0 0.0
      %2993 = vmatprep.subr.mxu0 0.0
      %2994 = vmatpush2.xpose.msra.mxu0 0.0
      %2995 = vmatprep.subr.mxu0 0.0
      %2996 = vmatpush2.xpose.msra.mxu0 0.0
      %2997 = vmatprep.subr.mxu0 0.0
      %2998 = vmatpush2.xpose.msra.mxu0 0.0
      %2999 = vmatprep.subr.mxu0 0.0
      %3000 = vmatpush2.xpose.msra.mxu0 0.0
      %3001 = vmatprep.subr.mxu0 0.0
      %3002 = vmatpush2.xpose.msra.mxu0 0.0
      %3003 = vmatprep.subr.mxu0 0.0
      %3004 = vmatpush2.xpose.msra.mxu0 0.0
      %3005 = vmatprep.mubr.f32.mxu0 0.0
      %3006 = vmatmul.mubr.f32.gmra.mxu0 %v2933
      %v3007 = vpop.f32.mrf.mxu0
      %v3008 = vadd.f32 0.0, %v3007
      %v3009 = vpop.f32.mrf.mxu0
      %3010 = vmatprep.mubr.f32.mxu0 0.0
      %3011 = vmatmul.mubr.f32.gmra.mxu0 %v2935
      %v3012 = vpop.f32.mrf.mxu0
      %v3013 = vadd.f32 0.0, %v3012
      %v3014 = vpop.f32.mrf.mxu0
      %3015 = vdwg.mxu0
      %3016 = vrot.lane.b32.xlu0 %v320, 120
      %v3017 = vpop.permute.xlu0 %3016
      %3018 = vrot.lane.b32.xlu0 %v325, 120
      %v3019 = vpop.permute.xlu0 %3018
      %3020 = vrot.lane.b32.xlu0 %v320, 104
      %v3021 = vpop.permute.xlu0 %3020
      %3022 = vrot.lane.b32.xlu0 %v325, 104
      %v3023 = vpop.permute.xlu0 %3022
      %v3024 = vsel %vm434, %v3017, 0
      %v3026 = vsel %vm434, %v3019, 0
      %v3028 = vsel %vm434, %v3021, 0
      %v3030 = vsel %vm434, %v3023, 0
      %3032 = vmatprep.subr.mxu0 0.0
      %3033 = vmatpush1.xpose.msra.mxu0 0.0
      %3034 = vmatprep.subr.mxu0 0.0
      %3035 = vmatpush1.xpose.msra.mxu0 0.0
      %3036 = vmatprep.subr.mxu0 0.0
      %3037 = vmatpush1.xpose.msra.mxu0 0.0
      %3038 = vmatprep.subr.mxu0 0.0
      %3039 = vmatpush1.xpose.msra.mxu0 0.0
      %3040 = vmatprep.subr.mxu0 0.0
      %3041 = vmatpush1.xpose.msra.mxu0 0.0
      %3042 = vmatprep.subr.mxu0 0.0
      %3043 = vmatpush1.xpose.msra.mxu0 0.0
      %3044 = vmatprep.subr.mxu0 0.0
      %3045 = vmatpush1.xpose.msra.mxu0 0.0
      %3046 = vmatprep.subr.mxu0 0.0
      %3047 = vmatpush1.xpose.msra.mxu0 0.0
      %3048 = vmatprep.subr.mxu0 0.0
      %3049 = vmatpush1.xpose.msra.mxu0 0.0
      %3050 = vmatprep.subr.mxu0 0.0
      %3051 = vmatpush1.xpose.msra.mxu0 0.0
      %3052 = vmatprep.subr.mxu0 0.0
      %3053 = vmatpush1.xpose.msra.mxu0 0.0
      %3054 = vmatprep.subr.mxu0 0.0
      %3055 = vmatpush1.xpose.msra.mxu0 0.0
      %3056 = vmatprep.subr.mxu0 0.0
      %3057 = vmatpush1.xpose.msra.mxu0 0.0
      %3058 = vmatprep.subr.mxu0 0.0
      %3059 = vmatpush1.xpose.msra.mxu0 0.0
      %3060 = vmatprep.subr.mxu0 0.0
      %3061 = vmatpush1.xpose.msra.mxu0 %v3030
      %3062 = vmatprep.subr.mxu0 0.0
      %3063 = vmatpush1.xpose.msra.mxu0 %v3028
      %3064 = vmatprep.subr.mxu0 0.0
      %3065 = vmatpush2.xpose.msra.mxu0 0.0
      %3066 = vmatprep.subr.mxu0 0.0
      %3067 = vmatpush2.xpose.msra.mxu0 0.0
      %3068 = vmatprep.subr.mxu0 0.0
      %3069 = vmatpush2.xpose.msra.mxu0 0.0
      %3070 = vmatprep.subr.mxu0 0.0
      %3071 = vmatpush2.xpose.msra.mxu0 0.0
      %3072 = vmatprep.subr.mxu0 0.0
      %3073 = vmatpush2.xpose.msra.mxu0 0.0
      %3074 = vmatprep.subr.mxu0 0.0
      %3075 = vmatpush2.xpose.msra.mxu0 0.0
      %3076 = vmatprep.subr.mxu0 0.0
      %3077 = vmatpush2.xpose.msra.mxu0 0.0
      %3078 = vmatprep.subr.mxu0 0.0
      %3079 = vmatpush2.xpose.msra.mxu0 0.0
      %3080 = vmatprep.subr.mxu0 0.0
      %3081 = vmatpush2.xpose.msra.mxu0 0.0
      %3082 = vmatprep.subr.mxu0 0.0
      %3083 = vmatpush2.xpose.msra.mxu0 0.0
      %3084 = vmatprep.subr.mxu0 0.0
      %3085 = vmatpush2.xpose.msra.mxu0 0.0
      %3086 = vmatprep.subr.mxu0 0.0
      %3087 = vmatpush2.xpose.msra.mxu0 0.0
      %3088 = vmatprep.subr.mxu0 0.0
      %3089 = vmatpush2.xpose.msra.mxu0 0.0
      %3090 = vmatprep.subr.mxu0 0.0
      %3091 = vmatpush2.xpose.msra.mxu0 0.0
      %3092 = vmatprep.subr.mxu0 0.0
      %3093 = vmatpush2.xpose.msra.mxu0 0.0
      %3094 = vmatprep.subr.mxu0 0.0
      %3095 = vmatpush2.xpose.msra.mxu0 0.0
      %3096 = vmatprep.mubr.f32.mxu0 0.0
      %3097 = vmatmul.mubr.f32.gmra.mxu0 %v3024
      %v3098 = vpop.f32.mrf.mxu0
      %v3099 = vadd.f32 0.0, %v3098
      %v3100 = vpop.f32.mrf.mxu0
      %3101 = vmatprep.mubr.f32.mxu0 0.0
      %3102 = vmatmul.mubr.f32.gmra.mxu0 %v3026
      %v3103 = vpop.f32.mrf.mxu0
      %v3104 = vadd.f32 0.0, %v3103
      %v3105 = vpop.f32.mrf.mxu0
      %3106 = vdwg.mxu0
      %3107 = vrot.lane.b32.xlu0 %v330, 120
      %v3108 = vpop.permute.xlu0 %3107
      %3109 = vrot.lane.b32.xlu0 %v335, 120
      %v3110 = vpop.permute.xlu0 %3109
      %3111 = vrot.lane.b32.xlu0 %v330, 104
      %v3112 = vpop.permute.xlu0 %3111
      %3113 = vrot.lane.b32.xlu0 %v335, 104
      %v3114 = vpop.permute.xlu0 %3113
      %v3115 = vsel %vm434, %v3108, 0
      %v3117 = vsel %vm434, %v3110, 0
      %v3119 = vsel %vm434, %v3112, 0
      %v3121 = vsel %vm434, %v3114, 0
      %3123 = vmatprep.subr.mxu0 0.0
      %3124 = vmatpush1.xpose.msra.mxu0 0.0
      %3125 = vmatprep.subr.mxu0 0.0
      %3126 = vmatpush1.xpose.msra.mxu0 0.0
      %3127 = vmatprep.subr.mxu0 0.0
      %3128 = vmatpush1.xpose.msra.mxu0 0.0
      %3129 = vmatprep.subr.mxu0 0.0
      %3130 = vmatpush1.xpose.msra.mxu0 0.0
      %3131 = vmatprep.subr.mxu0 0.0
      %3132 = vmatpush1.xpose.msra.mxu0 0.0
      %3133 = vmatprep.subr.mxu0 0.0
      %3134 = vmatpush1.xpose.msra.mxu0 0.0
      %3135 = vmatprep.subr.mxu0 0.0
      %3136 = vmatpush1.xpose.msra.mxu0 0.0
      %3137 = vmatprep.subr.mxu0 0.0
      %3138 = vmatpush1.xpose.msra.mxu0 0.0
      %3139 = vmatprep.subr.mxu0 0.0
      %3140 = vmatpush1.xpose.msra.mxu0 0.0
      %3141 = vmatprep.subr.mxu0 0.0
      %3142 = vmatpush1.xpose.msra.mxu0 0.0
      %3143 = vmatprep.subr.mxu0 0.0
      %3144 = vmatpush1.xpose.msra.mxu0 0.0
      %3145 = vmatprep.subr.mxu0 0.0
      %3146 = vmatpush1.xpose.msra.mxu0 0.0
      %3147 = vmatprep.subr.mxu0 0.0
      %3148 = vmatpush1.xpose.msra.mxu0 0.0
      %3149 = vmatprep.subr.mxu0 0.0
      %3150 = vmatpush1.xpose.msra.mxu0 0.0
      %3151 = vmatprep.subr.mxu0 0.0
      %3152 = vmatpush1.xpose.msra.mxu0 %v3121
      %3153 = vmatprep.subr.mxu0 0.0
      %3154 = vmatpush1.xpose.msra.mxu0 %v3119
      %3155 = vmatprep.subr.mxu0 0.0
      %3156 = vmatpush2.xpose.msra.mxu0 0.0
      %3157 = vmatprep.subr.mxu0 0.0
      %3158 = vmatpush2.xpose.msra.mxu0 0.0
      %3159 = vmatprep.subr.mxu0 0.0
      %3160 = vmatpush2.xpose.msra.mxu0 0.0
      %3161 = vmatprep.subr.mxu0 0.0
      %3162 = vmatpush2.xpose.msra.mxu0 0.0
      %3163 = vmatprep.subr.mxu0 0.0
      %3164 = vmatpush2.xpose.msra.mxu0 0.0
      %3165 = vmatprep.subr.mxu0 0.0
      %3166 = vmatpush2.xpose.msra.mxu0 0.0
      %3167 = vmatprep.subr.mxu0 0.0
      %3168 = vmatpush2.xpose.msra.mxu0 0.0
      %3169 = vmatprep.subr.mxu0 0.0
      %3170 = vmatpush2.xpose.msra.mxu0 0.0
      %3171 = vmatprep.subr.mxu0 0.0
      %3172 = vmatpush2.xpose.msra.mxu0 0.0
      %3173 = vmatprep.subr.mxu0 0.0
      %3174 = vmatpush2.xpose.msra.mxu0 0.0
      %3175 = vmatprep.subr.mxu0 0.0
      %3176 = vmatpush2.xpose.msra.mxu0 0.0
      %3177 = vmatprep.subr.mxu0 0.0
      %3178 = vmatpush2.xpose.msra.mxu0 0.0
      %3179 = vmatprep.subr.mxu0 0.0
      %3180 = vmatpush2.xpose.msra.mxu0 0.0
      %3181 = vmatprep.subr.mxu0 0.0
      %3182 = vmatpush2.xpose.msra.mxu0 0.0
      %3183 = vmatprep.subr.mxu0 0.0
      %3184 = vmatpush2.xpose.msra.mxu0 0.0
      %3185 = vmatprep.subr.mxu0 0.0
      %3186 = vmatpush2.xpose.msra.mxu0 0.0
      %3187 = vmatprep.mubr.f32.mxu0 0.0
      %3188 = vmatmul.mubr.f32.gmra.mxu0 %v3115
      %v3189 = vpop.f32.mrf.mxu0
      %v3190 = vadd.f32 0.0, %v3189
      %v3191 = vpop.f32.mrf.mxu0
      %3192 = vmatprep.mubr.f32.mxu0 0.0
      %3193 = vmatmul.mubr.f32.gmra.mxu0 %v3117
      %v3194 = vpop.f32.mrf.mxu0
      %v3195 = vadd.f32 0.0, %v3194
      %v3196 = vpop.f32.mrf.mxu0
      %3197 = vdwg.mxu0
      %3198 = vrot.lane.b32.xlu0 %v340, 120
      %v3199 = vpop.permute.xlu0 %3198
      %3200 = vrot.lane.b32.xlu0 %v345, 120
      %v3201 = vpop.permute.xlu0 %3200
      %3202 = vrot.lane.b32.xlu0 %v340, 104
      %v3203 = vpop.permute.xlu0 %3202
      %3204 = vrot.lane.b32.xlu0 %v345, 104
      %v3205 = vpop.permute.xlu0 %3204
      %v3206 = vsel %vm434, %v3199, 0
      %v3208 = vsel %vm434, %v3201, 0
      %v3210 = vsel %vm434, %v3203, 0
      %v3212 = vsel %vm434, %v3205, 0
      %3214 = vmatprep.subr.mxu0 0.0
      %3215 = vmatpush1.xpose.msra.mxu0 0.0
      %3216 = vmatprep.subr.mxu0 0.0
      %3217 = vmatpush1.xpose.msra.mxu0 0.0
      %3218 = vmatprep.subr.mxu0 0.0
      %3219 = vmatpush1.xpose.msra.mxu0 0.0
      %3220 = vmatprep.subr.mxu0 0.0
      %3221 = vmatpush1.xpose.msra.mxu0 0.0
      %3222 = vmatprep.subr.mxu0 0.0
      %3223 = vmatpush1.xpose.msra.mxu0 0.0
      %3224 = vmatprep.subr.mxu0 0.0
      %3225 = vmatpush1.xpose.msra.mxu0 0.0
      %3226 = vmatprep.subr.mxu0 0.0
      %3227 = vmatpush1.xpose.msra.mxu0 0.0
      %3228 = vmatprep.subr.mxu0 0.0
      %3229 = vmatpush1.xpose.msra.mxu0 0.0
      %3230 = vmatprep.subr.mxu0 0.0
      %3231 = vmatpush1.xpose.msra.mxu0 0.0
      %3232 = vmatprep.subr.mxu0 0.0
      %3233 = vmatpush1.xpose.msra.mxu0 0.0
      %3234 = vmatprep.subr.mxu0 0.0
      %3235 = vmatpush1.xpose.msra.mxu0 0.0
      %3236 = vmatprep.subr.mxu0 0.0
      %3237 = vmatpush1.xpose.msra.mxu0 0.0
      %3238 = vmatprep.subr.mxu0 0.0
      %3239 = vmatpush1.xpose.msra.mxu0 0.0
      %3240 = vmatprep.subr.mxu0 0.0
      %3241 = vmatpush1.xpose.msra.mxu0 0.0
      %3242 = vmatprep.subr.mxu0 0.0
      %3243 = vmatpush1.xpose.msra.mxu0 %v3212
      %3244 = vmatprep.subr.mxu0 0.0
      %3245 = vmatpush1.xpose.msra.mxu0 %v3210
      %3246 = vmatprep.subr.mxu0 0.0
      %3247 = vmatpush2.xpose.msra.mxu0 0.0
      %3248 = vmatprep.subr.mxu0 0.0
      %3249 = vmatpush2.xpose.msra.mxu0 0.0
      %3250 = vmatprep.subr.mxu0 0.0
      %3251 = vmatpush2.xpose.msra.mxu0 0.0
      %3252 = vmatprep.subr.mxu0 0.0
      %3253 = vmatpush2.xpose.msra.mxu0 0.0
      %3254 = vmatprep.subr.mxu0 0.0
      %3255 = vmatpush2.xpose.msra.mxu0 0.0
      %3256 = vmatprep.subr.mxu0 0.0
      %3257 = vmatpush2.xpose.msra.mxu0 0.0
      %3258 = vmatprep.subr.mxu0 0.0
      %3259 = vmatpush2.xpose.msra.mxu0 0.0
      %3260 = vmatprep.subr.mxu0 0.0
      %3261 = vmatpush2.xpose.msra.mxu0 0.0
      %3262 = vmatprep.subr.mxu0 0.0
      %3263 = vmatpush2.xpose.msra.mxu0 0.0
      %3264 = vmatprep.subr.mxu0 0.0
      %3265 = vmatpush2.xpose.msra.mxu0 0.0
      %3266 = vmatprep.subr.mxu0 0.0
      %3267 = vmatpush2.xpose.msra.mxu0 0.0
      %3268 = vmatprep.subr.mxu0 0.0
      %3269 = vmatpush2.xpose.msra.mxu0 0.0
      %3270 = vmatprep.subr.mxu0 0.0
      %3271 = vmatpush2.xpose.msra.mxu0 0.0
      %3272 = vmatprep.subr.mxu0 0.0
      %3273 = vmatpush2.xpose.msra.mxu0 0.0
      %3274 = vmatprep.subr.mxu0 0.0
      %3275 = vmatpush2.xpose.msra.mxu0 0.0
      %3276 = vmatprep.subr.mxu0 0.0
      %3277 = vmatpush2.xpose.msra.mxu0 0.0
      %3278 = vmatprep.mubr.f32.mxu0 0.0
      %3279 = vmatmul.mubr.f32.gmra.mxu0 %v3206
      %v3280 = vpop.f32.mrf.mxu0
      %v3281 = vadd.f32 0.0, %v3280
      %v3282 = vpop.f32.mrf.mxu0
      %3283 = vmatprep.mubr.f32.mxu0 0.0
      %3284 = vmatmul.mubr.f32.gmra.mxu0 %v3208
      %v3285 = vpop.f32.mrf.mxu0
      %v3286 = vadd.f32 0.0, %v3285
      %v3287 = vpop.f32.mrf.mxu0
      %3288 = vdwg.mxu0
      %3289 = vrot.lane.b32.xlu0 %v350, 120
      %v3290 = vpop.permute.xlu0 %3289
      %3291 = vrot.lane.b32.xlu0 %v355, 120
      %v3292 = vpop.permute.xlu0 %3291
      %3293 = vrot.lane.b32.xlu0 %v350, 104
      %v3294 = vpop.permute.xlu0 %3293
      %3295 = vrot.lane.b32.xlu0 %v355, 104
      %v3296 = vpop.permute.xlu0 %3295
      %v3297 = vsel %vm434, %v3290, 0
      %v3299 = vsel %vm434, %v3292, 0
      %v3301 = vsel %vm434, %v3294, 0
      %v3303 = vsel %vm434, %v3296, 0
      %3305 = vmatprep.subr.mxu0 0.0
      %3306 = vmatpush1.xpose.msra.mxu0 0.0
      %3307 = vmatprep.subr.mxu0 0.0
      %3308 = vmatpush1.xpose.msra.mxu0 0.0
      %3309 = vmatprep.subr.mxu0 0.0
      %3310 = vmatpush1.xpose.msra.mxu0 0.0
      %3311 = vmatprep.subr.mxu0 0.0
      %3312 = vmatpush1.xpose.msra.mxu0 0.0
      %3313 = vmatprep.subr.mxu0 0.0
      %3314 = vmatpush1.xpose.msra.mxu0 0.0
      %3315 = vmatprep.subr.mxu0 0.0
      %3316 = vmatpush1.xpose.msra.mxu0 0.0
      %3317 = vmatprep.subr.mxu0 0.0
      %3318 = vmatpush1.xpose.msra.mxu0 0.0
      %3319 = vmatprep.subr.mxu0 0.0
      %3320 = vmatpush1.xpose.msra.mxu0 0.0
      %3321 = vmatprep.subr.mxu0 0.0
      %3322 = vmatpush1.xpose.msra.mxu0 0.0
      %3323 = vmatprep.subr.mxu0 0.0
      %3324 = vmatpush1.xpose.msra.mxu0 0.0
      %3325 = vmatprep.subr.mxu0 0.0
      %3326 = vmatpush1.xpose.msra.mxu0 0.0
      %3327 = vmatprep.subr.mxu0 0.0
      %3328 = vmatpush1.xpose.msra.mxu0 0.0
      %3329 = vmatprep.subr.mxu0 0.0
      %3330 = vmatpush1.xpose.msra.mxu0 0.0
      %3331 = vmatprep.subr.mxu0 0.0
      %3332 = vmatpush1.xpose.msra.mxu0 0.0
      %3333 = vmatprep.subr.mxu0 0.0
      %3334 = vmatpush1.xpose.msra.mxu0 %v3303
      %3335 = vmatprep.subr.mxu0 0.0
      %3336 = vmatpush1.xpose.msra.mxu0 %v3301
      %3337 = vmatprep.subr.mxu0 0.0
      %3338 = vmatpush2.xpose.msra.mxu0 0.0
      %3339 = vmatprep.subr.mxu0 0.0
      %3340 = vmatpush2.xpose.msra.mxu0 0.0
      %3341 = vmatprep.subr.mxu0 0.0
      %3342 = vmatpush2.xpose.msra.mxu0 0.0
      %3343 = vmatprep.subr.mxu0 0.0
      %3344 = vmatpush2.xpose.msra.mxu0 0.0
      %3345 = vmatprep.subr.mxu0 0.0
      %3346 = vmatpush2.xpose.msra.mxu0 0.0
      %3347 = vmatprep.subr.mxu0 0.0
      %3348 = vmatpush2.xpose.msra.mxu0 0.0
      %3349 = vmatprep.subr.mxu0 0.0
      %3350 = vmatpush2.xpose.msra.mxu0 0.0
      %3351 = vmatprep.subr.mxu0 0.0
      %3352 = vmatpush2.xpose.msra.mxu0 0.0
      %3353 = vmatprep.subr.mxu0 0.0
      %3354 = vmatpush2.xpose.msra.mxu0 0.0
      %3355 = vmatprep.subr.mxu0 0.0
      %3356 = vmatpush2.xpose.msra.mxu0 0.0
      %3357 = vmatprep.subr.mxu0 0.0
      %3358 = vmatpush2.xpose.msra.mxu0 0.0
      %3359 = vmatprep.subr.mxu0 0.0
      %3360 = vmatpush2.xpose.msra.mxu0 0.0
      %3361 = vmatprep.subr.mxu0 0.0
      %3362 = vmatpush2.xpose.msra.mxu0 0.0
      %3363 = vmatprep.subr.mxu0 0.0
      %3364 = vmatpush2.xpose.msra.mxu0 0.0
      %3365 = vmatprep.subr.mxu0 0.0
      %3366 = vmatpush2.xpose.msra.mxu0 0.0
      %3367 = vmatprep.subr.mxu0 0.0
      %3368 = vmatpush2.xpose.msra.mxu0 0.0
      %3369 = vmatprep.mubr.f32.mxu0 0.0
      %3370 = vmatmul.mubr.f32.gmra.mxu0 %v3297
      %v3371 = vpop.f32.mrf.mxu0
      %v3372 = vadd.f32 0.0, %v3371
      %v3373 = vpop.f32.mrf.mxu0
      %3374 = vmatprep.mubr.f32.mxu0 0.0
      %3375 = vmatmul.mubr.f32.gmra.mxu0 %v3299
      %v3376 = vpop.f32.mrf.mxu0
      %v3377 = vadd.f32 0.0, %v3376
      %v3378 = vpop.f32.mrf.mxu0
      %3379 = vdwg.mxu0
      %3380 = vrot.lane.b32.xlu0 %v360, 120
      %v3381 = vpop.permute.xlu0 %3380
      %3382 = vrot.lane.b32.xlu0 %v365, 120
      %v3383 = vpop.permute.xlu0 %3382
      %3384 = vrot.lane.b32.xlu0 %v360, 104
      %v3385 = vpop.permute.xlu0 %3384
      %3386 = vrot.lane.b32.xlu0 %v365, 104
      %v3387 = vpop.permute.xlu0 %3386
      %v3388 = vsel %vm434, %v3381, 0
      %v3390 = vsel %vm434, %v3383, 0
      %v3392 = vsel %vm434, %v3385, 0
      %v3394 = vsel %vm434, %v3387, 0
      %3396 = vmatprep.subr.mxu0 0.0
      %3397 = vmatpush1.xpose.msra.mxu0 0.0
      %3398 = vmatprep.subr.mxu0 0.0
      %3399 = vmatpush1.xpose.msra.mxu0 0.0
      %3400 = vmatprep.subr.mxu0 0.0
      %3401 = vmatpush1.xpose.msra.mxu0 0.0
      %3402 = vmatprep.subr.mxu0 0.0
      %3403 = vmatpush1.xpose.msra.mxu0 0.0
      %3404 = vmatprep.subr.mxu0 0.0
      %3405 = vmatpush1.xpose.msra.mxu0 0.0
      %3406 = vmatprep.subr.mxu0 0.0
      %3407 = vmatpush1.xpose.msra.mxu0 0.0
      %3408 = vmatprep.subr.mxu0 0.0
      %3409 = vmatpush1.xpose.msra.mxu0 0.0
      %3410 = vmatprep.subr.mxu0 0.0
      %3411 = vmatpush1.xpose.msra.mxu0 0.0
      %3412 = vmatprep.subr.mxu0 0.0
      %3413 = vmatpush1.xpose.msra.mxu0 0.0
      %3414 = vmatprep.subr.mxu0 0.0
      %3415 = vmatpush1.xpose.msra.mxu0 0.0
      %3416 = vmatprep.subr.mxu0 0.0
      %3417 = vmatpush1.xpose.msra.mxu0 0.0
      %3418 = vmatprep.subr.mxu0 0.0
      %3419 = vmatpush1.xpose.msra.mxu0 0.0
      %3420 = vmatprep.subr.mxu0 0.0
      %3421 = vmatpush1.xpose.msra.mxu0 0.0
      %3422 = vmatprep.subr.mxu0 0.0
      %3423 = vmatpush1.xpose.msra.mxu0 0.0
      %3424 = vmatprep.subr.mxu0 0.0
      %3425 = vmatpush1.xpose.msra.mxu0 %v3394
      %3426 = vmatprep.subr.mxu0 0.0
      %3427 = vmatpush1.xpose.msra.mxu0 %v3392
      %3428 = vmatprep.subr.mxu0 0.0
      %3429 = vmatpush2.xpose.msra.mxu0 0.0
      %3430 = vmatprep.subr.mxu0 0.0
      %3431 = vmatpush2.xpose.msra.mxu0 0.0
      %3432 = vmatprep.subr.mxu0 0.0
      %3433 = vmatpush2.xpose.msra.mxu0 0.0
      %3434 = vmatprep.subr.mxu0 0.0
      %3435 = vmatpush2.xpose.msra.mxu0 0.0
      %3436 = vmatprep.subr.mxu0 0.0
      %3437 = vmatpush2.xpose.msra.mxu0 0.0
      %3438 = vmatprep.subr.mxu0 0.0
      %3439 = vmatpush2.xpose.msra.mxu0 0.0
      %3440 = vmatprep.subr.mxu0 0.0
      %3441 = vmatpush2.xpose.msra.mxu0 0.0
      %3442 = vmatprep.subr.mxu0 0.0
      %3443 = vmatpush2.xpose.msra.mxu0 0.0
      %3444 = vmatprep.subr.mxu0 0.0
      %3445 = vmatpush2.xpose.msra.mxu0 0.0
      %3446 = vmatprep.subr.mxu0 0.0
      %3447 = vmatpush2.xpose.msra.mxu0 0.0
      %3448 = vmatprep.subr.mxu0 0.0
      %3449 = vmatpush2.xpose.msra.mxu0 0.0
      %3450 = vmatprep.subr.mxu0 0.0
      %3451 = vmatpush2.xpose.msra.mxu0 0.0
      %3452 = vmatprep.subr.mxu0 0.0
      %3453 = vmatpush2.xpose.msra.mxu0 0.0
      %3454 = vmatprep.subr.mxu0 0.0
      %3455 = vmatpush2.xpose.msra.mxu0 0.0
      %3456 = vmatprep.subr.mxu0 0.0
      %3457 = vmatpush2.xpose.msra.mxu0 0.0
      %3458 = vmatprep.subr.mxu0 0.0
      %3459 = vmatpush2.xpose.msra.mxu0 0.0
      %3460 = vmatprep.mubr.f32.mxu0 0.0
      %3461 = vmatmul.mubr.f32.gmra.mxu0 %v3388
      %v3462 = vpop.f32.mrf.mxu0
      %v3463 = vadd.f32 0.0, %v3462
      %v3464 = vpop.f32.mrf.mxu0
      %3465 = vmatprep.mubr.f32.mxu0 0.0
      %3466 = vmatmul.mubr.f32.gmra.mxu0 %v3390
      %v3467 = vpop.f32.mrf.mxu0
      %v3468 = vadd.f32 0.0, %v3467
      %v3469 = vpop.f32.mrf.mxu0
      %3470 = vdwg.mxu0
      %3471 = vrot.lane.b32.xlu0 %v370, 120
      %v3472 = vpop.permute.xlu0 %3471
      %3473 = vrot.lane.b32.xlu0 %v375, 120
      %v3474 = vpop.permute.xlu0 %3473
      %3475 = vrot.lane.b32.xlu0 %v370, 104
      %v3476 = vpop.permute.xlu0 %3475
      %3477 = vrot.lane.b32.xlu0 %v375, 104
      %v3478 = vpop.permute.xlu0 %3477
      %v3479 = vsel %vm434, %v3472, 0
      %v3481 = vsel %vm434, %v3474, 0
      %v3483 = vsel %vm434, %v3476, 0
      %v3485 = vsel %vm434, %v3478, 0
      %3487 = vmatprep.subr.mxu0 0.0
      %3488 = vmatpush1.xpose.msra.mxu0 0.0
      %3489 = vmatprep.subr.mxu0 0.0
      %3490 = vmatpush1.xpose.msra.mxu0 0.0
      %3491 = vmatprep.subr.mxu0 0.0
      %3492 = vmatpush1.xpose.msra.mxu0 0.0
      %3493 = vmatprep.subr.mxu0 0.0
      %3494 = vmatpush1.xpose.msra.mxu0 0.0
      %3495 = vmatprep.subr.mxu0 0.0
      %3496 = vmatpush1.xpose.msra.mxu0 0.0
      %3497 = vmatprep.subr.mxu0 0.0
      %3498 = vmatpush1.xpose.msra.mxu0 0.0
      %3499 = vmatprep.subr.mxu0 0.0
      %3500 = vmatpush1.xpose.msra.mxu0 0.0
      %3501 = vmatprep.subr.mxu0 0.0
      %3502 = vmatpush1.xpose.msra.mxu0 0.0
      %3503 = vmatprep.subr.mxu0 0.0
      %3504 = vmatpush1.xpose.msra.mxu0 0.0
      %3505 = vmatprep.subr.mxu0 0.0
      %3506 = vmatpush1.xpose.msra.mxu0 0.0
      %3507 = vmatprep.subr.mxu0 0.0
      %3508 = vmatpush1.xpose.msra.mxu0 0.0
      %3509 = vmatprep.subr.mxu0 0.0
      %3510 = vmatpush1.xpose.msra.mxu0 0.0
      %3511 = vmatprep.subr.mxu0 0.0
      %3512 = vmatpush1.xpose.msra.mxu0 0.0
      %3513 = vmatprep.subr.mxu0 0.0
      %3514 = vmatpush1.xpose.msra.mxu0 0.0
      %3515 = vmatprep.subr.mxu0 0.0
      %3516 = vmatpush1.xpose.msra.mxu0 %v3485
      %3517 = vmatprep.subr.mxu0 0.0
      %3518 = vmatpush1.xpose.msra.mxu0 %v3483
      %3519 = vmatprep.subr.mxu0 0.0
      %3520 = vmatpush2.xpose.msra.mxu0 0.0
      %3521 = vmatprep.subr.mxu0 0.0
      %3522 = vmatpush2.xpose.msra.mxu0 0.0
      %3523 = vmatprep.subr.mxu0 0.0
      %3524 = vmatpush2.xpose.msra.mxu0 0.0
      %3525 = vmatprep.subr.mxu0 0.0
      %3526 = vmatpush2.xpose.msra.mxu0 0.0
      %3527 = vmatprep.subr.mxu0 0.0
      %3528 = vmatpush2.xpose.msra.mxu0 0.0
      %3529 = vmatprep.subr.mxu0 0.0
      %3530 = vmatpush2.xpose.msra.mxu0 0.0
      %3531 = vmatprep.subr.mxu0 0.0
      %3532 = vmatpush2.xpose.msra.mxu0 0.0
      %3533 = vmatprep.subr.mxu0 0.0
      %3534 = vmatpush2.xpose.msra.mxu0 0.0
      %3535 = vmatprep.subr.mxu0 0.0
      %3536 = vmatpush2.xpose.msra.mxu0 0.0
      %3537 = vmatprep.subr.mxu0 0.0
      %3538 = vmatpush2.xpose.msra.mxu0 0.0
      %3539 = vmatprep.subr.mxu0 0.0
      %3540 = vmatpush2.xpose.msra.mxu0 0.0
      %3541 = vmatprep.subr.mxu0 0.0
      %3542 = vmatpush2.xpose.msra.mxu0 0.0
      %3543 = vmatprep.subr.mxu0 0.0
      %3544 = vmatpush2.xpose.msra.mxu0 0.0
      %3545 = vmatprep.subr.mxu0 0.0
      %3546 = vmatpush2.xpose.msra.mxu0 0.0
      %3547 = vmatprep.subr.mxu0 0.0
      %3548 = vmatpush2.xpose.msra.mxu0 0.0
      %3549 = vmatprep.subr.mxu0 0.0
      %3550 = vmatpush2.xpose.msra.mxu0 0.0
      %3551 = vmatprep.mubr.f32.mxu0 0.0
      %3552 = vmatmul.mubr.f32.gmra.mxu0 %v3479
      %v3553 = vpop.f32.mrf.mxu0
      %v3554 = vadd.f32 0.0, %v3553
      %v3555 = vpop.f32.mrf.mxu0
      %3556 = vmatprep.mubr.f32.mxu0 0.0
      %3557 = vmatmul.mubr.f32.gmra.mxu0 %v3481
      %v3558 = vpop.f32.mrf.mxu0
      %v3559 = vadd.f32 0.0, %v3558
      %v3560 = vpop.f32.mrf.mxu0
      %3561 = vdwg.mxu0
      %3562 = vrot.lane.b32.xlu0 %v380, 120
      %v3563 = vpop.permute.xlu0 %3562
      %3564 = vrot.lane.b32.xlu0 %v385, 120
      %v3565 = vpop.permute.xlu0 %3564
      %3566 = vrot.lane.b32.xlu0 %v380, 104
      %v3567 = vpop.permute.xlu0 %3566
      %3568 = vrot.lane.b32.xlu0 %v385, 104
      %v3569 = vpop.permute.xlu0 %3568
      %v3570 = vsel %vm434, %v3563, 0
      %v3572 = vsel %vm434, %v3565, 0
      %v3574 = vsel %vm434, %v3567, 0
      %v3576 = vsel %vm434, %v3569, 0
      %3578 = vmatprep.subr.mxu0 0.0
      %3579 = vmatpush1.xpose.msra.mxu0 0.0
      %3580 = vmatprep.subr.mxu0 0.0
      %3581 = vmatpush1.xpose.msra.mxu0 0.0
      %3582 = vmatprep.subr.mxu0 0.0
      %3583 = vmatpush1.xpose.msra.mxu0 0.0
      %3584 = vmatprep.subr.mxu0 0.0
      %3585 = vmatpush1.xpose.msra.mxu0 0.0
      %3586 = vmatprep.subr.mxu0 0.0
      %3587 = vmatpush1.xpose.msra.mxu0 0.0
      %3588 = vmatprep.subr.mxu0 0.0
      %3589 = vmatpush1.xpose.msra.mxu0 0.0
      %3590 = vmatprep.subr.mxu0 0.0
      %3591 = vmatpush1.xpose.msra.mxu0 0.0
      %3592 = vmatprep.subr.mxu0 0.0
      %3593 = vmatpush1.xpose.msra.mxu0 0.0
      %3594 = vmatprep.subr.mxu0 0.0
      %3595 = vmatpush1.xpose.msra.mxu0 0.0
      %3596 = vmatprep.subr.mxu0 0.0
      %3597 = vmatpush1.xpose.msra.mxu0 0.0
      %3598 = vmatprep.subr.mxu0 0.0
      %3599 = vmatpush1.xpose.msra.mxu0 0.0
      %3600 = vmatprep.subr.mxu0 0.0
      %3601 = vmatpush1.xpose.msra.mxu0 0.0
      %3602 = vmatprep.subr.mxu0 0.0
      %3603 = vmatpush1.xpose.msra.mxu0 0.0
      %3604 = vmatprep.subr.mxu0 0.0
      %3605 = vmatpush1.xpose.msra.mxu0 0.0
      %3606 = vmatprep.subr.mxu0 0.0
      %3607 = vmatpush1.xpose.msra.mxu0 %v3576
      %3608 = vmatprep.subr.mxu0 0.0
      %3609 = vmatpush1.xpose.msra.mxu0 %v3574
      %3610 = vmatprep.subr.mxu0 0.0
      %3611 = vmatpush2.xpose.msra.mxu0 0.0
      %3612 = vmatprep.subr.mxu0 0.0
      %3613 = vmatpush2.xpose.msra.mxu0 0.0
      %3614 = vmatprep.subr.mxu0 0.0
      %3615 = vmatpush2.xpose.msra.mxu0 0.0
      %3616 = vmatprep.subr.mxu0 0.0
      %3617 = vmatpush2.xpose.msra.mxu0 0.0
      %3618 = vmatprep.subr.mxu0 0.0
      %3619 = vmatpush2.xpose.msra.mxu0 0.0
      %3620 = vmatprep.subr.mxu0 0.0
      %3621 = vmatpush2.xpose.msra.mxu0 0.0
      %3622 = vmatprep.subr.mxu0 0.0
      %3623 = vmatpush2.xpose.msra.mxu0 0.0
      %3624 = vmatprep.subr.mxu0 0.0
      %3625 = vmatpush2.xpose.msra.mxu0 0.0
      %3626 = vmatprep.subr.mxu0 0.0
      %3627 = vmatpush2.xpose.msra.mxu0 0.0
      %3628 = vmatprep.subr.mxu0 0.0
      %3629 = vmatpush2.xpose.msra.mxu0 0.0
      %3630 = vmatprep.subr.mxu0 0.0
      %3631 = vmatpush2.xpose.msra.mxu0 0.0
      %3632 = vmatprep.subr.mxu0 0.0
      %3633 = vmatpush2.xpose.msra.mxu0 0.0
      %3634 = vmatprep.subr.mxu0 0.0
      %3635 = vmatpush2.xpose.msra.mxu0 0.0
      %3636 = vmatprep.subr.mxu0 0.0
      %3637 = vmatpush2.xpose.msra.mxu0 0.0
      %3638 = vmatprep.subr.mxu0 0.0
      %3639 = vmatpush2.xpose.msra.mxu0 0.0
      %3640 = vmatprep.subr.mxu0 0.0
      %3641 = vmatpush2.xpose.msra.mxu0 0.0
      %3642 = vmatprep.mubr.f32.mxu0 0.0
      %3643 = vmatmul.mubr.f32.gmra.mxu0 %v3570
      %v3644 = vpop.f32.mrf.mxu0
      %v3645 = vadd.f32 0.0, %v3644
      %v3646 = vpop.f32.mrf.mxu0
      %3647 = vmatprep.mubr.f32.mxu0 0.0
      %3648 = vmatmul.mubr.f32.gmra.mxu0 %v3572
      %v3649 = vpop.f32.mrf.mxu0
      %v3650 = vadd.f32 0.0, %v3649
      %v3651 = vpop.f32.mrf.mxu0
      %3652 = vdwg.mxu0
      %3653 = vrot.lane.b32.xlu0 %v390, 120
      %v3654 = vpop.permute.xlu0 %3653
      %3655 = vrot.lane.b32.xlu0 %v395, 120
      %v3656 = vpop.permute.xlu0 %3655
      %3657 = vrot.lane.b32.xlu0 %v390, 104
      %v3658 = vpop.permute.xlu0 %3657
      %3659 = vrot.lane.b32.xlu0 %v395, 104
      %v3660 = vpop.permute.xlu0 %3659
      %v3661 = vsel %vm434, %v3654, 0
      %v3663 = vsel %vm434, %v3656, 0
      %v3665 = vsel %vm434, %v3658, 0
      %v3667 = vsel %vm434, %v3660, 0
      %3669 = vmatprep.subr.mxu0 0.0
      %3670 = vmatpush1.xpose.msra.mxu0 0.0
      %3671 = vmatprep.subr.mxu0 0.0
      %3672 = vmatpush1.xpose.msra.mxu0 0.0
      %3673 = vmatprep.subr.mxu0 0.0
      %3674 = vmatpush1.xpose.msra.mxu0 0.0
      %3675 = vmatprep.subr.mxu0 0.0
      %3676 = vmatpush1.xpose.msra.mxu0 0.0
      %3677 = vmatprep.subr.mxu0 0.0
      %3678 = vmatpush1.xpose.msra.mxu0 0.0
      %3679 = vmatprep.subr.mxu0 0.0
      %3680 = vmatpush1.xpose.msra.mxu0 0.0
      %3681 = vmatprep.subr.mxu0 0.0
      %3682 = vmatpush1.xpose.msra.mxu0 0.0
      %3683 = vmatprep.subr.mxu0 0.0
      %3684 = vmatpush1.xpose.msra.mxu0 0.0
      %3685 = vmatprep.subr.mxu0 0.0
      %3686 = vmatpush1.xpose.msra.mxu0 0.0
      %3687 = vmatprep.subr.mxu0 0.0
      %3688 = vmatpush1.xpose.msra.mxu0 0.0
      %3689 = vmatprep.subr.mxu0 0.0
      %3690 = vmatpush1.xpose.msra.mxu0 0.0
      %3691 = vmatprep.subr.mxu0 0.0
      %3692 = vmatpush1.xpose.msra.mxu0 0.0
      %3693 = vmatprep.subr.mxu0 0.0
      %3694 = vmatpush1.xpose.msra.mxu0 0.0
      %3695 = vmatprep.subr.mxu0 0.0
      %3696 = vmatpush1.xpose.msra.mxu0 0.0
      %3697 = vmatprep.subr.mxu0 0.0
      %3698 = vmatpush1.xpose.msra.mxu0 %v3667
      %3699 = vmatprep.subr.mxu0 0.0
      %3700 = vmatpush1.xpose.msra.mxu0 %v3665
      %3701 = vmatprep.subr.mxu0 0.0
      %3702 = vmatpush2.xpose.msra.mxu0 0.0
      %3703 = vmatprep.subr.mxu0 0.0
      %3704 = vmatpush2.xpose.msra.mxu0 0.0
      %3705 = vmatprep.subr.mxu0 0.0
      %3706 = vmatpush2.xpose.msra.mxu0 0.0
      %3707 = vmatprep.subr.mxu0 0.0
      %3708 = vmatpush2.xpose.msra.mxu0 0.0
      %3709 = vmatprep.subr.mxu0 0.0
      %3710 = vmatpush2.xpose.msra.mxu0 0.0
      %3711 = vmatprep.subr.mxu0 0.0
      %3712 = vmatpush2.xpose.msra.mxu0 0.0
      %3713 = vmatprep.subr.mxu0 0.0
      %3714 = vmatpush2.xpose.msra.mxu0 0.0
      %3715 = vmatprep.subr.mxu0 0.0
      %3716 = vmatpush2.xpose.msra.mxu0 0.0
      %3717 = vmatprep.subr.mxu0 0.0
      %3718 = vmatpush2.xpose.msra.mxu0 0.0
      %3719 = vmatprep.subr.mxu0 0.0
      %3720 = vmatpush2.xpose.msra.mxu0 0.0
      %3721 = vmatprep.subr.mxu0 0.0
      %3722 = vmatpush2.xpose.msra.mxu0 0.0
      %3723 = vmatprep.subr.mxu0 0.0
      %3724 = vmatpush2.xpose.msra.mxu0 0.0
      %3725 = vmatprep.subr.mxu0 0.0
      %3726 = vmatpush2.xpose.msra.mxu0 0.0
      %3727 = vmatprep.subr.mxu0 0.0
      %3728 = vmatpush2.xpose.msra.mxu0 0.0
      %3729 = vmatprep.subr.mxu0 0.0
      %3730 = vmatpush2.xpose.msra.mxu0 0.0
      %3731 = vmatprep.subr.mxu0 0.0
      %3732 = vmatpush2.xpose.msra.mxu0 0.0
      %3733 = vmatprep.mubr.f32.mxu0 0.0
      %3734 = vmatmul.mubr.f32.gmra.mxu0 %v3661
      %v3735 = vpop.f32.mrf.mxu0
      %v3736 = vadd.f32 0.0, %v3735
      %v3737 = vpop.f32.mrf.mxu0
      %3738 = vmatprep.mubr.f32.mxu0 0.0
      %3739 = vmatmul.mubr.f32.gmra.mxu0 %v3663
      %v3740 = vpop.f32.mrf.mxu0
      %v3741 = vadd.f32 0.0, %v3740
      %v3742 = vpop.f32.mrf.mxu0
      %3743 = vdwg.mxu0
      %3744 = vrot.lane.b32.xlu0 %v400, 120
      %v3745 = vpop.permute.xlu0 %3744
      %3746 = vrot.lane.b32.xlu0 %v405, 120
      %v3747 = vpop.permute.xlu0 %3746
      %3748 = vrot.lane.b32.xlu0 %v400, 104
      %v3749 = vpop.permute.xlu0 %3748
      %3750 = vrot.lane.b32.xlu0 %v405, 104
      %v3751 = vpop.permute.xlu0 %3750
      %v3752 = vsel %vm434, %v3745, 0
      %v3754 = vsel %vm434, %v3747, 0
      %v3756 = vsel %vm434, %v3749, 0
      %v3758 = vsel %vm434, %v3751, 0
      %3760 = vmatprep.subr.mxu0 0.0
      %3761 = vmatpush1.xpose.msra.mxu0 0.0
      %3762 = vmatprep.subr.mxu0 0.0
      %3763 = vmatpush1.xpose.msra.mxu0 0.0
      %3764 = vmatprep.subr.mxu0 0.0
      %3765 = vmatpush1.xpose.msra.mxu0 0.0
      %3766 = vmatprep.subr.mxu0 0.0
      %3767 = vmatpush1.xpose.msra.mxu0 0.0
      %3768 = vmatprep.subr.mxu0 0.0
      %3769 = vmatpush1.xpose.msra.mxu0 0.0
      %3770 = vmatprep.subr.mxu0 0.0
      %3771 = vmatpush1.xpose.msra.mxu0 0.0
      %3772 = vmatprep.subr.mxu0 0.0
      %3773 = vmatpush1.xpose.msra.mxu0 0.0
      %3774 = vmatprep.subr.mxu0 0.0
      %3775 = vmatpush1.xpose.msra.mxu0 0.0
      %3776 = vmatprep.subr.mxu0 0.0
      %3777 = vmatpush1.xpose.msra.mxu0 0.0
      %3778 = vmatprep.subr.mxu0 0.0
      %3779 = vmatpush1.xpose.msra.mxu0 0.0
      %3780 = vmatprep.subr.mxu0 0.0
      %3781 = vmatpush1.xpose.msra.mxu0 0.0
      %3782 = vmatprep.subr.mxu0 0.0
      %3783 = vmatpush1.xpose.msra.mxu0 0.0
      %3784 = vmatprep.subr.mxu0 0.0
      %3785 = vmatpush1.xpose.msra.mxu0 0.0
      %3786 = vmatprep.subr.mxu0 0.0
      %3787 = vmatpush1.xpose.msra.mxu0 0.0
      %3788 = vmatprep.subr.mxu0 0.0
      %3789 = vmatpush1.xpose.msra.mxu0 %v3758
      %3790 = vmatprep.subr.mxu0 0.0
      %3791 = vmatpush1.xpose.msra.mxu0 %v3756
      %3792 = vmatprep.subr.mxu0 0.0
      %3793 = vmatpush2.xpose.msra.mxu0 0.0
      %3794 = vmatprep.subr.mxu0 0.0
      %3795 = vmatpush2.xpose.msra.mxu0 0.0
      %3796 = vmatprep.subr.mxu0 0.0
      %3797 = vmatpush2.xpose.msra.mxu0 0.0
      %3798 = vmatprep.subr.mxu0 0.0
      %3799 = vmatpush2.xpose.msra.mxu0 0.0
      %3800 = vmatprep.subr.mxu0 0.0
      %3801 = vmatpush2.xpose.msra.mxu0 0.0
      %3802 = vmatprep.subr.mxu0 0.0
      %3803 = vmatpush2.xpose.msra.mxu0 0.0
      %3804 = vmatprep.subr.mxu0 0.0
      %3805 = vmatpush2.xpose.msra.mxu0 0.0
      %3806 = vmatprep.subr.mxu0 0.0
      %3807 = vmatpush2.xpose.msra.mxu0 0.0
      %3808 = vmatprep.subr.mxu0 0.0
      %3809 = vmatpush2.xpose.msra.mxu0 0.0
      %3810 = vmatprep.subr.mxu0 0.0
      %3811 = vmatpush2.xpose.msra.mxu0 0.0
      %3812 = vmatprep.subr.mxu0 0.0
      %3813 = vmatpush2.xpose.msra.mxu0 0.0
      %3814 = vmatprep.subr.mxu0 0.0
      %3815 = vmatpush2.xpose.msra.mxu0 0.0
      %3816 = vmatprep.subr.mxu0 0.0
      %3817 = vmatpush2.xpose.msra.mxu0 0.0
      %3818 = vmatprep.subr.mxu0 0.0
      %3819 = vmatpush2.xpose.msra.mxu0 0.0
      %3820 = vmatprep.subr.mxu0 0.0
      %3821 = vmatpush2.xpose.msra.mxu0 0.0
      %3822 = vmatprep.subr.mxu0 0.0
      %3823 = vmatpush2.xpose.msra.mxu0 0.0
      %3824 = vmatprep.mubr.f32.mxu0 0.0
      %3825 = vmatmul.mubr.f32.gmra.mxu0 %v3752
      %v3826 = vpop.f32.mrf.mxu0
      %v3827 = vadd.f32 0.0, %v3826
      %v3828 = vpop.f32.mrf.mxu0
      %3829 = vmatprep.mubr.f32.mxu0 0.0
      %3830 = vmatmul.mubr.f32.gmra.mxu0 %v3754
      %v3831 = vpop.f32.mrf.mxu0
      %v3832 = vadd.f32 0.0, %v3831
      %v3833 = vpop.f32.mrf.mxu0
      %3834 = vdwg.mxu0
      %3835 = vrot.lane.b32.xlu0 %v410, 120
      %v3836 = vpop.permute.xlu0 %3835
      %3837 = vrot.lane.b32.xlu0 %v415, 120
      %v3838 = vpop.permute.xlu0 %3837
      %3839 = vrot.lane.b32.xlu0 %v410, 104
      %v3840 = vpop.permute.xlu0 %3839
      %3841 = vrot.lane.b32.xlu0 %v415, 104
      %v3842 = vpop.permute.xlu0 %3841
      %v3843 = vsel %vm434, %v3836, 0
      %v3845 = vsel %vm434, %v3838, 0
      %v3847 = vsel %vm434, %v3840, 0
      %v3849 = vsel %vm434, %v3842, 0
      %3851 = vmatprep.subr.mxu0 0.0
      %3852 = vmatpush1.xpose.msra.mxu0 0.0
      %3853 = vmatprep.subr.mxu0 0.0
      %3854 = vmatpush1.xpose.msra.mxu0 0.0
      %3855 = vmatprep.subr.mxu0 0.0
      %3856 = vmatpush1.xpose.msra.mxu0 0.0
      %3857 = vmatprep.subr.mxu0 0.0
      %3858 = vmatpush1.xpose.msra.mxu0 0.0
      %3859 = vmatprep.subr.mxu0 0.0
      %3860 = vmatpush1.xpose.msra.mxu0 0.0
      %3861 = vmatprep.subr.mxu0 0.0
      %3862 = vmatpush1.xpose.msra.mxu0 0.0
      %3863 = vmatprep.subr.mxu0 0.0
      %3864 = vmatpush1.xpose.msra.mxu0 0.0
      %3865 = vmatprep.subr.mxu0 0.0
      %3866 = vmatpush1.xpose.msra.mxu0 0.0
      %3867 = vmatprep.subr.mxu0 0.0
      %3868 = vmatpush1.xpose.msra.mxu0 0.0
      %3869 = vmatprep.subr.mxu0 0.0
      %3870 = vmatpush1.xpose.msra.mxu0 0.0
      %3871 = vmatprep.subr.mxu0 0.0
      %3872 = vmatpush1.xpose.msra.mxu0 0.0
      %3873 = vmatprep.subr.mxu0 0.0
      %3874 = vmatpush1.xpose.msra.mxu0 0.0
      %3875 = vmatprep.subr.mxu0 0.0
      %3876 = vmatpush1.xpose.msra.mxu0 0.0
      %3877 = vmatprep.subr.mxu0 0.0
      %3878 = vmatpush1.xpose.msra.mxu0 0.0
      %3879 = vmatprep.subr.mxu0 0.0
      %3880 = vmatpush1.xpose.msra.mxu0 %v3849
      %3881 = vmatprep.subr.mxu0 0.0
      %3882 = vmatpush1.xpose.msra.mxu0 %v3847
      %3883 = vmatprep.subr.mxu0 0.0
      %3884 = vmatpush2.xpose.msra.mxu0 0.0
      %3885 = vmatprep.subr.mxu0 0.0
      %3886 = vmatpush2.xpose.msra.mxu0 0.0
      %3887 = vmatprep.subr.mxu0 0.0
      %3888 = vmatpush2.xpose.msra.mxu0 0.0
      %3889 = vmatprep.subr.mxu0 0.0
      %3890 = vmatpush2.xpose.msra.mxu0 0.0
      %3891 = vmatprep.subr.mxu0 0.0
      %3892 = vmatpush2.xpose.msra.mxu0 0.0
      %3893 = vmatprep.subr.mxu0 0.0
      %3894 = vmatpush2.xpose.msra.mxu0 0.0
      %3895 = vmatprep.subr.mxu0 0.0
      %3896 = vmatpush2.xpose.msra.mxu0 0.0
      %3897 = vmatprep.subr.mxu0 0.0
      %3898 = vmatpush2.xpose.msra.mxu0 0.0
      %3899 = vmatprep.subr.mxu0 0.0
      %3900 = vmatpush2.xpose.msra.mxu0 0.0
      %3901 = vmatprep.subr.mxu0 0.0
      %3902 = vmatpush2.xpose.msra.mxu0 0.0
      %3903 = vmatprep.subr.mxu0 0.0
      %3904 = vmatpush2.xpose.msra.mxu0 0.0
      %3905 = vmatprep.subr.mxu0 0.0
      %3906 = vmatpush2.xpose.msra.mxu0 0.0
      %3907 = vmatprep.subr.mxu0 0.0
      %3908 = vmatpush2.xpose.msra.mxu0 0.0
      %3909 = vmatprep.subr.mxu0 0.0
      %3910 = vmatpush2.xpose.msra.mxu0 0.0
      %3911 = vmatprep.subr.mxu0 0.0
      %3912 = vmatpush2.xpose.msra.mxu0 0.0
      %3913 = vmatprep.subr.mxu0 0.0
      %3914 = vmatpush2.xpose.msra.mxu0 0.0
      %3915 = vmatprep.mubr.f32.mxu0 0.0
      %3916 = vmatmul.mubr.f32.gmra.mxu0 %v3843
      %v3917 = vpop.f32.mrf.mxu0
      %v3918 = vadd.f32 0.0, %v3917
      %v3919 = vpop.f32.mrf.mxu0
      %3920 = vmatprep.mubr.f32.mxu0 0.0
      %3921 = vmatmul.mubr.f32.gmra.mxu0 %v3845
      %v3922 = vpop.f32.mrf.mxu0
      %v3923 = vadd.f32 0.0, %v3922
      %v3924 = vpop.f32.mrf.mxu0
      %3925 = vdwg.mxu0
      %3926 = vrot.lane.b32.xlu0 %v420, 120
      %v3927 = vpop.permute.xlu0 %3926
      %3928 = vrot.lane.b32.xlu0 %v425, 120
      %v3929 = vpop.permute.xlu0 %3928
      %3930 = vrot.lane.b32.xlu0 %v420, 104
      %v3931 = vpop.permute.xlu0 %3930
      %3932 = vrot.lane.b32.xlu0 %v425, 104
      %v3933 = vpop.permute.xlu0 %3932
      %v3934 = vsel %vm434, %v3927, 0
      %v3936 = vsel %vm434, %v3929, 0
      %v3938 = vsel %vm434, %v3931, 0
      %v3940 = vsel %vm434, %v3933, 0
      %3942 = vmatprep.subr.mxu0 0.0
      %3943 = vmatpush1.xpose.msra.mxu0 0.0
      %3944 = vmatprep.subr.mxu0 0.0
      %3945 = vmatpush1.xpose.msra.mxu0 0.0
      %3946 = vmatprep.subr.mxu0 0.0
      %3947 = vmatpush1.xpose.msra.mxu0 0.0
      %3948 = vmatprep.subr.mxu0 0.0
      %3949 = vmatpush1.xpose.msra.mxu0 0.0
      %3950 = vmatprep.subr.mxu0 0.0
      %3951 = vmatpush1.xpose.msra.mxu0 0.0
      %3952 = vmatprep.subr.mxu0 0.0
      %3953 = vmatpush1.xpose.msra.mxu0 0.0
      %3954 = vmatprep.subr.mxu0 0.0
      %3955 = vmatpush1.xpose.msra.mxu0 0.0
      %3956 = vmatprep.subr.mxu0 0.0
      %3957 = vmatpush1.xpose.msra.mxu0 0.0
      %3958 = vmatprep.subr.mxu0 0.0
      %3959 = vmatpush1.xpose.msra.mxu0 0.0
      %3960 = vmatprep.subr.mxu0 0.0
      %3961 = vmatpush1.xpose.msra.mxu0 0.0
      %3962 = vmatprep.subr.mxu0 0.0
      %3963 = vmatpush1.xpose.msra.mxu0 0.0
      %3964 = vmatprep.subr.mxu0 0.0
      %3965 = vmatpush1.xpose.msra.mxu0 0.0
      %3966 = vmatprep.subr.mxu0 0.0
      %3967 = vmatpush1.xpose.msra.mxu0 0.0
      %3968 = vmatprep.subr.mxu0 0.0
      %3969 = vmatpush1.xpose.msra.mxu0 0.0
      %3970 = vmatprep.subr.mxu0 0.0
      %3971 = vmatpush1.xpose.msra.mxu0 %v3940
      %3972 = vmatprep.subr.mxu0 0.0
      %3973 = vmatpush1.xpose.msra.mxu0 %v3938
      %3974 = vmatprep.subr.mxu0 0.0
      %3975 = vmatpush2.xpose.msra.mxu0 0.0
      %3976 = vmatprep.subr.mxu0 0.0
      %3977 = vmatpush2.xpose.msra.mxu0 0.0
      %3978 = vmatprep.subr.mxu0 0.0
      %3979 = vmatpush2.xpose.msra.mxu0 0.0
      %3980 = vmatprep.subr.mxu0 0.0
      %3981 = vmatpush2.xpose.msra.mxu0 0.0
      %3982 = vmatprep.subr.mxu0 0.0
      %3983 = vmatpush2.xpose.msra.mxu0 0.0
      %3984 = vmatprep.subr.mxu0 0.0
      %3985 = vmatpush2.xpose.msra.mxu0 0.0
      %3986 = vmatprep.subr.mxu0 0.0
      %3987 = vmatpush2.xpose.msra.mxu0 0.0
      %3988 = vmatprep.subr.mxu0 0.0
      %3989 = vmatpush2.xpose.msra.mxu0 0.0
      %3990 = vmatprep.subr.mxu0 0.0
      %3991 = vmatpush2.xpose.msra.mxu0 0.0
      %3992 = vmatprep.subr.mxu0 0.0
      %3993 = vmatpush2.xpose.msra.mxu0 0.0
      %3994 = vmatprep.subr.mxu0 0.0
      %3995 = vmatpush2.xpose.msra.mxu0 0.0
      %3996 = vmatprep.subr.mxu0 0.0
      %3997 = vmatpush2.xpose.msra.mxu0 0.0
      %3998 = vmatprep.subr.mxu0 0.0
      %3999 = vmatpush2.xpose.msra.mxu0 0.0
      %4000 = vmatprep.subr.mxu0 0.0
      %4001 = vmatpush2.xpose.msra.mxu0 0.0
      %4002 = vmatprep.subr.mxu0 0.0
      %4003 = vmatpush2.xpose.msra.mxu0 0.0
      %4004 = vmatprep.subr.mxu0 0.0
      %4005 = vmatpush2.xpose.msra.mxu0 0.0
      %4006 = vmatprep.mubr.f32.mxu0 0.0
      %4007 = vmatmul.mubr.f32.gmra.mxu0 %v3934
      %v4008 = vpop.f32.mrf.mxu0
      %v4009 = vadd.f32 0.0, %v4008
      %v4010 = vpop.f32.mrf.mxu0
      %4011 = vmatprep.mubr.f32.mxu0 0.0
      %4012 = vmatmul.mubr.f32.gmra.mxu0 %v3936
      %v4013 = vpop.f32.mrf.mxu0
      %v4014 = vadd.f32 0.0, %v4013
      %v4015 = vpop.f32.mrf.mxu0
      %4016 = vdwg.mxu0
      %v4017 = vxor.u32 %v3008, 2147483648
      %v4018 = vxor.u32 %v3013, 2147483648
      %v4019 = vxor.u32 %v3099, 2147483648
      %v4020 = vxor.u32 %v3104, 2147483648
      %v4021 = vxor.u32 %v3190, 2147483648
      %v4022 = vxor.u32 %v3195, 2147483648
      %v4023 = vxor.u32 %v3281, 2147483648
      %v4024 = vxor.u32 %v3286, 2147483648
      %v4025 = vxor.u32 %v3372, 2147483648
      %v4026 = vxor.u32 %v3377, 2147483648
      %v4027 = vxor.u32 %v3463, 2147483648
      %v4028 = vxor.u32 %v3468, 2147483648
      %v4029 = vxor.u32 %v3554, 2147483648
      %v4030 = vxor.u32 %v3559, 2147483648
      %v4031 = vxor.u32 %v3645, 2147483648
      %v4032 = vxor.u32 %v3650, 2147483648
      %v4033 = vxor.u32 %v3736, 2147483648
      %v4034 = vxor.u32 %v3741, 2147483648
      %v4035 = vxor.u32 %v3827, 2147483648
      %v4036 = vxor.u32 %v3832, 2147483648
      %v4037 = vxor.u32 %v3918, 2147483648
      %v4038 = vxor.u32 %v3923, 2147483648
      %v4039 = vxor.u32 %v4009, 2147483648
      %v4040 = vxor.u32 %v4014, 2147483648
      %v4041 = vmul.f32 %v4017, 1.442695
      %v4042 = vpow.pop %v4041
      %v4043 = vmul.f32 %v4018, 1.442695
      %v4044 = vpow.pop %v4043
      %v4045 = vmul.f32 %v4019, 1.442695
      %v4046 = vpow.pop %v4045
      %v4047 = vmul.f32 %v4020, 1.442695
      %v4048 = vpow.pop %v4047
      %v4049 = vmul.f32 %v4021, 1.442695
      %v4050 = vpow.pop %v4049
      %v4051 = vmul.f32 %v4022, 1.442695
      %v4052 = vpow.pop %v4051
      %v4053 = vmul.f32 %v4023, 1.442695
      %v4054 = vpow.pop %v4053
      %v4055 = vmul.f32 %v4024, 1.442695
      %v4056 = vpow.pop %v4055
      %v4057 = vmul.f32 %v4025, 1.442695
      %v4058 = vpow.pop %v4057
      %v4059 = vmul.f32 %v4026, 1.442695
      %v4060 = vpow.pop %v4059
      %v4061 = vmul.f32 %v4027, 1.442695
      %v4062 = vpow.pop %v4061
      %v4063 = vmul.f32 %v4028, 1.442695
      %v4064 = vpow.pop %v4063
      %v4065 = vmul.f32 %v4029, 1.442695
      %v4066 = vpow.pop %v4065
      %v4067 = vmul.f32 %v4030, 1.442695
      %v4068 = vpow.pop %v4067
      %v4069 = vmul.f32 %v4031, 1.442695
      %v4070 = vpow.pop %v4069
      %v4071 = vmul.f32 %v4032, 1.442695
      %v4072 = vpow.pop %v4071
      %v4073 = vmul.f32 %v4033, 1.442695
      %v4074 = vpow.pop %v4073
      %v4075 = vmul.f32 %v4034, 1.442695
      %v4076 = vpow.pop %v4075
      %v4077 = vmul.f32 %v4035, 1.442695
      %v4078 = vpow.pop %v4077
      %v4079 = vmul.f32 %v4036, 1.442695
      %v4080 = vpow.pop %v4079
      %v4081 = vmul.f32 %v4037, 1.442695
      %v4082 = vpow.pop %v4081
      %v4083 = vmul.f32 %v4038, 1.442695
      %v4084 = vpow.pop %v4083
      %v4085 = vmul.f32 %v4039, 1.442695
      %v4086 = vpow.pop %v4085
      %v4087 = vmul.f32 %v4040, 1.442695
      %v4088 = vpow.pop %v4087
      %v4089 = vadd.f32 %v4042, 1.0
      %v4090 = vadd.f32 %v4044, 1.0
      %v4091 = vadd.f32 %v4046, 1.0
      %v4092 = vadd.f32 %v4048, 1.0
      %v4093 = vadd.f32 %v4050, 1.0
      %v4094 = vadd.f32 %v4052, 1.0
      %v4095 = vadd.f32 %v4054, 1.0
      %v4096 = vadd.f32 %v4056, 1.0
      %v4097 = vadd.f32 %v4058, 1.0
      %v4098 = vadd.f32 %v4060, 1.0
      %v4099 = vadd.f32 %v4062, 1.0
      %v4100 = vadd.f32 %v4064, 1.0
      %v4101 = vadd.f32 %v4066, 1.0
      %v4102 = vadd.f32 %v4068, 1.0
      %v4103 = vadd.f32 %v4070, 1.0
      %v4104 = vadd.f32 %v4072, 1.0
      %v4105 = vadd.f32 %v4074, 1.0
      %v4106 = vadd.f32 %v4076, 1.0
      %v4107 = vadd.f32 %v4078, 1.0
      %v4108 = vadd.f32 %v4080, 1.0
      %v4109 = vadd.f32 %v4082, 1.0
      %v4110 = vadd.f32 %v4084, 1.0
      %v4111 = vadd.f32 %v4086, 1.0
      %v4112 = vadd.f32 %v4088, 1.0
      %v4113 = vrcp.pop %v4089
      %v4114 = vmul.f32 1.0, %v4113
      %v4115 = vrcp.pop %v4090
      %v4116 = vmul.f32 1.0, %v4115
      %v4117 = vrcp.pop %v4091
      %v4118 = vmul.f32 1.0, %v4117
      %v4119 = vrcp.pop %v4092
      %v4120 = vmul.f32 1.0, %v4119
      %v4121 = vrcp.pop %v4093
      %v4122 = vmul.f32 1.0, %v4121
      %v4123 = vrcp.pop %v4094
      %v4124 = vmul.f32 1.0, %v4123
      %v4125 = vrcp.pop %v4095
      %v4126 = vmul.f32 1.0, %v4125
      %v4127 = vrcp.pop %v4096
      %v4128 = vmul.f32 1.0, %v4127
      %v4129 = vrcp.pop %v4097
      %v4130 = vmul.f32 1.0, %v4129
      %v4131 = vrcp.pop %v4098
      %v4132 = vmul.f32 1.0, %v4131
      %v4133 = vrcp.pop %v4099
      %v4134 = vmul.f32 1.0, %v4133
      %v4135 = vrcp.pop %v4100
      %v4136 = vmul.f32 1.0, %v4135
      %v4137 = vrcp.pop %v4101
      %v4138 = vmul.f32 1.0, %v4137
      %v4139 = vrcp.pop %v4102
      %v4140 = vmul.f32 1.0, %v4139
      %v4141 = vrcp.pop %v4103
      %v4142 = vmul.f32 1.0, %v4141
      %v4143 = vrcp.pop %v4104
      %v4144 = vmul.f32 1.0, %v4143
      %v4145 = vrcp.pop %v4105
      %v4146 = vmul.f32 1.0, %v4145
      %v4147 = vrcp.pop %v4106
      %v4148 = vmul.f32 1.0, %v4147
      %v4149 = vrcp.pop %v4107
      %v4150 = vmul.f32 1.0, %v4149
      %v4151 = vrcp.pop %v4108
      %v4152 = vmul.f32 1.0, %v4151
      %v4153 = vrcp.pop %v4109
      %v4154 = vmul.f32 1.0, %v4153
      %v4155 = vrcp.pop %v4110
      %v4156 = vmul.f32 1.0, %v4155
      %v4157 = vrcp.pop %v4111
      %v4158 = vmul.f32 1.0, %v4157
      %v4159 = vrcp.pop %v4112
      %v4160 = vmul.f32 1.0, %v4159
      %v4161 = vadd.f32 %v2901, %v4114
      %v4162 = vadd.f32 %v2902, %v4116
      %v4163 = vadd.f32 %v2903, %v4118
      %v4164 = vadd.f32 %v2904, %v4120
      %v4165 = vadd.f32 %v2905, %v4122
      %v4166 = vadd.f32 %v2906, %v4124
      %v4167 = vadd.f32 %v2907, %v4126
      %v4168 = vadd.f32 %v2908, %v4128
      %v4169 = vadd.f32 %v2909, %v4130
      %v4170 = vadd.f32 %v2910, %v4132
      %v4171 = vadd.f32 %v2911, %v4134
      %v4172 = vadd.f32 %v2912, %v4136
      %v4173 = vadd.f32 %v2913, %v4138
      %v4174 = vadd.f32 %v2914, %v4140
      %v4175 = vadd.f32 %v2915, %v4142
      %v4176 = vadd.f32 %v2916, %v4144
      %v4177 = vadd.f32 %v2917, %v4146
      %v4178 = vadd.f32 %v2918, %v4148
      %v4179 = vadd.f32 %v2919, %v4150
      %v4180 = vadd.f32 %v2920, %v4152
      %v4181 = vadd.f32 %v2921, %v4154
      %v4182 = vadd.f32 %v2922, %v4156
      %v4183 = vadd.f32 %v2923, %v4158
      %v4184 = vadd.f32 %v2924, %v4160
      %4185 = vrot.lane.b32.xlu0 %v310, 116
      %v4186 = vpop.permute.xlu0 %4185
      %4187 = vrot.lane.b32.xlu0 %v315, 116
      %v4188 = vpop.permute.xlu0 %4187
      %4189 = vrot.lane.b32.xlu0 %v310, 100
      %v4190 = vpop.permute.xlu0 %4189
      %4191 = vrot.lane.b32.xlu0 %v315, 100
      %v4192 = vpop.permute.xlu0 %4191
      %v4193 = vsel %vm434, %v4186, 0
      %v4195 = vsel %vm434, %v4188, 0
      %v4197 = vsel %vm434, %v4190, 0
      %v4199 = vsel %vm434, %v4192, 0
      %4201 = vmatprep.subr.mxu0 0.0
      %4202 = vmatpush1.xpose.msra.mxu0 0.0
      %4203 = vmatprep.subr.mxu0 0.0
      %4204 = vmatpush1.xpose.msra.mxu0 0.0
      %4205 = vmatprep.subr.mxu0 0.0
      %4206 = vmatpush1.xpose.msra.mxu0 0.0
      %4207 = vmatprep.subr.mxu0 0.0
      %4208 = vmatpush1.xpose.msra.mxu0 0.0
      %4209 = vmatprep.subr.mxu0 0.0
      %4210 = vmatpush1.xpose.msra.mxu0 0.0
      %4211 = vmatprep.subr.mxu0 0.0
      %4212 = vmatpush1.xpose.msra.mxu0 0.0
      %4213 = vmatprep.subr.mxu0 0.0
      %4214 = vmatpush1.xpose.msra.mxu0 0.0
      %4215 = vmatprep.subr.mxu0 0.0
      %4216 = vmatpush1.xpose.msra.mxu0 0.0
      %4217 = vmatprep.subr.mxu0 0.0
      %4218 = vmatpush1.xpose.msra.mxu0 0.0
      %4219 = vmatprep.subr.mxu0 0.0
      %4220 = vmatpush1.xpose.msra.mxu0 0.0
      %4221 = vmatprep.subr.mxu0 0.0
      %4222 = vmatpush1.xpose.msra.mxu0 0.0
      %4223 = vmatprep.subr.mxu0 0.0
      %4224 = vmatpush1.xpose.msra.mxu0 0.0
      %4225 = vmatprep.subr.mxu0 0.0
      %4226 = vmatpush1.xpose.msra.mxu0 0.0
      %4227 = vmatprep.subr.mxu0 0.0
      %4228 = vmatpush1.xpose.msra.mxu0 0.0
      %4229 = vmatprep.subr.mxu0 0.0
      %4230 = vmatpush1.xpose.msra.mxu0 %v4199
      %4231 = vmatprep.subr.mxu0 0.0
      %4232 = vmatpush1.xpose.msra.mxu0 %v4197
      %4233 = vmatprep.subr.mxu0 0.0
      %4234 = vmatpush2.xpose.msra.mxu0 0.0
      %4235 = vmatprep.subr.mxu0 0.0
      %4236 = vmatpush2.xpose.msra.mxu0 0.0
      %4237 = vmatprep.subr.mxu0 0.0
      %4238 = vmatpush2.xpose.msra.mxu0 0.0
      %4239 = vmatprep.subr.mxu0 0.0
      %4240 = vmatpush2.xpose.msra.mxu0 0.0
      %4241 = vmatprep.subr.mxu0 0.0
      %4242 = vmatpush2.xpose.msra.mxu0 0.0
      %4243 = vmatprep.subr.mxu0 0.0
      %4244 = vmatpush2.xpose.msra.mxu0 0.0
      %4245 = vmatprep.subr.mxu0 0.0
      %4246 = vmatpush2.xpose.msra.mxu0 0.0
      %4247 = vmatprep.subr.mxu0 0.0
      %4248 = vmatpush2.xpose.msra.mxu0 0.0
      %4249 = vmatprep.subr.mxu0 0.0
      %4250 = vmatpush2.xpose.msra.mxu0 0.0
      %4251 = vmatprep.subr.mxu0 0.0
      %4252 = vmatpush2.xpose.msra.mxu0 0.0
      %4253 = vmatprep.subr.mxu0 0.0
      %4254 = vmatpush2.xpose.msra.mxu0 0.0
      %4255 = vmatprep.subr.mxu0 0.0
      %4256 = vmatpush2.xpose.msra.mxu0 0.0
      %4257 = vmatprep.subr.mxu0 0.0
      %4258 = vmatpush2.xpose.msra.mxu0 0.0
      %4259 = vmatprep.subr.mxu0 0.0
      %4260 = vmatpush2.xpose.msra.mxu0 0.0
      %4261 = vmatprep.subr.mxu0 0.0
      %4262 = vmatpush2.xpose.msra.mxu0 0.0
      %4263 = vmatprep.subr.mxu0 0.0
      %4264 = vmatpush2.xpose.msra.mxu0 0.0
      %4265 = vmatprep.mubr.f32.mxu0 0.0
      %4266 = vmatmul.mubr.f32.gmra.mxu0 %v4193
      %v4267 = vpop.f32.mrf.mxu0
      %v4268 = vadd.f32 0.0, %v4267
      %v4269 = vpop.f32.mrf.mxu0
      %4270 = vmatprep.mubr.f32.mxu0 0.0
      %4271 = vmatmul.mubr.f32.gmra.mxu0 %v4195
      %v4272 = vpop.f32.mrf.mxu0
      %v4273 = vadd.f32 0.0, %v4272
      %v4274 = vpop.f32.mrf.mxu0
      %4275 = vdwg.mxu0
      %4276 = vrot.lane.b32.xlu0 %v320, 116
      %v4277 = vpop.permute.xlu0 %4276
      %4278 = vrot.lane.b32.xlu0 %v325, 116
      %v4279 = vpop.permute.xlu0 %4278
      %4280 = vrot.lane.b32.xlu0 %v320, 100
      %v4281 = vpop.permute.xlu0 %4280
      %4282 = vrot.lane.b32.xlu0 %v325, 100
      %v4283 = vpop.permute.xlu0 %4282
      %v4284 = vsel %vm434, %v4277, 0
      %v4286 = vsel %vm434, %v4279, 0
      %v4288 = vsel %vm434, %v4281, 0
      %v4290 = vsel %vm434, %v4283, 0
      %4292 = vmatprep.subr.mxu0 0.0
      %4293 = vmatpush1.xpose.msra.mxu0 0.0
      %4294 = vmatprep.subr.mxu0 0.0
      %4295 = vmatpush1.xpose.msra.mxu0 0.0
      %4296 = vmatprep.subr.mxu0 0.0
      %4297 = vmatpush1.xpose.msra.mxu0 0.0
      %4298 = vmatprep.subr.mxu0 0.0
      %4299 = vmatpush1.xpose.msra.mxu0 0.0
      %4300 = vmatprep.subr.mxu0 0.0
      %4301 = vmatpush1.xpose.msra.mxu0 0.0
      %4302 = vmatprep.subr.mxu0 0.0
      %4303 = vmatpush1.xpose.msra.mxu0 0.0
      %4304 = vmatprep.subr.mxu0 0.0
      %4305 = vmatpush1.xpose.msra.mxu0 0.0
      %4306 = vmatprep.subr.mxu0 0.0
      %4307 = vmatpush1.xpose.msra.mxu0 0.0
      %4308 = vmatprep.subr.mxu0 0.0
      %4309 = vmatpush1.xpose.msra.mxu0 0.0
      %4310 = vmatprep.subr.mxu0 0.0
      %4311 = vmatpush1.xpose.msra.mxu0 0.0
      %4312 = vmatprep.subr.mxu0 0.0
      %4313 = vmatpush1.xpose.msra.mxu0 0.0
      %4314 = vmatprep.subr.mxu0 0.0
      %4315 = vmatpush1.xpose.msra.mxu0 0.0
      %4316 = vmatprep.subr.mxu0 0.0
      %4317 = vmatpush1.xpose.msra.mxu0 0.0
      %4318 = vmatprep.subr.mxu0 0.0
      %4319 = vmatpush1.xpose.msra.mxu0 0.0
      %4320 = vmatprep.subr.mxu0 0.0
      %4321 = vmatpush1.xpose.msra.mxu0 %v4290
      %4322 = vmatprep.subr.mxu0 0.0
      %4323 = vmatpush1.xpose.msra.mxu0 %v4288
      %4324 = vmatprep.subr.mxu0 0.0
      %4325 = vmatpush2.xpose.msra.mxu0 0.0
      %4326 = vmatprep.subr.mxu0 0.0
      %4327 = vmatpush2.xpose.msra.mxu0 0.0
      %4328 = vmatprep.subr.mxu0 0.0
      %4329 = vmatpush2.xpose.msra.mxu0 0.0
      %4330 = vmatprep.subr.mxu0 0.0
      %4331 = vmatpush2.xpose.msra.mxu0 0.0
      %4332 = vmatprep.subr.mxu0 0.0
      %4333 = vmatpush2.xpose.msra.mxu0 0.0
      %4334 = vmatprep.subr.mxu0 0.0
      %4335 = vmatpush2.xpose.msra.mxu0 0.0
      %4336 = vmatprep.subr.mxu0 0.0
      %4337 = vmatpush2.xpose.msra.mxu0 0.0
      %4338 = vmatprep.subr.mxu0 0.0
      %4339 = vmatpush2.xpose.msra.mxu0 0.0
      %4340 = vmatprep.subr.mxu0 0.0
      %4341 = vmatpush2.xpose.msra.mxu0 0.0
      %4342 = vmatprep.subr.mxu0 0.0
      %4343 = vmatpush2.xpose.msra.mxu0 0.0
      %4344 = vmatprep.subr.mxu0 0.0
      %4345 = vmatpush2.xpose.msra.mxu0 0.0
      %4346 = vmatprep.subr.mxu0 0.0
      %4347 = vmatpush2.xpose.msra.mxu0 0.0
      %4348 = vmatprep.subr.mxu0 0.0
      %4349 = vmatpush2.xpose.msra.mxu0 0.0
      %4350 = vmatprep.subr.mxu0 0.0
      %4351 = vmatpush2.xpose.msra.mxu0 0.0
      %4352 = vmatprep.subr.mxu0 0.0
      %4353 = vmatpush2.xpose.msra.mxu0 0.0
      %4354 = vmatprep.subr.mxu0 0.0
      %4355 = vmatpush2.xpose.msra.mxu0 0.0
      %4356 = vmatprep.mubr.f32.mxu0 0.0
      %4357 = vmatmul.mubr.f32.gmra.mxu0 %v4284
      %v4358 = vpop.f32.mrf.mxu0
      %v4359 = vadd.f32 0.0, %v4358
      %v4360 = vpop.f32.mrf.mxu0
      %4361 = vmatprep.mubr.f32.mxu0 0.0
      %4362 = vmatmul.mubr.f32.gmra.mxu0 %v4286
      %v4363 = vpop.f32.mrf.mxu0
      %v4364 = vadd.f32 0.0, %v4363
      %v4365 = vpop.f32.mrf.mxu0
      %4366 = vdwg.mxu0
      %4367 = vrot.lane.b32.xlu0 %v330, 116
      %v4368 = vpop.permute.xlu0 %4367
      %4369 = vrot.lane.b32.xlu0 %v335, 116
      %v4370 = vpop.permute.xlu0 %4369
      %4371 = vrot.lane.b32.xlu0 %v330, 100
      %v4372 = vpop.permute.xlu0 %4371
      %4373 = vrot.lane.b32.xlu0 %v335, 100
      %v4374 = vpop.permute.xlu0 %4373
      %v4375 = vsel %vm434, %v4368, 0
      %v4377 = vsel %vm434, %v4370, 0
      %v4379 = vsel %vm434, %v4372, 0
      %v4381 = vsel %vm434, %v4374, 0
      %4383 = vmatprep.subr.mxu0 0.0
      %4384 = vmatpush1.xpose.msra.mxu0 0.0
      %4385 = vmatprep.subr.mxu0 0.0
      %4386 = vmatpush1.xpose.msra.mxu0 0.0
      %4387 = vmatprep.subr.mxu0 0.0
      %4388 = vmatpush1.xpose.msra.mxu0 0.0
      %4389 = vmatprep.subr.mxu0 0.0
      %4390 = vmatpush1.xpose.msra.mxu0 0.0
      %4391 = vmatprep.subr.mxu0 0.0
      %4392 = vmatpush1.xpose.msra.mxu0 0.0
      %4393 = vmatprep.subr.mxu0 0.0
      %4394 = vmatpush1.xpose.msra.mxu0 0.0
      %4395 = vmatprep.subr.mxu0 0.0
      %4396 = vmatpush1.xpose.msra.mxu0 0.0
      %4397 = vmatprep.subr.mxu0 0.0
      %4398 = vmatpush1.xpose.msra.mxu0 0.0
      %4399 = vmatprep.subr.mxu0 0.0
      %4400 = vmatpush1.xpose.msra.mxu0 0.0
      %4401 = vmatprep.subr.mxu0 0.0
      %4402 = vmatpush1.xpose.msra.mxu0 0.0
      %4403 = vmatprep.subr.mxu0 0.0
      %4404 = vmatpush1.xpose.msra.mxu0 0.0
      %4405 = vmatprep.subr.mxu0 0.0
      %4406 = vmatpush1.xpose.msra.mxu0 0.0
      %4407 = vmatprep.subr.mxu0 0.0
      %4408 = vmatpush1.xpose.msra.mxu0 0.0
      %4409 = vmatprep.subr.mxu0 0.0
      %4410 = vmatpush1.xpose.msra.mxu0 0.0
      %4411 = vmatprep.subr.mxu0 0.0
      %4412 = vmatpush1.xpose.msra.mxu0 %v4381
      %4413 = vmatprep.subr.mxu0 0.0
      %4414 = vmatpush1.xpose.msra.mxu0 %v4379
      %4415 = vmatprep.subr.mxu0 0.0
      %4416 = vmatpush2.xpose.msra.mxu0 0.0
      %4417 = vmatprep.subr.mxu0 0.0
      %4418 = vmatpush2.xpose.msra.mxu0 0.0
      %4419 = vmatprep.subr.mxu0 0.0
      %4420 = vmatpush2.xpose.msra.mxu0 0.0
      %4421 = vmatprep.subr.mxu0 0.0
      %4422 = vmatpush2.xpose.msra.mxu0 0.0
      %4423 = vmatprep.subr.mxu0 0.0
      %4424 = vmatpush2.xpose.msra.mxu0 0.0
      %4425 = vmatprep.subr.mxu0 0.0
      %4426 = vmatpush2.xpose.msra.mxu0 0.0
      %4427 = vmatprep.subr.mxu0 0.0
      %4428 = vmatpush2.xpose.msra.mxu0 0.0
      %4429 = vmatprep.subr.mxu0 0.0
      %4430 = vmatpush2.xpose.msra.mxu0 0.0
      %4431 = vmatprep.subr.mxu0 0.0
      %4432 = vmatpush2.xpose.msra.mxu0 0.0
      %4433 = vmatprep.subr.mxu0 0.0
      %4434 = vmatpush2.xpose.msra.mxu0 0.0
      %4435 = vmatprep.subr.mxu0 0.0
      %4436 = vmatpush2.xpose.msra.mxu0 0.0
      %4437 = vmatprep.subr.mxu0 0.0
      %4438 = vmatpush2.xpose.msra.mxu0 0.0
      %4439 = vmatprep.subr.mxu0 0.0
      %4440 = vmatpush2.xpose.msra.mxu0 0.0
      %4441 = vmatprep.subr.mxu0 0.0
      %4442 = vmatpush2.xpose.msra.mxu0 0.0
      %4443 = vmatprep.subr.mxu0 0.0
      %4444 = vmatpush2.xpose.msra.mxu0 0.0
      %4445 = vmatprep.subr.mxu0 0.0
      %4446 = vmatpush2.xpose.msra.mxu0 0.0
      %4447 = vmatprep.mubr.f32.mxu0 0.0
      %4448 = vmatmul.mubr.f32.gmra.mxu0 %v4375
      %v4449 = vpop.f32.mrf.mxu0
      %v4450 = vadd.f32 0.0, %v4449
      %v4451 = vpop.f32.mrf.mxu0
      %4452 = vmatprep.mubr.f32.mxu0 0.0
      %4453 = vmatmul.mubr.f32.gmra.mxu0 %v4377
      %v4454 = vpop.f32.mrf.mxu0
      %v4455 = vadd.f32 0.0, %v4454
      %v4456 = vpop.f32.mrf.mxu0
      %4457 = vdwg.mxu0
      %4458 = vrot.lane.b32.xlu0 %v340, 116
      %v4459 = vpop.permute.xlu0 %4458
      %4460 = vrot.lane.b32.xlu0 %v345, 116
      %v4461 = vpop.permute.xlu0 %4460
      %4462 = vrot.lane.b32.xlu0 %v340, 100
      %v4463 = vpop.permute.xlu0 %4462
      %4464 = vrot.lane.b32.xlu0 %v345, 100
      %v4465 = vpop.permute.xlu0 %4464
      %v4466 = vsel %vm434, %v4459, 0
      %v4468 = vsel %vm434, %v4461, 0
      %v4470 = vsel %vm434, %v4463, 0
      %v4472 = vsel %vm434, %v4465, 0
      %4474 = vmatprep.subr.mxu0 0.0
      %4475 = vmatpush1.xpose.msra.mxu0 0.0
      %4476 = vmatprep.subr.mxu0 0.0
      %4477 = vmatpush1.xpose.msra.mxu0 0.0
      %4478 = vmatprep.subr.mxu0 0.0
      %4479 = vmatpush1.xpose.msra.mxu0 0.0
      %4480 = vmatprep.subr.mxu0 0.0
      %4481 = vmatpush1.xpose.msra.mxu0 0.0
      %4482 = vmatprep.subr.mxu0 0.0
      %4483 = vmatpush1.xpose.msra.mxu0 0.0
      %4484 = vmatprep.subr.mxu0 0.0
      %4485 = vmatpush1.xpose.msra.mxu0 0.0
      %4486 = vmatprep.subr.mxu0 0.0
      %4487 = vmatpush1.xpose.msra.mxu0 0.0
      %4488 = vmatprep.subr.mxu0 0.0
      %4489 = vmatpush1.xpose.msra.mxu0 0.0
      %4490 = vmatprep.subr.mxu0 0.0
      %4491 = vmatpush1.xpose.msra.mxu0 0.0
      %4492 = vmatprep.subr.mxu0 0.0
      %4493 = vmatpush1.xpose.msra.mxu0 0.0
      %4494 = vmatprep.subr.mxu0 0.0
      %4495 = vmatpush1.xpose.msra.mxu0 0.0
      %4496 = vmatprep.subr.mxu0 0.0
      %4497 = vmatpush1.xpose.msra.mxu0 0.0
      %4498 = vmatprep.subr.mxu0 0.0
      %4499 = vmatpush1.xpose.msra.mxu0 0.0
      %4500 = vmatprep.subr.mxu0 0.0
      %4501 = vmatpush1.xpose.msra.mxu0 0.0
      %4502 = vmatprep.subr.mxu0 0.0
      %4503 = vmatpush1.xpose.msra.mxu0 %v4472
      %4504 = vmatprep.subr.mxu0 0.0
      %4505 = vmatpush1.xpose.msra.mxu0 %v4470
      %4506 = vmatprep.subr.mxu0 0.0
      %4507 = vmatpush2.xpose.msra.mxu0 0.0
      %4508 = vmatprep.subr.mxu0 0.0
      %4509 = vmatpush2.xpose.msra.mxu0 0.0
      %4510 = vmatprep.subr.mxu0 0.0
      %4511 = vmatpush2.xpose.msra.mxu0 0.0
      %4512 = vmatprep.subr.mxu0 0.0
      %4513 = vmatpush2.xpose.msra.mxu0 0.0
      %4514 = vmatprep.subr.mxu0 0.0
      %4515 = vmatpush2.xpose.msra.mxu0 0.0
      %4516 = vmatprep.subr.mxu0 0.0
      %4517 = vmatpush2.xpose.msra.mxu0 0.0
      %4518 = vmatprep.subr.mxu0 0.0
      %4519 = vmatpush2.xpose.msra.mxu0 0.0
      %4520 = vmatprep.subr.mxu0 0.0
      %4521 = vmatpush2.xpose.msra.mxu0 0.0
      %4522 = vmatprep.subr.mxu0 0.0
      %4523 = vmatpush2.xpose.msra.mxu0 0.0
      %4524 = vmatprep.subr.mxu0 0.0
      %4525 = vmatpush2.xpose.msra.mxu0 0.0
      %4526 = vmatprep.subr.mxu0 0.0
      %4527 = vmatpush2.xpose.msra.mxu0 0.0
      %4528 = vmatprep.subr.mxu0 0.0
      %4529 = vmatpush2.xpose.msra.mxu0 0.0
      %4530 = vmatprep.subr.mxu0 0.0
      %4531 = vmatpush2.xpose.msra.mxu0 0.0
      %4532 = vmatprep.subr.mxu0 0.0
      %4533 = vmatpush2.xpose.msra.mxu0 0.0
      %4534 = vmatprep.subr.mxu0 0.0
      %4535 = vmatpush2.xpose.msra.mxu0 0.0
      %4536 = vmatprep.subr.mxu0 0.0
      %4537 = vmatpush2.xpose.msra.mxu0 0.0
      %4538 = vmatprep.mubr.f32.mxu0 0.0
      %4539 = vmatmul.mubr.f32.gmra.mxu0 %v4466
      %v4540 = vpop.f32.mrf.mxu0
      %v4541 = vadd.f32 0.0, %v4540
      %v4542 = vpop.f32.mrf.mxu0
      %4543 = vmatprep.mubr.f32.mxu0 0.0
      %4544 = vmatmul.mubr.f32.gmra.mxu0 %v4468
      %v4545 = vpop.f32.mrf.mxu0
      %v4546 = vadd.f32 0.0, %v4545
      %v4547 = vpop.f32.mrf.mxu0
      %4548 = vdwg.mxu0
      %4549 = vrot.lane.b32.xlu0 %v350, 116
      %v4550 = vpop.permute.xlu0 %4549
      %4551 = vrot.lane.b32.xlu0 %v355, 116
      %v4552 = vpop.permute.xlu0 %4551
      %4553 = vrot.lane.b32.xlu0 %v350, 100
      %v4554 = vpop.permute.xlu0 %4553
      %4555 = vrot.lane.b32.xlu0 %v355, 100
      %v4556 = vpop.permute.xlu0 %4555
      %v4557 = vsel %vm434, %v4550, 0
      %v4559 = vsel %vm434, %v4552, 0
      %v4561 = vsel %vm434, %v4554, 0
      %v4563 = vsel %vm434, %v4556, 0
      %4565 = vmatprep.subr.mxu0 0.0
      %4566 = vmatpush1.xpose.msra.mxu0 0.0
      %4567 = vmatprep.subr.mxu0 0.0
      %4568 = vmatpush1.xpose.msra.mxu0 0.0
      %4569 = vmatprep.subr.mxu0 0.0
      %4570 = vmatpush1.xpose.msra.mxu0 0.0
      %4571 = vmatprep.subr.mxu0 0.0
      %4572 = vmatpush1.xpose.msra.mxu0 0.0
      %4573 = vmatprep.subr.mxu0 0.0
      %4574 = vmatpush1.xpose.msra.mxu0 0.0
      %4575 = vmatprep.subr.mxu0 0.0
      %4576 = vmatpush1.xpose.msra.mxu0 0.0
      %4577 = vmatprep.subr.mxu0 0.0
      %4578 = vmatpush1.xpose.msra.mxu0 0.0
      %4579 = vmatprep.subr.mxu0 0.0
      %4580 = vmatpush1.xpose.msra.mxu0 0.0
      %4581 = vmatprep.subr.mxu0 0.0
      %4582 = vmatpush1.xpose.msra.mxu0 0.0
      %4583 = vmatprep.subr.mxu0 0.0
      %4584 = vmatpush1.xpose.msra.mxu0 0.0
      %4585 = vmatprep.subr.mxu0 0.0
      %4586 = vmatpush1.xpose.msra.mxu0 0.0
      %4587 = vmatprep.subr.mxu0 0.0
      %4588 = vmatpush1.xpose.msra.mxu0 0.0
      %4589 = vmatprep.subr.mxu0 0.0
      %4590 = vmatpush1.xpose.msra.mxu0 0.0
      %4591 = vmatprep.subr.mxu0 0.0
      %4592 = vmatpush1.xpose.msra.mxu0 0.0
      %4593 = vmatprep.subr.mxu0 0.0
      %4594 = vmatpush1.xpose.msra.mxu0 %v4563
      %4595 = vmatprep.subr.mxu0 0.0
      %4596 = vmatpush1.xpose.msra.mxu0 %v4561
      %4597 = vmatprep.subr.mxu0 0.0
      %4598 = vmatpush2.xpose.msra.mxu0 0.0
      %4599 = vmatprep.subr.mxu0 0.0
      %4600 = vmatpush2.xpose.msra.mxu0 0.0
      %4601 = vmatprep.subr.mxu0 0.0
      %4602 = vmatpush2.xpose.msra.mxu0 0.0
      %4603 = vmatprep.subr.mxu0 0.0
      %4604 = vmatpush2.xpose.msra.mxu0 0.0
      %4605 = vmatprep.subr.mxu0 0.0
      %4606 = vmatpush2.xpose.msra.mxu0 0.0
      %4607 = vmatprep.subr.mxu0 0.0
      %4608 = vmatpush2.xpose.msra.mxu0 0.0
      %4609 = vmatprep.subr.mxu0 0.0
      %4610 = vmatpush2.xpose.msra.mxu0 0.0
      %4611 = vmatprep.subr.mxu0 0.0
      %4612 = vmatpush2.xpose.msra.mxu0 0.0
      %4613 = vmatprep.subr.mxu0 0.0
      %4614 = vmatpush2.xpose.msra.mxu0 0.0
      %4615 = vmatprep.subr.mxu0 0.0
      %4616 = vmatpush2.xpose.msra.mxu0 0.0
      %4617 = vmatprep.subr.mxu0 0.0
      %4618 = vmatpush2.xpose.msra.mxu0 0.0
      %4619 = vmatprep.subr.mxu0 0.0
      %4620 = vmatpush2.xpose.msra.mxu0 0.0
      %4621 = vmatprep.subr.mxu0 0.0
      %4622 = vmatpush2.xpose.msra.mxu0 0.0
      %4623 = vmatprep.subr.mxu0 0.0
      %4624 = vmatpush2.xpose.msra.mxu0 0.0
      %4625 = vmatprep.subr.mxu0 0.0
      %4626 = vmatpush2.xpose.msra.mxu0 0.0
      %4627 = vmatprep.subr.mxu0 0.0
      %4628 = vmatpush2.xpose.msra.mxu0 0.0
      %4629 = vmatprep.mubr.f32.mxu0 0.0
      %4630 = vmatmul.mubr.f32.gmra.mxu0 %v4557
      %v4631 = vpop.f32.mrf.mxu0
      %v4632 = vadd.f32 0.0, %v4631
      %v4633 = vpop.f32.mrf.mxu0
      %4634 = vmatprep.mubr.f32.mxu0 0.0
      %4635 = vmatmul.mubr.f32.gmra.mxu0 %v4559
      %v4636 = vpop.f32.mrf.mxu0
      %v4637 = vadd.f32 0.0, %v4636
      %v4638 = vpop.f32.mrf.mxu0
      %4639 = vdwg.mxu0
      %4640 = vrot.lane.b32.xlu0 %v360, 116
      %v4641 = vpop.permute.xlu0 %4640
      %4642 = vrot.lane.b32.xlu0 %v365, 116
      %v4643 = vpop.permute.xlu0 %4642
      %4644 = vrot.lane.b32.xlu0 %v360, 100
      %v4645 = vpop.permute.xlu0 %4644
      %4646 = vrot.lane.b32.xlu0 %v365, 100
      %v4647 = vpop.permute.xlu0 %4646
      %v4648 = vsel %vm434, %v4641, 0
      %v4650 = vsel %vm434, %v4643, 0
      %v4652 = vsel %vm434, %v4645, 0
      %v4654 = vsel %vm434, %v4647, 0
      %4656 = vmatprep.subr.mxu0 0.0
      %4657 = vmatpush1.xpose.msra.mxu0 0.0
      %4658 = vmatprep.subr.mxu0 0.0
      %4659 = vmatpush1.xpose.msra.mxu0 0.0
      %4660 = vmatprep.subr.mxu0 0.0
      %4661 = vmatpush1.xpose.msra.mxu0 0.0
      %4662 = vmatprep.subr.mxu0 0.0
      %4663 = vmatpush1.xpose.msra.mxu0 0.0
      %4664 = vmatprep.subr.mxu0 0.0
      %4665 = vmatpush1.xpose.msra.mxu0 0.0
      %4666 = vmatprep.subr.mxu0 0.0
      %4667 = vmatpush1.xpose.msra.mxu0 0.0
      %4668 = vmatprep.subr.mxu0 0.0
      %4669 = vmatpush1.xpose.msra.mxu0 0.0
      %4670 = vmatprep.subr.mxu0 0.0
      %4671 = vmatpush1.xpose.msra.mxu0 0.0
      %4672 = vmatprep.subr.mxu0 0.0
      %4673 = vmatpush1.xpose.msra.mxu0 0.0
      %4674 = vmatprep.subr.mxu0 0.0
      %4675 = vmatpush1.xpose.msra.mxu0 0.0
      %4676 = vmatprep.subr.mxu0 0.0
      %4677 = vmatpush1.xpose.msra.mxu0 0.0
      %4678 = vmatprep.subr.mxu0 0.0
      %4679 = vmatpush1.xpose.msra.mxu0 0.0
      %4680 = vmatprep.subr.mxu0 0.0
      %4681 = vmatpush1.xpose.msra.mxu0 0.0
      %4682 = vmatprep.subr.mxu0 0.0
      %4683 = vmatpush1.xpose.msra.mxu0 0.0
      %4684 = vmatprep.subr.mxu0 0.0
      %4685 = vmatpush1.xpose.msra.mxu0 %v4654
      %4686 = vmatprep.subr.mxu0 0.0
      %4687 = vmatpush1.xpose.msra.mxu0 %v4652
      %4688 = vmatprep.subr.mxu0 0.0
      %4689 = vmatpush2.xpose.msra.mxu0 0.0
      %4690 = vmatprep.subr.mxu0 0.0
      %4691 = vmatpush2.xpose.msra.mxu0 0.0
      %4692 = vmatprep.subr.mxu0 0.0
      %4693 = vmatpush2.xpose.msra.mxu0 0.0
      %4694 = vmatprep.subr.mxu0 0.0
      %4695 = vmatpush2.xpose.msra.mxu0 0.0
      %4696 = vmatprep.subr.mxu0 0.0
      %4697 = vmatpush2.xpose.msra.mxu0 0.0
      %4698 = vmatprep.subr.mxu0 0.0
      %4699 = vmatpush2.xpose.msra.mxu0 0.0
      %4700 = vmatprep.subr.mxu0 0.0
      %4701 = vmatpush2.xpose.msra.mxu0 0.0
      %4702 = vmatprep.subr.mxu0 0.0
      %4703 = vmatpush2.xpose.msra.mxu0 0.0
      %4704 = vmatprep.subr.mxu0 0.0
      %4705 = vmatpush2.xpose.msra.mxu0 0.0
      %4706 = vmatprep.subr.mxu0 0.0
      %4707 = vmatpush2.xpose.msra.mxu0 0.0
      %4708 = vmatprep.subr.mxu0 0.0
      %4709 = vmatpush2.xpose.msra.mxu0 0.0
      %4710 = vmatprep.subr.mxu0 0.0
      %4711 = vmatpush2.xpose.msra.mxu0 0.0
      %4712 = vmatprep.subr.mxu0 0.0
      %4713 = vmatpush2.xpose.msra.mxu0 0.0
      %4714 = vmatprep.subr.mxu0 0.0
      %4715 = vmatpush2.xpose.msra.mxu0 0.0
      %4716 = vmatprep.subr.mxu0 0.0
      %4717 = vmatpush2.xpose.msra.mxu0 0.0
      %4718 = vmatprep.subr.mxu0 0.0
      %4719 = vmatpush2.xpose.msra.mxu0 0.0
      %4720 = vmatprep.mubr.f32.mxu0 0.0
      %4721 = vmatmul.mubr.f32.gmra.mxu0 %v4648
      %v4722 = vpop.f32.mrf.mxu0
      %v4723 = vadd.f32 0.0, %v4722
      %v4724 = vpop.f32.mrf.mxu0
      %4725 = vmatprep.mubr.f32.mxu0 0.0
      %4726 = vmatmul.mubr.f32.gmra.mxu0 %v4650
      %v4727 = vpop.f32.mrf.mxu0
      %v4728 = vadd.f32 0.0, %v4727
      %v4729 = vpop.f32.mrf.mxu0
      %4730 = vdwg.mxu0
      %4731 = vrot.lane.b32.xlu0 %v370, 116
      %v4732 = vpop.permute.xlu0 %4731
      %4733 = vrot.lane.b32.xlu0 %v375, 116
      %v4734 = vpop.permute.xlu0 %4733
      %4735 = vrot.lane.b32.xlu0 %v370, 100
      %v4736 = vpop.permute.xlu0 %4735
      %4737 = vrot.lane.b32.xlu0 %v375, 100
      %v4738 = vpop.permute.xlu0 %4737
      %v4739 = vsel %vm434, %v4732, 0
      %v4741 = vsel %vm434, %v4734, 0
      %v4743 = vsel %vm434, %v4736, 0
      %v4745 = vsel %vm434, %v4738, 0
      %4747 = vmatprep.subr.mxu0 0.0
      %4748 = vmatpush1.xpose.msra.mxu0 0.0
      %4749 = vmatprep.subr.mxu0 0.0
      %4750 = vmatpush1.xpose.msra.mxu0 0.0
      %4751 = vmatprep.subr.mxu0 0.0
      %4752 = vmatpush1.xpose.msra.mxu0 0.0
      %4753 = vmatprep.subr.mxu0 0.0
      %4754 = vmatpush1.xpose.msra.mxu0 0.0
      %4755 = vmatprep.subr.mxu0 0.0
      %4756 = vmatpush1.xpose.msra.mxu0 0.0
      %4757 = vmatprep.subr.mxu0 0.0
      %4758 = vmatpush1.xpose.msra.mxu0 0.0
      %4759 = vmatprep.subr.mxu0 0.0
      %4760 = vmatpush1.xpose.msra.mxu0 0.0
      %4761 = vmatprep.subr.mxu0 0.0
      %4762 = vmatpush1.xpose.msra.mxu0 0.0
      %4763 = vmatprep.subr.mxu0 0.0
      %4764 = vmatpush1.xpose.msra.mxu0 0.0
      %4765 = vmatprep.subr.mxu0 0.0
      %4766 = vmatpush1.xpose.msra.mxu0 0.0
      %4767 = vmatprep.subr.mxu0 0.0
      %4768 = vmatpush1.xpose.msra.mxu0 0.0
      %4769 = vmatprep.subr.mxu0 0.0
      %4770 = vmatpush1.xpose.msra.mxu0 0.0
      %4771 = vmatprep.subr.mxu0 0.0
      %4772 = vmatpush1.xpose.msra.mxu0 0.0
      %4773 = vmatprep.subr.mxu0 0.0
      %4774 = vmatpush1.xpose.msra.mxu0 0.0
      %4775 = vmatprep.subr.mxu0 0.0
      %4776 = vmatpush1.xpose.msra.mxu0 %v4745
      %4777 = vmatprep.subr.mxu0 0.0
      %4778 = vmatpush1.xpose.msra.mxu0 %v4743
      %4779 = vmatprep.subr.mxu0 0.0
      %4780 = vmatpush2.xpose.msra.mxu0 0.0
      %4781 = vmatprep.subr.mxu0 0.0
      %4782 = vmatpush2.xpose.msra.mxu0 0.0
      %4783 = vmatprep.subr.mxu0 0.0
      %4784 = vmatpush2.xpose.msra.mxu0 0.0
      %4785 = vmatprep.subr.mxu0 0.0
      %4786 = vmatpush2.xpose.msra.mxu0 0.0
      %4787 = vmatprep.subr.mxu0 0.0
      %4788 = vmatpush2.xpose.msra.mxu0 0.0
      %4789 = vmatprep.subr.mxu0 0.0
      %4790 = vmatpush2.xpose.msra.mxu0 0.0
      %4791 = vmatprep.subr.mxu0 0.0
      %4792 = vmatpush2.xpose.msra.mxu0 0.0
      %4793 = vmatprep.subr.mxu0 0.0
      %4794 = vmatpush2.xpose.msra.mxu0 0.0
      %4795 = vmatprep.subr.mxu0 0.0
      %4796 = vmatpush2.xpose.msra.mxu0 0.0
      %4797 = vmatprep.subr.mxu0 0.0
      %4798 = vmatpush2.xpose.msra.mxu0 0.0
      %4799 = vmatprep.subr.mxu0 0.0
      %4800 = vmatpush2.xpose.msra.mxu0 0.0
      %4801 = vmatprep.subr.mxu0 0.0
      %4802 = vmatpush2.xpose.msra.mxu0 0.0
      %4803 = vmatprep.subr.mxu0 0.0
      %4804 = vmatpush2.xpose.msra.mxu0 0.0
      %4805 = vmatprep.subr.mxu0 0.0
      %4806 = vmatpush2.xpose.msra.mxu0 0.0
      %4807 = vmatprep.subr.mxu0 0.0
      %4808 = vmatpush2.xpose.msra.mxu0 0.0
      %4809 = vmatprep.subr.mxu0 0.0
      %4810 = vmatpush2.xpose.msra.mxu0 0.0
      %4811 = vmatprep.mubr.f32.mxu0 0.0
      %4812 = vmatmul.mubr.f32.gmra.mxu0 %v4739
      %v4813 = vpop.f32.mrf.mxu0
      %v4814 = vadd.f32 0.0, %v4813
      %v4815 = vpop.f32.mrf.mxu0
      %4816 = vmatprep.mubr.f32.mxu0 0.0
      %4817 = vmatmul.mubr.f32.gmra.mxu0 %v4741
      %v4818 = vpop.f32.mrf.mxu0
      %v4819 = vadd.f32 0.0, %v4818
      %v4820 = vpop.f32.mrf.mxu0
      %4821 = vdwg.mxu0
      %4822 = vrot.lane.b32.xlu0 %v380, 116
      %v4823 = vpop.permute.xlu0 %4822
      %4824 = vrot.lane.b32.xlu0 %v385, 116
      %v4825 = vpop.permute.xlu0 %4824
      %4826 = vrot.lane.b32.xlu0 %v380, 100
      %v4827 = vpop.permute.xlu0 %4826
      %4828 = vrot.lane.b32.xlu0 %v385, 100
      %v4829 = vpop.permute.xlu0 %4828
      %v4830 = vsel %vm434, %v4823, 0
      %v4832 = vsel %vm434, %v4825, 0
      %v4834 = vsel %vm434, %v4827, 0
      %v4836 = vsel %vm434, %v4829, 0
      %4838 = vmatprep.subr.mxu0 0.0
      %4839 = vmatpush1.xpose.msra.mxu0 0.0
      %4840 = vmatprep.subr.mxu0 0.0
      %4841 = vmatpush1.xpose.msra.mxu0 0.0
      %4842 = vmatprep.subr.mxu0 0.0
      %4843 = vmatpush1.xpose.msra.mxu0 0.0
      %4844 = vmatprep.subr.mxu0 0.0
      %4845 = vmatpush1.xpose.msra.mxu0 0.0
      %4846 = vmatprep.subr.mxu0 0.0
      %4847 = vmatpush1.xpose.msra.mxu0 0.0
      %4848 = vmatprep.subr.mxu0 0.0
      %4849 = vmatpush1.xpose.msra.mxu0 0.0
      %4850 = vmatprep.subr.mxu0 0.0
      %4851 = vmatpush1.xpose.msra.mxu0 0.0
      %4852 = vmatprep.subr.mxu0 0.0
      %4853 = vmatpush1.xpose.msra.mxu0 0.0
      %4854 = vmatprep.subr.mxu0 0.0
      %4855 = vmatpush1.xpose.msra.mxu0 0.0
      %4856 = vmatprep.subr.mxu0 0.0
      %4857 = vmatpush1.xpose.msra.mxu0 0.0
      %4858 = vmatprep.subr.mxu0 0.0
      %4859 = vmatpush1.xpose.msra.mxu0 0.0
      %4860 = vmatprep.subr.mxu0 0.0
      %4861 = vmatpush1.xpose.msra.mxu0 0.0
      %4862 = vmatprep.subr.mxu0 0.0
      %4863 = vmatpush1.xpose.msra.mxu0 0.0
      %4864 = vmatprep.subr.mxu0 0.0
      %4865 = vmatpush1.xpose.msra.mxu0 0.0
      %4866 = vmatprep.subr.mxu0 0.0
      %4867 = vmatpush1.xpose.msra.mxu0 %v4836
      %4868 = vmatprep.subr.mxu0 0.0
      %4869 = vmatpush1.xpose.msra.mxu0 %v4834
      %4870 = vmatprep.subr.mxu0 0.0
      %4871 = vmatpush2.xpose.msra.mxu0 0.0
      %4872 = vmatprep.subr.mxu0 0.0
      %4873 = vmatpush2.xpose.msra.mxu0 0.0
      %4874 = vmatprep.subr.mxu0 0.0
      %4875 = vmatpush2.xpose.msra.mxu0 0.0
      %4876 = vmatprep.subr.mxu0 0.0
      %4877 = vmatpush2.xpose.msra.mxu0 0.0
      %4878 = vmatprep.subr.mxu0 0.0
      %4879 = vmatpush2.xpose.msra.mxu0 0.0
      %4880 = vmatprep.subr.mxu0 0.0
      %4881 = vmatpush2.xpose.msra.mxu0 0.0
      %4882 = vmatprep.subr.mxu0 0.0
      %4883 = vmatpush2.xpose.msra.mxu0 0.0
      %4884 = vmatprep.subr.mxu0 0.0
      %4885 = vmatpush2.xpose.msra.mxu0 0.0
      %4886 = vmatprep.subr.mxu0 0.0
      %4887 = vmatpush2.xpose.msra.mxu0 0.0
      %4888 = vmatprep.subr.mxu0 0.0
      %4889 = vmatpush2.xpose.msra.mxu0 0.0
      %4890 = vmatprep.subr.mxu0 0.0
      %4891 = vmatpush2.xpose.msra.mxu0 0.0
      %4892 = vmatprep.subr.mxu0 0.0
      %4893 = vmatpush2.xpose.msra.mxu0 0.0
      %4894 = vmatprep.subr.mxu0 0.0
      %4895 = vmatpush2.xpose.msra.mxu0 0.0
      %4896 = vmatprep.subr.mxu0 0.0
      %4897 = vmatpush2.xpose.msra.mxu0 0.0
      %4898 = vmatprep.subr.mxu0 0.0
      %4899 = vmatpush2.xpose.msra.mxu0 0.0
      %4900 = vmatprep.subr.mxu0 0.0
      %4901 = vmatpush2.xpose.msra.mxu0 0.0
      %4902 = vmatprep.mubr.f32.mxu0 0.0
      %4903 = vmatmul.mubr.f32.gmra.mxu0 %v4830
      %v4904 = vpop.f32.mrf.mxu0
      %v4905 = vadd.f32 0.0, %v4904
      %v4906 = vpop.f32.mrf.mxu0
      %4907 = vmatprep.mubr.f32.mxu0 0.0
      %4908 = vmatmul.mubr.f32.gmra.mxu0 %v4832
      %v4909 = vpop.f32.mrf.mxu0
      %v4910 = vadd.f32 0.0, %v4909
      %v4911 = vpop.f32.mrf.mxu0
      %4912 = vdwg.mxu0
      %4913 = vrot.lane.b32.xlu0 %v390, 116
      %v4914 = vpop.permute.xlu0 %4913
      %4915 = vrot.lane.b32.xlu0 %v395, 116
      %v4916 = vpop.permute.xlu0 %4915
      %4917 = vrot.lane.b32.xlu0 %v390, 100
      %v4918 = vpop.permute.xlu0 %4917
      %4919 = vrot.lane.b32.xlu0 %v395, 100
      %v4920 = vpop.permute.xlu0 %4919
      %v4921 = vsel %vm434, %v4914, 0
      %v4923 = vsel %vm434, %v4916, 0
      %v4925 = vsel %vm434, %v4918, 0
      %v4927 = vsel %vm434, %v4920, 0
      %4929 = vmatprep.subr.mxu0 0.0
      %4930 = vmatpush1.xpose.msra.mxu0 0.0
      %4931 = vmatprep.subr.mxu0 0.0
      %4932 = vmatpush1.xpose.msra.mxu0 0.0
      %4933 = vmatprep.subr.mxu0 0.0
      %4934 = vmatpush1.xpose.msra.mxu0 0.0
      %4935 = vmatprep.subr.mxu0 0.0
      %4936 = vmatpush1.xpose.msra.mxu0 0.0
      %4937 = vmatprep.subr.mxu0 0.0
      %4938 = vmatpush1.xpose.msra.mxu0 0.0
      %4939 = vmatprep.subr.mxu0 0.0
      %4940 = vmatpush1.xpose.msra.mxu0 0.0
      %4941 = vmatprep.subr.mxu0 0.0
      %4942 = vmatpush1.xpose.msra.mxu0 0.0
      %4943 = vmatprep.subr.mxu0 0.0
      %4944 = vmatpush1.xpose.msra.mxu0 0.0
      %4945 = vmatprep.subr.mxu0 0.0
      %4946 = vmatpush1.xpose.msra.mxu0 0.0
      %4947 = vmatprep.subr.mxu0 0.0
      %4948 = vmatpush1.xpose.msra.mxu0 0.0
      %4949 = vmatprep.subr.mxu0 0.0
      %4950 = vmatpush1.xpose.msra.mxu0 0.0
      %4951 = vmatprep.subr.mxu0 0.0
      %4952 = vmatpush1.xpose.msra.mxu0 0.0
      %4953 = vmatprep.subr.mxu0 0.0
      %4954 = vmatpush1.xpose.msra.mxu0 0.0
      %4955 = vmatprep.subr.mxu0 0.0
      %4956 = vmatpush1.xpose.msra.mxu0 0.0
      %4957 = vmatprep.subr.mxu0 0.0
      %4958 = vmatpush1.xpose.msra.mxu0 %v4927
      %4959 = vmatprep.subr.mxu0 0.0
      %4960 = vmatpush1.xpose.msra.mxu0 %v4925
      %4961 = vmatprep.subr.mxu0 0.0
      %4962 = vmatpush2.xpose.msra.mxu0 0.0
      %4963 = vmatprep.subr.mxu0 0.0
      %4964 = vmatpush2.xpose.msra.mxu0 0.0
      %4965 = vmatprep.subr.mxu0 0.0
      %4966 = vmatpush2.xpose.msra.mxu0 0.0
      %4967 = vmatprep.subr.mxu0 0.0
      %4968 = vmatpush2.xpose.msra.mxu0 0.0
      %4969 = vmatprep.subr.mxu0 0.0
      %4970 = vmatpush2.xpose.msra.mxu0 0.0
      %4971 = vmatprep.subr.mxu0 0.0
      %4972 = vmatpush2.xpose.msra.mxu0 0.0
      %4973 = vmatprep.subr.mxu0 0.0
      %4974 = vmatpush2.xpose.msra.mxu0 0.0
      %4975 = vmatprep.subr.mxu0 0.0
      %4976 = vmatpush2.xpose.msra.mxu0 0.0
      %4977 = vmatprep.subr.mxu0 0.0
      %4978 = vmatpush2.xpose.msra.mxu0 0.0
      %4979 = vmatprep.subr.mxu0 0.0
      %4980 = vmatpush2.xpose.msra.mxu0 0.0
      %4981 = vmatprep.subr.mxu0 0.0
      %4982 = vmatpush2.xpose.msra.mxu0 0.0
      %4983 = vmatprep.subr.mxu0 0.0
      %4984 = vmatpush2.xpose.msra.mxu0 0.0
      %4985 = vmatprep.subr.mxu0 0.0
      %4986 = vmatpush2.xpose.msra.mxu0 0.0
      %4987 = vmatprep.subr.mxu0 0.0
      %4988 = vmatpush2.xpose.msra.mxu0 0.0
      %4989 = vmatprep.subr.mxu0 0.0
      %4990 = vmatpush2.xpose.msra.mxu0 0.0
      %4991 = vmatprep.subr.mxu0 0.0
      %4992 = vmatpush2.xpose.msra.mxu0 0.0
      %4993 = vmatprep.mubr.f32.mxu0 0.0
      %4994 = vmatmul.mubr.f32.gmra.mxu0 %v4921
      %v4995 = vpop.f32.mrf.mxu0
      %v4996 = vadd.f32 0.0, %v4995
      %v4997 = vpop.f32.mrf.mxu0
      %4998 = vmatprep.mubr.f32.mxu0 0.0
      %4999 = vmatmul.mubr.f32.gmra.mxu0 %v4923
      %v5000 = vpop.f32.mrf.mxu0
      %v5001 = vadd.f32 0.0, %v5000
      %v5002 = vpop.f32.mrf.mxu0
      %5003 = vdwg.mxu0
      %5004 = vrot.lane.b32.xlu0 %v400, 116
      %v5005 = vpop.permute.xlu0 %5004
      %5006 = vrot.lane.b32.xlu0 %v405, 116
      %v5007 = vpop.permute.xlu0 %5006
      %5008 = vrot.lane.b32.xlu0 %v400, 100
      %v5009 = vpop.permute.xlu0 %5008
      %5010 = vrot.lane.b32.xlu0 %v405, 100
      %v5011 = vpop.permute.xlu0 %5010
      %v5012 = vsel %vm434, %v5005, 0
      %v5014 = vsel %vm434, %v5007, 0
      %v5016 = vsel %vm434, %v5009, 0
      %v5018 = vsel %vm434, %v5011, 0
      %5020 = vmatprep.subr.mxu0 0.0
      %5021 = vmatpush1.xpose.msra.mxu0 0.0
      %5022 = vmatprep.subr.mxu0 0.0
      %5023 = vmatpush1.xpose.msra.mxu0 0.0
      %5024 = vmatprep.subr.mxu0 0.0
      %5025 = vmatpush1.xpose.msra.mxu0 0.0
      %5026 = vmatprep.subr.mxu0 0.0
      %5027 = vmatpush1.xpose.msra.mxu0 0.0
      %5028 = vmatprep.subr.mxu0 0.0
      %5029 = vmatpush1.xpose.msra.mxu0 0.0
      %5030 = vmatprep.subr.mxu0 0.0
      %5031 = vmatpush1.xpose.msra.mxu0 0.0
      %5032 = vmatprep.subr.mxu0 0.0
      %5033 = vmatpush1.xpose.msra.mxu0 0.0
      %5034 = vmatprep.subr.mxu0 0.0
      %5035 = vmatpush1.xpose.msra.mxu0 0.0
      %5036 = vmatprep.subr.mxu0 0.0
      %5037 = vmatpush1.xpose.msra.mxu0 0.0
      %5038 = vmatprep.subr.mxu0 0.0
      %5039 = vmatpush1.xpose.msra.mxu0 0.0
      %5040 = vmatprep.subr.mxu0 0.0
      %5041 = vmatpush1.xpose.msra.mxu0 0.0
      %5042 = vmatprep.subr.mxu0 0.0
      %5043 = vmatpush1.xpose.msra.mxu0 0.0
      %5044 = vmatprep.subr.mxu0 0.0
      %5045 = vmatpush1.xpose.msra.mxu0 0.0
      %5046 = vmatprep.subr.mxu0 0.0
      %5047 = vmatpush1.xpose.msra.mxu0 0.0
      %5048 = vmatprep.subr.mxu0 0.0
      %5049 = vmatpush1.xpose.msra.mxu0 %v5018
      %5050 = vmatprep.subr.mxu0 0.0
      %5051 = vmatpush1.xpose.msra.mxu0 %v5016
      %5052 = vmatprep.subr.mxu0 0.0
      %5053 = vmatpush2.xpose.msra.mxu0 0.0
      %5054 = vmatprep.subr.mxu0 0.0
      %5055 = vmatpush2.xpose.msra.mxu0 0.0
      %5056 = vmatprep.subr.mxu0 0.0
      %5057 = vmatpush2.xpose.msra.mxu0 0.0
      %5058 = vmatprep.subr.mxu0 0.0
      %5059 = vmatpush2.xpose.msra.mxu0 0.0
      %5060 = vmatprep.subr.mxu0 0.0
      %5061 = vmatpush2.xpose.msra.mxu0 0.0
      %5062 = vmatprep.subr.mxu0 0.0
      %5063 = vmatpush2.xpose.msra.mxu0 0.0
      %5064 = vmatprep.subr.mxu0 0.0
      %5065 = vmatpush2.xpose.msra.mxu0 0.0
      %5066 = vmatprep.subr.mxu0 0.0
      %5067 = vmatpush2.xpose.msra.mxu0 0.0
      %5068 = vmatprep.subr.mxu0 0.0
      %5069 = vmatpush2.xpose.msra.mxu0 0.0
      %5070 = vmatprep.subr.mxu0 0.0
      %5071 = vmatpush2.xpose.msra.mxu0 0.0
      %5072 = vmatprep.subr.mxu0 0.0
      %5073 = vmatpush2.xpose.msra.mxu0 0.0
      %5074 = vmatprep.subr.mxu0 0.0
      %5075 = vmatpush2.xpose.msra.mxu0 0.0
      %5076 = vmatprep.subr.mxu0 0.0
      %5077 = vmatpush2.xpose.msra.mxu0 0.0
      %5078 = vmatprep.subr.mxu0 0.0
      %5079 = vmatpush2.xpose.msra.mxu0 0.0
      %5080 = vmatprep.subr.mxu0 0.0
      %5081 = vmatpush2.xpose.msra.mxu0 0.0
      %5082 = vmatprep.subr.mxu0 0.0
      %5083 = vmatpush2.xpose.msra.mxu0 0.0
      %5084 = vmatprep.mubr.f32.mxu0 0.0
      %5085 = vmatmul.mubr.f32.gmra.mxu0 %v5012
      %v5086 = vpop.f32.mrf.mxu0
      %v5087 = vadd.f32 0.0, %v5086
      %v5088 = vpop.f32.mrf.mxu0
      %5089 = vmatprep.mubr.f32.mxu0 0.0
      %5090 = vmatmul.mubr.f32.gmra.mxu0 %v5014
      %v5091 = vpop.f32.mrf.mxu0
      %v5092 = vadd.f32 0.0, %v5091
      %v5093 = vpop.f32.mrf.mxu0
      %5094 = vdwg.mxu0
      %5095 = vrot.lane.b32.xlu0 %v410, 116
      %v5096 = vpop.permute.xlu0 %5095
      %5097 = vrot.lane.b32.xlu0 %v415, 116
      %v5098 = vpop.permute.xlu0 %5097
      %5099 = vrot.lane.b32.xlu0 %v410, 100
      %v5100 = vpop.permute.xlu0 %5099
      %5101 = vrot.lane.b32.xlu0 %v415, 100
      %v5102 = vpop.permute.xlu0 %5101
      %v5103 = vsel %vm434, %v5096, 0
      %v5105 = vsel %vm434, %v5098, 0
      %v5107 = vsel %vm434, %v5100, 0
      %v5109 = vsel %vm434, %v5102, 0
      %5111 = vmatprep.subr.mxu0 0.0
      %5112 = vmatpush1.xpose.msra.mxu0 0.0
      %5113 = vmatprep.subr.mxu0 0.0
      %5114 = vmatpush1.xpose.msra.mxu0 0.0
      %5115 = vmatprep.subr.mxu0 0.0
      %5116 = vmatpush1.xpose.msra.mxu0 0.0
      %5117 = vmatprep.subr.mxu0 0.0
      %5118 = vmatpush1.xpose.msra.mxu0 0.0
      %5119 = vmatprep.subr.mxu0 0.0
      %5120 = vmatpush1.xpose.msra.mxu0 0.0
      %5121 = vmatprep.subr.mxu0 0.0
      %5122 = vmatpush1.xpose.msra.mxu0 0.0
      %5123 = vmatprep.subr.mxu0 0.0
      %5124 = vmatpush1.xpose.msra.mxu0 0.0
      %5125 = vmatprep.subr.mxu0 0.0
      %5126 = vmatpush1.xpose.msra.mxu0 0.0
      %5127 = vmatprep.subr.mxu0 0.0
      %5128 = vmatpush1.xpose.msra.mxu0 0.0
      %5129 = vmatprep.subr.mxu0 0.0
      %5130 = vmatpush1.xpose.msra.mxu0 0.0
      %5131 = vmatprep.subr.mxu0 0.0
      %5132 = vmatpush1.xpose.msra.mxu0 0.0
      %5133 = vmatprep.subr.mxu0 0.0
      %5134 = vmatpush1.xpose.msra.mxu0 0.0
      %5135 = vmatprep.subr.mxu0 0.0
      %5136 = vmatpush1.xpose.msra.mxu0 0.0
      %5137 = vmatprep.subr.mxu0 0.0
      %5138 = vmatpush1.xpose.msra.mxu0 0.0
      %5139 = vmatprep.subr.mxu0 0.0
      %5140 = vmatpush1.xpose.msra.mxu0 %v5109
      %5141 = vmatprep.subr.mxu0 0.0
      %5142 = vmatpush1.xpose.msra.mxu0 %v5107
      %5143 = vmatprep.subr.mxu0 0.0
      %5144 = vmatpush2.xpose.msra.mxu0 0.0
      %5145 = vmatprep.subr.mxu0 0.0
      %5146 = vmatpush2.xpose.msra.mxu0 0.0
      %5147 = vmatprep.subr.mxu0 0.0
      %5148 = vmatpush2.xpose.msra.mxu0 0.0
      %5149 = vmatprep.subr.mxu0 0.0
      %5150 = vmatpush2.xpose.msra.mxu0 0.0
      %5151 = vmatprep.subr.mxu0 0.0
      %5152 = vmatpush2.xpose.msra.mxu0 0.0
      %5153 = vmatprep.subr.mxu0 0.0
      %5154 = vmatpush2.xpose.msra.mxu0 0.0
      %5155 = vmatprep.subr.mxu0 0.0
      %5156 = vmatpush2.xpose.msra.mxu0 0.0
      %5157 = vmatprep.subr.mxu0 0.0
      %5158 = vmatpush2.xpose.msra.mxu0 0.0
      %5159 = vmatprep.subr.mxu0 0.0
      %5160 = vmatpush2.xpose.msra.mxu0 0.0
      %5161 = vmatprep.subr.mxu0 0.0
      %5162 = vmatpush2.xpose.msra.mxu0 0.0
      %5163 = vmatprep.subr.mxu0 0.0
      %5164 = vmatpush2.xpose.msra.mxu0 0.0
      %5165 = vmatprep.subr.mxu0 0.0
      %5166 = vmatpush2.xpose.msra.mxu0 0.0
      %5167 = vmatprep.subr.mxu0 0.0
      %5168 = vmatpush2.xpose.msra.mxu0 0.0
      %5169 = vmatprep.subr.mxu0 0.0
      %5170 = vmatpush2.xpose.msra.mxu0 0.0
      %5171 = vmatprep.subr.mxu0 0.0
      %5172 = vmatpush2.xpose.msra.mxu0 0.0
      %5173 = vmatprep.subr.mxu0 0.0
      %5174 = vmatpush2.xpose.msra.mxu0 0.0
      %5175 = vmatprep.mubr.f32.mxu0 0.0
      %5176 = vmatmul.mubr.f32.gmra.mxu0 %v5103
      %v5177 = vpop.f32.mrf.mxu0
      %v5178 = vadd.f32 0.0, %v5177
      %v5179 = vpop.f32.mrf.mxu0
      %5180 = vmatprep.mubr.f32.mxu0 0.0
      %5181 = vmatmul.mubr.f32.gmra.mxu0 %v5105
      %v5182 = vpop.f32.mrf.mxu0
      %v5183 = vadd.f32 0.0, %v5182
      %v5184 = vpop.f32.mrf.mxu0
      %5185 = vdwg.mxu0
      %5186 = vrot.lane.b32.xlu0 %v420, 116
      %v5187 = vpop.permute.xlu0 %5186
      %5188 = vrot.lane.b32.xlu0 %v425, 116
      %v5189 = vpop.permute.xlu0 %5188
      %5190 = vrot.lane.b32.xlu0 %v420, 100
      %v5191 = vpop.permute.xlu0 %5190
      %5192 = vrot.lane.b32.xlu0 %v425, 100
      %v5193 = vpop.permute.xlu0 %5192
      %v5194 = vsel %vm434, %v5187, 0
      %v5196 = vsel %vm434, %v5189, 0
      %v5198 = vsel %vm434, %v5191, 0
      %v5200 = vsel %vm434, %v5193, 0
      %5202 = vmatprep.subr.mxu0 0.0
      %5203 = vmatpush1.xpose.msra.mxu0 0.0
      %5204 = vmatprep.subr.mxu0 0.0
      %5205 = vmatpush1.xpose.msra.mxu0 0.0
      %5206 = vmatprep.subr.mxu0 0.0
      %5207 = vmatpush1.xpose.msra.mxu0 0.0
      %5208 = vmatprep.subr.mxu0 0.0
      %5209 = vmatpush1.xpose.msra.mxu0 0.0
      %5210 = vmatprep.subr.mxu0 0.0
      %5211 = vmatpush1.xpose.msra.mxu0 0.0
      %5212 = vmatprep.subr.mxu0 0.0
      %5213 = vmatpush1.xpose.msra.mxu0 0.0
      %5214 = vmatprep.subr.mxu0 0.0
      %5215 = vmatpush1.xpose.msra.mxu0 0.0
      %5216 = vmatprep.subr.mxu0 0.0
      %5217 = vmatpush1.xpose.msra.mxu0 0.0
      %5218 = vmatprep.subr.mxu0 0.0
      %5219 = vmatpush1.xpose.msra.mxu0 0.0
      %5220 = vmatprep.subr.mxu0 0.0
      %5221 = vmatpush1.xpose.msra.mxu0 0.0
      %5222 = vmatprep.subr.mxu0 0.0
      %5223 = vmatpush1.xpose.msra.mxu0 0.0
      %5224 = vmatprep.subr.mxu0 0.0
      %5225 = vmatpush1.xpose.msra.mxu0 0.0
      %5226 = vmatprep.subr.mxu0 0.0
      %5227 = vmatpush1.xpose.msra.mxu0 0.0
      %5228 = vmatprep.subr.mxu0 0.0
      %5229 = vmatpush1.xpose.msra.mxu0 0.0
      %5230 = vmatprep.subr.mxu0 0.0
      %5231 = vmatpush1.xpose.msra.mxu0 %v5200
      %5232 = vmatprep.subr.mxu0 0.0
      %5233 = vmatpush1.xpose.msra.mxu0 %v5198
      %5234 = vmatprep.subr.mxu0 0.0
      %5235 = vmatpush2.xpose.msra.mxu0 0.0
      %5236 = vmatprep.subr.mxu0 0.0
      %5237 = vmatpush2.xpose.msra.mxu0 0.0
      %5238 = vmatprep.subr.mxu0 0.0
      %5239 = vmatpush2.xpose.msra.mxu0 0.0
      %5240 = vmatprep.subr.mxu0 0.0
      %5241 = vmatpush2.xpose.msra.mxu0 0.0
      %5242 = vmatprep.subr.mxu0 0.0
      %5243 = vmatpush2.xpose.msra.mxu0 0.0
      %5244 = vmatprep.subr.mxu0 0.0
      %5245 = vmatpush2.xpose.msra.mxu0 0.0
      %5246 = vmatprep.subr.mxu0 0.0
      %5247 = vmatpush2.xpose.msra.mxu0 0.0
      %5248 = vmatprep.subr.mxu0 0.0
      %5249 = vmatpush2.xpose.msra.mxu0 0.0
      %5250 = vmatprep.subr.mxu0 0.0
      %5251 = vmatpush2.xpose.msra.mxu0 0.0
      %5252 = vmatprep.subr.mxu0 0.0
      %5253 = vmatpush2.xpose.msra.mxu0 0.0
      %5254 = vmatprep.subr.mxu0 0.0
      %5255 = vmatpush2.xpose.msra.mxu0 0.0
      %5256 = vmatprep.subr.mxu0 0.0
      %5257 = vmatpush2.xpose.msra.mxu0 0.0
      %5258 = vmatprep.subr.mxu0 0.0
      %5259 = vmatpush2.xpose.msra.mxu0 0.0
      %5260 = vmatprep.subr.mxu0 0.0
      %5261 = vmatpush2.xpose.msra.mxu0 0.0
      %5262 = vmatprep.subr.mxu0 0.0
      %5263 = vmatpush2.xpose.msra.mxu0 0.0
      %5264 = vmatprep.subr.mxu0 0.0
      %5265 = vmatpush2.xpose.msra.mxu0 0.0
      %5266 = vmatprep.mubr.f32.mxu0 0.0
      %5267 = vmatmul.mubr.f32.gmra.mxu0 %v5194
      %v5268 = vpop.f32.mrf.mxu0
      %v5269 = vadd.f32 0.0, %v5268
      %v5270 = vpop.f32.mrf.mxu0
      %5271 = vmatprep.mubr.f32.mxu0 0.0
      %5272 = vmatmul.mubr.f32.gmra.mxu0 %v5196
      %v5273 = vpop.f32.mrf.mxu0
      %v5274 = vadd.f32 0.0, %v5273
      %v5275 = vpop.f32.mrf.mxu0
      %5276 = vdwg.mxu0
      %v5277 = vxor.u32 %v4268, 2147483648
      %v5278 = vxor.u32 %v4273, 2147483648
      %v5279 = vxor.u32 %v4359, 2147483648
      %v5280 = vxor.u32 %v4364, 2147483648
      %v5281 = vxor.u32 %v4450, 2147483648
      %v5282 = vxor.u32 %v4455, 2147483648
      %v5283 = vxor.u32 %v4541, 2147483648
      %v5284 = vxor.u32 %v4546, 2147483648
      %v5285 = vxor.u32 %v4632, 2147483648
      %v5286 = vxor.u32 %v4637, 2147483648
      %v5287 = vxor.u32 %v4723, 2147483648
      %v5288 = vxor.u32 %v4728, 2147483648
      %v5289 = vxor.u32 %v4814, 2147483648
      %v5290 = vxor.u32 %v4819, 2147483648
      %v5291 = vxor.u32 %v4905, 2147483648
      %v5292 = vxor.u32 %v4910, 2147483648
      %v5293 = vxor.u32 %v4996, 2147483648
      %v5294 = vxor.u32 %v5001, 2147483648
      %v5295 = vxor.u32 %v5087, 2147483648
      %v5296 = vxor.u32 %v5092, 2147483648
      %v5297 = vxor.u32 %v5178, 2147483648
      %v5298 = vxor.u32 %v5183, 2147483648
      %v5299 = vxor.u32 %v5269, 2147483648
      %v5300 = vxor.u32 %v5274, 2147483648
      %v5301 = vmul.f32 %v5277, 1.442695
      %v5302 = vpow.pop %v5301
      %v5303 = vmul.f32 %v5278, 1.442695
      %v5304 = vpow.pop %v5303
      %v5305 = vmul.f32 %v5279, 1.442695
      %v5306 = vpow.pop %v5305
      %v5307 = vmul.f32 %v5280, 1.442695
      %v5308 = vpow.pop %v5307
      %v5309 = vmul.f32 %v5281, 1.442695
      %v5310 = vpow.pop %v5309
      %v5311 = vmul.f32 %v5282, 1.442695
      %v5312 = vpow.pop %v5311
      %v5313 = vmul.f32 %v5283, 1.442695
      %v5314 = vpow.pop %v5313
      %v5315 = vmul.f32 %v5284, 1.442695
      %v5316 = vpow.pop %v5315
      %v5317 = vmul.f32 %v5285, 1.442695
      %v5318 = vpow.pop %v5317
      %v5319 = vmul.f32 %v5286, 1.442695
      %v5320 = vpow.pop %v5319
      %v5321 = vmul.f32 %v5287, 1.442695
      %v5322 = vpow.pop %v5321
      %v5323 = vmul.f32 %v5288, 1.442695
      %v5324 = vpow.pop %v5323
      %v5325 = vmul.f32 %v5289, 1.442695
      %v5326 = vpow.pop %v5325
      %v5327 = vmul.f32 %v5290, 1.442695
      %v5328 = vpow.pop %v5327
      %v5329 = vmul.f32 %v5291, 1.442695
      %v5330 = vpow.pop %v5329
      %v5331 = vmul.f32 %v5292, 1.442695
      %v5332 = vpow.pop %v5331
      %v5333 = vmul.f32 %v5293, 1.442695
      %v5334 = vpow.pop %v5333
      %v5335 = vmul.f32 %v5294, 1.442695
      %v5336 = vpow.pop %v5335
      %v5337 = vmul.f32 %v5295, 1.442695
      %v5338 = vpow.pop %v5337
      %v5339 = vmul.f32 %v5296, 1.442695
      %v5340 = vpow.pop %v5339
      %v5341 = vmul.f32 %v5297, 1.442695
      %v5342 = vpow.pop %v5341
      %v5343 = vmul.f32 %v5298, 1.442695
      %v5344 = vpow.pop %v5343
      %v5345 = vmul.f32 %v5299, 1.442695
      %v5346 = vpow.pop %v5345
      %v5347 = vmul.f32 %v5300, 1.442695
      %v5348 = vpow.pop %v5347
      %v5349 = vadd.f32 %v5302, 1.0
      %v5350 = vadd.f32 %v5304, 1.0
      %v5351 = vadd.f32 %v5306, 1.0
      %v5352 = vadd.f32 %v5308, 1.0
      %v5353 = vadd.f32 %v5310, 1.0
      %v5354 = vadd.f32 %v5312, 1.0
      %v5355 = vadd.f32 %v5314, 1.0
      %v5356 = vadd.f32 %v5316, 1.0
      %v5357 = vadd.f32 %v5318, 1.0
      %v5358 = vadd.f32 %v5320, 1.0
      %v5359 = vadd.f32 %v5322, 1.0
      %v5360 = vadd.f32 %v5324, 1.0
      %v5361 = vadd.f32 %v5326, 1.0
      %v5362 = vadd.f32 %v5328, 1.0
      %v5363 = vadd.f32 %v5330, 1.0
      %v5364 = vadd.f32 %v5332, 1.0
      %v5365 = vadd.f32 %v5334, 1.0
      %v5366 = vadd.f32 %v5336, 1.0
      %v5367 = vadd.f32 %v5338, 1.0
      %v5368 = vadd.f32 %v5340, 1.0
      %v5369 = vadd.f32 %v5342, 1.0
      %v5370 = vadd.f32 %v5344, 1.0
      %v5371 = vadd.f32 %v5346, 1.0
      %v5372 = vadd.f32 %v5348, 1.0
      %v5373 = vrcp.pop %v5349
      %v5374 = vmul.f32 1.0, %v5373
      %v5375 = vrcp.pop %v5350
      %v5376 = vmul.f32 1.0, %v5375
      %v5377 = vrcp.pop %v5351
      %v5378 = vmul.f32 1.0, %v5377
      %v5379 = vrcp.pop %v5352
      %v5380 = vmul.f32 1.0, %v5379
      %v5381 = vrcp.pop %v5353
      %v5382 = vmul.f32 1.0, %v5381
      %v5383 = vrcp.pop %v5354
      %v5384 = vmul.f32 1.0, %v5383
      %v5385 = vrcp.pop %v5355
      %v5386 = vmul.f32 1.0, %v5385
      %v5387 = vrcp.pop %v5356
      %v5388 = vmul.f32 1.0, %v5387
      %v5389 = vrcp.pop %v5357
      %v5390 = vmul.f32 1.0, %v5389
      %v5391 = vrcp.pop %v5358
      %v5392 = vmul.f32 1.0, %v5391
      %v5393 = vrcp.pop %v5359
      %v5394 = vmul.f32 1.0, %v5393
      %v5395 = vrcp.pop %v5360
      %v5396 = vmul.f32 1.0, %v5395
      %v5397 = vrcp.pop %v5361
      %v5398 = vmul.f32 1.0, %v5397
      %v5399 = vrcp.pop %v5362
      %v5400 = vmul.f32 1.0, %v5399
      %v5401 = vrcp.pop %v5363
      %v5402 = vmul.f32 1.0, %v5401
      %v5403 = vrcp.pop %v5364
      %v5404 = vmul.f32 1.0, %v5403
      %v5405 = vrcp.pop %v5365
      %v5406 = vmul.f32 1.0, %v5405
      %v5407 = vrcp.pop %v5366
      %v5408 = vmul.f32 1.0, %v5407
      %v5409 = vrcp.pop %v5367
      %v5410 = vmul.f32 1.0, %v5409
      %v5411 = vrcp.pop %v5368
      %v5412 = vmul.f32 1.0, %v5411
      %v5413 = vrcp.pop %v5369
      %v5414 = vmul.f32 1.0, %v5413
      %v5415 = vrcp.pop %v5370
      %v5416 = vmul.f32 1.0, %v5415
      %v5417 = vrcp.pop %v5371
      %v5418 = vmul.f32 1.0, %v5417
      %v5419 = vrcp.pop %v5372
      %v5420 = vmul.f32 1.0, %v5419
      %v5421 = vadd.f32 %v4161, %v5374
      %v5422 = vadd.f32 %v4162, %v5376
      %v5423 = vadd.f32 %v4163, %v5378
      %v5424 = vadd.f32 %v4164, %v5380
      %v5425 = vadd.f32 %v4165, %v5382
      %v5426 = vadd.f32 %v4166, %v5384
      %v5427 = vadd.f32 %v4167, %v5386
      %v5428 = vadd.f32 %v4168, %v5388
      %v5429 = vadd.f32 %v4169, %v5390
      %v5430 = vadd.f32 %v4170, %v5392
      %v5431 = vadd.f32 %v4171, %v5394
      %v5432 = vadd.f32 %v4172, %v5396
      %v5433 = vadd.f32 %v4173, %v5398
      %v5434 = vadd.f32 %v4174, %v5400
      %v5435 = vadd.f32 %v4175, %v5402
      %v5436 = vadd.f32 %v4176, %v5404
      %v5437 = vadd.f32 %v4177, %v5406
      %v5438 = vadd.f32 %v4178, %v5408
      %v5439 = vadd.f32 %v4179, %v5410
      %v5440 = vadd.f32 %v4180, %v5412
      %v5441 = vadd.f32 %v4181, %v5414
      %v5442 = vadd.f32 %v4182, %v5416
      %v5443 = vadd.f32 %v4183, %v5418
      %v5444 = vadd.f32 %v4184, %v5420
      %v5445 = vmul.f32 %v5421, 0.25
      %v5446 = vmul.f32 %v5422, 0.25
      %v5447 = vmul.f32 %v5423, 0.25
      %v5448 = vmul.f32 %v5424, 0.25
      %v5449 = vmul.f32 %v5425, 0.25
      %v5450 = vmul.f32 %v5426, 0.25
      %v5451 = vmul.f32 %v5427, 0.25
      %v5452 = vmul.f32 %v5428, 0.25
      %v5453 = vmul.f32 %v5429, 0.25
      %v5454 = vmul.f32 %v5430, 0.25
      %v5455 = vmul.f32 %v5431, 0.25
      %v5456 = vmul.f32 %v5432, 0.25
      %v5457 = vmul.f32 %v5433, 0.25
      %v5458 = vmul.f32 %v5434, 0.25
      %v5459 = vmul.f32 %v5435, 0.25
      %v5460 = vmul.f32 %v5436, 0.25
      %v5461 = vmul.f32 %v5437, 0.25
      %v5462 = vmul.f32 %v5438, 0.25
      %v5463 = vmul.f32 %v5439, 0.25
      %v5464 = vmul.f32 %v5440, 0.25
      %v5465 = vmul.f32 %v5441, 0.25
      %v5466 = vmul.f32 %v5442, 0.25
      %v5467 = vmul.f32 %v5443, 0.25
      %v5468 = vmul.f32 %v5444, 0.25
      %v5481 = vrot.slane %v5447, 7
      %vm5482 = vcmask 1041409
      %v5483 = vsel %vm5482, %v5481, %v5445
      %v5484 = vrot.slane %v5449, 6
      %vm5485 = vcmask 1042434
      %v5486 = vsel %vm5485, %v5484, %v5483
      %v5487 = vrot.slane %v5451, 5
      %vm5488 = vcmask 1043459
      %v5489 = vsel %vm5488, %v5487, %v5486
      %v5490 = vrot.slane %v5453, 4
      %vm5491 = vcmask 1044484
      %v5492 = vsel %vm5491, %v5490, %v5489
      %v5493 = vrot.slane %v5455, 3
      %vm5494 = vcmask 1045509
      %v5495 = vsel %vm5494, %v5493, %v5492
      %v5496 = vrot.slane %v5457, 2
      %vm5497 = vcmask 1046534
      %v5498 = vsel %vm5497, %v5496, %v5495
      %v5499 = vrot.slane %v5459, 1
      %vm5500 = vcmask 1047559
      %v5501 = vsel %vm5500, %v5499, %v5498
      %v5502 = vrot.slane %v5463, 7
      %v5503 = vsel %vm5482, %v5502, %v5461
      %v5504 = vrot.slane %v5465, 6
      %v5505 = vsel %vm5485, %v5504, %v5503
      %v5506 = vrot.slane %v5467, 5
      %v5507 = vsel %vm5488, %v5506, %v5505
      %5510 = vst.msk [vmem:[%s143] sm:$0xff] %vm170, %v5501
      %vm5511 = vcmask 125952
      %5512 = vst.msk [vmem:[%s143 + $0x10] sm:$0xf] %vm5511, %v5507
      %v5513 = vrot.slane %v5445, 1
      %v5514 = vsel %vm5482, %v5447, %v5513
      %v5515 = vrot.slane %v5449, 7
      %v5516 = vsel %vm5485, %v5515, %v5514
      %v5517 = vrot.slane %v5451, 6
      %v5518 = vsel %vm5488, %v5517, %v5516
      %v5519 = vrot.slane %v5453, 5
      %v5520 = vsel %vm5491, %v5519, %v5518
      %v5521 = vrot.slane %v5455, 4
      %v5522 = vsel %vm5494, %v5521, %v5520
      %v5523 = vrot.slane %v5457, 3
      %v5524 = vsel %vm5497, %v5523, %v5522
      %v5525 = vrot.slane %v5459, 2
      %v5526 = vsel %vm5500, %v5525, %v5524
      %v5527 = vrot.slane %v5461, 1
      %v5528 = vsel %vm5482, %v5463, %v5527
      %v5529 = vrot.slane %v5465, 7
      %v5530 = vsel %vm5485, %v5529, %v5528
      %v5531 = vrot.slane %v5467, 6
      %v5532 = vsel %vm5488, %v5531, %v5530
      %5533 = vrot.lane.b32.xlu0 %v5526, 16
      %v5534 = vpop.permute.xlu0 %5533
      %5535 = vrot.lane.b32.xlu0 %v5532, 16
      %v5536 = vpop.permute.xlu0 %5535
      %vm5539 = vcmask 261248
      %5540 = vst.msk [vmem:[%s143] sm:$0xff] %vm5539, %v5534
      %vm5541 = vcmask 257152
      %5542 = vst.msk [vmem:[%s143 + $0x10] sm:$0xf] %vm5541, %v5536
      %v5543 = vrot.slane %v5445, 2
      %v5544 = vrot.slane %v5447, 1
      %v5545 = vsel %vm5482, %v5544, %v5543
      %v5546 = vsel %vm5485, %v5449, %v5545
      %v5547 = vrot.slane %v5451, 7
      %v5548 = vsel %vm5488, %v5547, %v5546
      %v5549 = vrot.slane %v5453, 6
      %v5550 = vsel %vm5491, %v5549, %v5548
      %v5551 = vrot.slane %v5455, 5
      %v5552 = vsel %vm5494, %v5551, %v5550
      %v5553 = vrot.slane %v5457, 4
      %v5554 = vsel %vm5497, %v5553, %v5552
      %v5555 = vrot.slane %v5459, 3
      %v5556 = vsel %vm5500, %v5555, %v5554
      %v5557 = vrot.slane %v5461, 2
      %v5558 = vrot.slane %v5463, 1
      %v5559 = vsel %vm5482, %v5558, %v5557
      %v5560 = vsel %vm5485, %v5465, %v5559
      %v5561 = vrot.slane %v5467, 7
      %v5562 = vsel %vm5488, %v5561, %v5560
      %5563 = vrot.lane.b32.xlu0 %v5556, 32
      %v5564 = vpop.permute.xlu0 %5563
      %5565 = vrot.lane.b32.xlu0 %v5562, 32
      %v5566 = vpop.permute.xlu0 %5565
      %vm5569 = vcmask 392448
      %5570 = vst.msk [vmem:[%s143] sm:$0xff] %vm5569, %v5564
      %vm5571 = vcmask 388352
      %5572 = vst.msk [vmem:[%s143 + $0x10] sm:$0xf] %vm5571, %v5566
      %v5573 = vrot.slane %v5445, 3
      %v5574 = vrot.slane %v5447, 2
      %v5575 = vsel %vm5482, %v5574, %v5573
      %v5576 = vrot.slane %v5449, 1
      %v5577 = vsel %vm5485, %v5576, %v5575
      %v5578 = vsel %vm5488, %v5451, %v5577
      %v5579 = vrot.slane %v5453, 7
      %v5580 = vsel %vm5491, %v5579, %v5578
      %v5581 = vrot.slane %v5455, 6
      %v5582 = vsel %vm5494, %v5581, %v5580
      %v5583 = vrot.slane %v5457, 5
      %v5584 = vsel %vm5497, %v5583, %v5582
      %v5585 = vrot.slane %v5459, 4
      %v5586 = vsel %vm5500, %v5585, %v5584
      %v5587 = vrot.slane %v5461, 3
      %v5588 = vrot.slane %v5463, 2
      %v5589 = vsel %vm5482, %v5588, %v5587
      %v5590 = vrot.slane %v5465, 1
      %v5591 = vsel %vm5485, %v5590, %v5589
      %v5592 = vsel %vm5488, %v5467, %v5591
      %5593 = vrot.lane.b32.xlu0 %v5586, 48
      %v5594 = vpop.permute.xlu0 %5593
      %5595 = vrot.lane.b32.xlu0 %v5592, 48
      %v5596 = vpop.permute.xlu0 %5595
      %vm5599 = vcmask 523648
      %5600 = vst.msk [vmem:[%s143] sm:$0xff] %vm5599, %v5594
      %vm5601 = vcmask 519552
      %5602 = vst.msk [vmem:[%s143 + $0x10] sm:$0xf] %vm5601, %v5596
      %v5603 = vrot.slane %v5445, 4
      %v5604 = vrot.slane %v5447, 3
      %v5605 = vsel %vm5482, %v5604, %v5603
      %v5606 = vrot.slane %v5449, 2
      %v5607 = vsel %vm5485, %v5606, %v5605
      %v5608 = vrot.slane %v5451, 1
      %v5609 = vsel %vm5488, %v5608, %v5607
      %v5610 = vsel %vm5491, %v5453, %v5609
      %v5611 = vrot.slane %v5455, 7
      %v5612 = vsel %vm5494, %v5611, %v5610
      %v5613 = vrot.slane %v5457, 6
      %v5614 = vsel %vm5497, %v5613, %v5612
      %v5615 = vrot.slane %v5459, 5
      %v5616 = vsel %vm5500, %v5615, %v5614
      %v5617 = vrot.slane %v5461, 4
      %v5618 = vrot.slane %v5463, 3
      %v5619 = vsel %vm5482, %v5618, %v5617
      %v5620 = vrot.slane %v5465, 2
      %v5621 = vsel %vm5485, %v5620, %v5619
      %v5622 = vrot.slane %v5467, 1
      %v5623 = vsel %vm5488, %v5622, %v5621
      %5624 = vrot.lane.b32.xlu0 %v5616, 64
      %v5625 = vpop.permute.xlu0 %5624
      %5626 = vrot.lane.b32.xlu0 %v5623, 64
      %v5627 = vpop.permute.xlu0 %5626
      %vm5630 = vcmask 654848
      %5631 = vst.msk [vmem:[%s143] sm:$0xff] %vm5630, %v5625
      %vm5632 = vcmask 650752
      %5633 = vst.msk [vmem:[%s143 + $0x10] sm:$0xf] %vm5632, %v5627
      %v5634 = vrot.slane %v5445, 5
      %v5635 = vrot.slane %v5447, 4
      %v5636 = vsel %vm5482, %v5635, %v5634
      %v5637 = vrot.slane %v5449, 3
      %v5638 = vsel %vm5485, %v5637, %v5636
      %v5639 = vrot.slane %v5451, 2
      %v5640 = vsel %vm5488, %v5639, %v5638
      %v5641 = vrot.slane %v5453, 1
      %v5642 = vsel %vm5491, %v5641, %v5640
      %v5643 = vsel %vm5494, %v5455, %v5642
      %v5644 = vrot.slane %v5457, 7
      %v5645 = vsel %vm5497, %v5644, %v5643
      %v5646 = vrot.slane %v5459, 6
      %v5647 = vsel %vm5500, %v5646, %v5645
      %v5648 = vrot.slane %v5461, 5
      %v5649 = vrot.slane %v5463, 4
      %v5650 = vsel %vm5482, %v5649, %v5648
      %v5651 = vrot.slane %v5465, 3
      %v5652 = vsel %vm5485, %v5651, %v5650
      %v5653 = vrot.slane %v5467, 2
      %v5654 = vsel %vm5488, %v5653, %v5652
      %5655 = vrot.lane.b32.xlu0 %v5647, 80
      %v5656 = vpop.permute.xlu0 %5655
      %5657 = vrot.lane.b32.xlu0 %v5654, 80
      %v5658 = vpop.permute.xlu0 %5657
      %vm5661 = vcmask 786048
      %5662 = vst.msk [vmem:[%s143] sm:$0xff] %vm5661, %v5656
      %vm5663 = vcmask 781952
      %5664 = vst.msk [vmem:[%s143 + $0x10] sm:$0xf] %vm5663, %v5658
      %v5665 = vrot.slane %v5445, 6
      %v5666 = vrot.slane %v5447, 5
      %v5667 = vsel %vm5482, %v5666, %v5665
      %v5668 = vrot.slane %v5449, 4
      %v5669 = vsel %vm5485, %v5668, %v5667
      %v5670 = vrot.slane %v5451, 3
      %v5671 = vsel %vm5488, %v5670, %v5669
      %v5672 = vrot.slane %v5453, 2
      %v5673 = vsel %vm5491, %v5672, %v5671
      %v5674 = vrot.slane %v5455, 1
      %v5675 = vsel %vm5494, %v5674, %v5673
      %v5676 = vsel %vm5497, %v5457, %v5675
      %v5677 = vrot.slane %v5459, 7
      %v5678 = vsel %vm5500, %v5677, %v5676
      %v5679 = vrot.slane %v5461, 6
      %v5680 = vrot.slane %v5463, 5
      %v5681 = vsel %vm5482, %v5680, %v5679
      %v5682 = vrot.slane %v5465, 4
      %v5683 = vsel %vm5485, %v5682, %v5681
      %v5684 = vrot.slane %v5467, 3
      %v5685 = vsel %vm5488, %v5684, %v5683
      %5686 = vrot.lane.b32.xlu0 %v5678, 96
      %v5687 = vpop.permute.xlu0 %5686
      %5688 = vrot.lane.b32.xlu0 %v5685, 96
      %v5689 = vpop.permute.xlu0 %5688
      %vm5692 = vcmask 917248
      %5693 = vst.msk [vmem:[%s143] sm:$0xff] %vm5692, %v5687
      %vm5694 = vcmask 913152
      %5695 = vst.msk [vmem:[%s143 + $0x10] sm:$0xf] %vm5694, %v5689
      %v5696 = vrot.slane %v5445, 7
      %v5697 = vrot.slane %v5447, 6
      %v5698 = vsel %vm5482, %v5697, %v5696
      %v5699 = vrot.slane %v5449, 5
      %v5700 = vsel %vm5485, %v5699, %v5698
      %v5701 = vrot.slane %v5451, 4
      %v5702 = vsel %vm5488, %v5701, %v5700
      %v5703 = vrot.slane %v5453, 3
      %v5704 = vsel %vm5491, %v5703, %v5702
      %v5705 = vrot.slane %v5455, 2
      %v5706 = vsel %vm5494, %v5705, %v5704
      %v5707 = vrot.slane %v5457, 1
      %v5708 = vsel %vm5497, %v5707, %v5706
      %v5709 = vsel %vm5500, %v5459, %v5708
      %v5710 = vrot.slane %v5461, 7
      %v5711 = vrot.slane %v5463, 6
      %v5712 = vsel %vm5482, %v5711, %v5710
      %v5713 = vrot.slane %v5465, 5
      %v5714 = vsel %vm5485, %v5713, %v5712
      %v5715 = vrot.slane %v5467, 4
      %v5716 = vsel %vm5488, %v5715, %v5714
      %5717 = vrot.lane.b32.xlu0 %v5709, 112
      %v5718 = vpop.permute.xlu0 %5717
      %5719 = vrot.lane.b32.xlu0 %v5716, 112
      %v5720 = vpop.permute.xlu0 %5719
      %vm5723 = vcmask 1048448
      %5724 = vst.msk [vmem:[%s143] sm:$0xff] %vm5723, %v5718
      %vm5725 = vcmask 1044352
      %5726 = vst.msk [vmem:[%s143 + $0x10] sm:$0xf] %vm5725, %v5720
      %v5739 = vrot.slane %v5448, 7
      %v5740 = vsel %vm5482, %v5739, %v5446
      %v5741 = vrot.slane %v5450, 6
      %v5742 = vsel %vm5485, %v5741, %v5740
      %v5743 = vrot.slane %v5452, 5
      %v5744 = vsel %vm5488, %v5743, %v5742
      %v5745 = vrot.slane %v5454, 4
      %v5746 = vsel %vm5491, %v5745, %v5744
      %v5747 = vrot.slane %v5456, 3
      %v5748 = vsel %vm5494, %v5747, %v5746
      %v5749 = vrot.slane %v5458, 2
      %v5750 = vsel %vm5497, %v5749, %v5748
      %v5751 = vrot.slane %v5460, 1
      %v5752 = vsel %vm5500, %v5751, %v5750
      %v5753 = vrot.slane %v5464, 7
      %v5754 = vsel %vm5482, %v5753, %v5462
      %v5755 = vrot.slane %v5466, 6
      %v5756 = vsel %vm5485, %v5755, %v5754
      %v5757 = vrot.slane %v5468, 5
      %v5758 = vsel %vm5488, %v5757, %v5756
      %5761 = vst.msk [vmem:[%s143 + $0x8] sm:$0xff] %vm170, %v5752
      %5762 = vst.msk [vmem:[%s143 + $0x18] sm:$0xf] %vm5511, %v5758
      %v5763 = vrot.slane %v5446, 1
      %v5764 = vsel %vm5482, %v5448, %v5763
      %v5765 = vrot.slane %v5450, 7
      %v5766 = vsel %vm5485, %v5765, %v5764
      %v5767 = vrot.slane %v5452, 6
      %v5768 = vsel %vm5488, %v5767, %v5766
      %v5769 = vrot.slane %v5454, 5
      %v5770 = vsel %vm5491, %v5769, %v5768
      %v5771 = vrot.slane %v5456, 4
      %v5772 = vsel %vm5494, %v5771, %v5770
      %v5773 = vrot.slane %v5458, 3
      %v5774 = vsel %vm5497, %v5773, %v5772
      %v5775 = vrot.slane %v5460, 2
      %v5776 = vsel %vm5500, %v5775, %v5774
      %v5777 = vrot.slane %v5462, 1
      %v5778 = vsel %vm5482, %v5464, %v5777
      %v5779 = vrot.slane %v5466, 7
      %v5780 = vsel %vm5485, %v5779, %v5778
      %v5781 = vrot.slane %v5468, 6
      %v5782 = vsel %vm5488, %v5781, %v5780
      %5783 = vrot.lane.b32.xlu0 %v5776, 16
      %v5784 = vpop.permute.xlu0 %5783
      %5785 = vrot.lane.b32.xlu0 %v5782, 16
      %v5786 = vpop.permute.xlu0 %5785
      %5789 = vst.msk [vmem:[%s143 + $0x8] sm:$0xff] %vm5539, %v5784
      %5790 = vst.msk [vmem:[%s143 + $0x18] sm:$0xf] %vm5541, %v5786
      %v5791 = vrot.slane %v5446, 2
      %v5792 = vrot.slane %v5448, 1
      %v5793 = vsel %vm5482, %v5792, %v5791
      %v5794 = vsel %vm5485, %v5450, %v5793
      %v5795 = vrot.slane %v5452, 7
      %v5796 = vsel %vm5488, %v5795, %v5794
      %v5797 = vrot.slane %v5454, 6
      %v5798 = vsel %vm5491, %v5797, %v5796
      %v5799 = vrot.slane %v5456, 5
      %v5800 = vsel %vm5494, %v5799, %v5798
      %v5801 = vrot.slane %v5458, 4
      %v5802 = vsel %vm5497, %v5801, %v5800
      %v5803 = vrot.slane %v5460, 3
      %v5804 = vsel %vm5500, %v5803, %v5802
      %v5805 = vrot.slane %v5462, 2
      %v5806 = vrot.slane %v5464, 1
      %v5807 = vsel %vm5482, %v5806, %v5805
      %v5808 = vsel %vm5485, %v5466, %v5807
      %v5809 = vrot.slane %v5468, 7
      %v5810 = vsel %vm5488, %v5809, %v5808
      %5811 = vrot.lane.b32.xlu0 %v5804, 32
      %v5812 = vpop.permute.xlu0 %5811
      %5813 = vrot.lane.b32.xlu0 %v5810, 32
      %v5814 = vpop.permute.xlu0 %5813
      %5817 = vst.msk [vmem:[%s143 + $0x8] sm:$0xff] %vm5569, %v5812
      %5818 = vst.msk [vmem:[%s143 + $0x18] sm:$0xf] %vm5571, %v5814
      %v5819 = vrot.slane %v5446, 3
      %v5820 = vrot.slane %v5448, 2
      %v5821 = vsel %vm5482, %v5820, %v5819
      %v5822 = vrot.slane %v5450, 1
      %v5823 = vsel %vm5485, %v5822, %v5821
      %v5824 = vsel %vm5488, %v5452, %v5823
      %v5825 = vrot.slane %v5454, 7
      %v5826 = vsel %vm5491, %v5825, %v5824
      %v5827 = vrot.slane %v5456, 6
      %v5828 = vsel %vm5494, %v5827, %v5826
      %v5829 = vrot.slane %v5458, 5
      %v5830 = vsel %vm5497, %v5829, %v5828
      %v5831 = vrot.slane %v5460, 4
      %v5832 = vsel %vm5500, %v5831, %v5830
      %v5833 = vrot.slane %v5462, 3
      %v5834 = vrot.slane %v5464, 2
      %v5835 = vsel %vm5482, %v5834, %v5833
      %v5836 = vrot.slane %v5466, 1
      %v5837 = vsel %vm5485, %v5836, %v5835
      %v5838 = vsel %vm5488, %v5468, %v5837
      %5839 = vrot.lane.b32.xlu0 %v5832, 48
      %v5840 = vpop.permute.xlu0 %5839
      %5841 = vrot.lane.b32.xlu0 %v5838, 48
      %v5842 = vpop.permute.xlu0 %5841
      %5845 = vst.msk [vmem:[%s143 + $0x8] sm:$0xff] %vm5599, %v5840
      %5846 = vst.msk [vmem:[%s143 + $0x18] sm:$0xf] %vm5601, %v5842
      %v5847 = vrot.slane %v5446, 4
      %v5848 = vrot.slane %v5448, 3
      %v5849 = vsel %vm5482, %v5848, %v5847
      %v5850 = vrot.slane %v5450, 2
      %v5851 = vsel %vm5485, %v5850, %v5849
      %v5852 = vrot.slane %v5452, 1
      %v5853 = vsel %vm5488, %v5852, %v5851
      %v5854 = vsel %vm5491, %v5454, %v5853
      %v5855 = vrot.slane %v5456, 7
      %v5856 = vsel %vm5494, %v5855, %v5854
      %v5857 = vrot.slane %v5458, 6
      %v5858 = vsel %vm5497, %v5857, %v5856
      %v5859 = vrot.slane %v5460, 5
      %v5860 = vsel %vm5500, %v5859, %v5858
      %v5861 = vrot.slane %v5462, 4
      %v5862 = vrot.slane %v5464, 3
      %v5863 = vsel %vm5482, %v5862, %v5861
      %v5864 = vrot.slane %v5466, 2
      %v5865 = vsel %vm5485, %v5864, %v5863
      %v5866 = vrot.slane %v5468, 1
      %v5867 = vsel %vm5488, %v5866, %v5865
      %5868 = vrot.lane.b32.xlu0 %v5860, 64
      %v5869 = vpop.permute.xlu0 %5868
      %5870 = vrot.lane.b32.xlu0 %v5867, 64
      %v5871 = vpop.permute.xlu0 %5870
      %5874 = vst.msk [vmem:[%s143 + $0x8] sm:$0xff] %vm5630, %v5869
      %5875 = vst.msk [vmem:[%s143 + $0x18] sm:$0xf] %vm5632, %v5871
      %v5876 = vrot.slane %v5446, 5
      %v5877 = vrot.slane %v5448, 4
      %v5878 = vsel %vm5482, %v5877, %v5876
      %v5879 = vrot.slane %v5450, 3
      %v5880 = vsel %vm5485, %v5879, %v5878
      %v5881 = vrot.slane %v5452, 2
      %v5882 = vsel %vm5488, %v5881, %v5880
      %v5883 = vrot.slane %v5454, 1
      %v5884 = vsel %vm5491, %v5883, %v5882
      %v5885 = vsel %vm5494, %v5456, %v5884
      %v5886 = vrot.slane %v5458, 7
      %v5887 = vsel %vm5497, %v5886, %v5885
      %v5888 = vrot.slane %v5460, 6
      %v5889 = vsel %vm5500, %v5888, %v5887
      %v5890 = vrot.slane %v5462, 5
      %v5891 = vrot.slane %v5464, 4
      %v5892 = vsel %vm5482, %v5891, %v5890
      %v5893 = vrot.slane %v5466, 3
      %v5894 = vsel %vm5485, %v5893, %v5892
      %v5895 = vrot.slane %v5468, 2
      %v5896 = vsel %vm5488, %v5895, %v5894
      %5897 = vrot.lane.b32.xlu0 %v5889, 80
      %v5898 = vpop.permute.xlu0 %5897
      %5899 = vrot.lane.b32.xlu0 %v5896, 80
      %v5900 = vpop.permute.xlu0 %5899
      %5903 = vst.msk [vmem:[%s143 + $0x8] sm:$0xff] %vm5661, %v5898
      %5904 = vst.msk [vmem:[%s143 + $0x18] sm:$0xf] %vm5663, %v5900
      %v5905 = vrot.slane %v5446, 6
      %v5906 = vrot.slane %v5448, 5
      %v5907 = vsel %vm5482, %v5906, %v5905
      %v5908 = vrot.slane %v5450, 4
      %v5909 = vsel %vm5485, %v5908, %v5907
      %v5910 = vrot.slane %v5452, 3
      %v5911 = vsel %vm5488, %v5910, %v5909
      %v5912 = vrot.slane %v5454, 2
      %v5913 = vsel %vm5491, %v5912, %v5911
      %v5914 = vrot.slane %v5456, 1
      %v5915 = vsel %vm5494, %v5914, %v5913
      %v5916 = vsel %vm5497, %v5458, %v5915
      %v5917 = vrot.slane %v5460, 7
      %v5918 = vsel %vm5500, %v5917, %v5916
      %v5919 = vrot.slane %v5462, 6
      %v5920 = vrot.slane %v5464, 5
      %v5921 = vsel %vm5482, %v5920, %v5919
      %v5922 = vrot.slane %v5466, 4
      %v5923 = vsel %vm5485, %v5922, %v5921
      %v5924 = vrot.slane %v5468, 3
      %v5925 = vsel %vm5488, %v5924, %v5923
      %5926 = vrot.lane.b32.xlu0 %v5918, 96
      %v5927 = vpop.permute.xlu0 %5926
      %5928 = vrot.lane.b32.xlu0 %v5925, 96
      %v5929 = vpop.permute.xlu0 %5928
      %5932 = vst.msk [vmem:[%s143 + $0x8] sm:$0xff] %vm5692, %v5927
      %5933 = vst.msk [vmem:[%s143 + $0x18] sm:$0xf] %vm5694, %v5929
      %v5934 = vrot.slane %v5446, 7
      %v5935 = vrot.slane %v5448, 6
      %v5936 = vsel %vm5482, %v5935, %v5934
      %v5937 = vrot.slane %v5450, 5
      %v5938 = vsel %vm5485, %v5937, %v5936
      %v5939 = vrot.slane %v5452, 4
      %v5940 = vsel %vm5488, %v5939, %v5938
      %v5941 = vrot.slane %v5454, 3
      %v5942 = vsel %vm5491, %v5941, %v5940
      %v5943 = vrot.slane %v5456, 2
      %v5944 = vsel %vm5494, %v5943, %v5942
      %v5945 = vrot.slane %v5458, 1
      %v5946 = vsel %vm5497, %v5945, %v5944
      %v5947 = vsel %vm5500, %v5460, %v5946
      %v5948 = vrot.slane %v5462, 7
      %v5949 = vrot.slane %v5464, 6
      %v5950 = vsel %vm5482, %v5949, %v5948
      %v5951 = vrot.slane %v5466, 5
      %v5952 = vsel %vm5485, %v5951, %v5950
      %v5953 = vrot.slane %v5468, 4
      %v5954 = vsel %vm5488, %v5953, %v5952
      %5955 = vrot.lane.b32.xlu0 %v5947, 112
      %v5956 = vpop.permute.xlu0 %5955
      %5957 = vrot.lane.b32.xlu0 %v5954, 112
      %v5958 = vpop.permute.xlu0 %5957
      %5961 = vst.msk [vmem:[%s143 + $0x8] sm:$0xff] %vm5723, %v5956
      %5962 = vst.msk [vmem:[%s143 + $0x18] sm:$0xf] %vm5725, %v5958
      %p5963 = scmp.lt.s32.totalorder %s13, 1
      %s5964 = scalar_select %p5963, %s13, 1
      %s5965 = smul.addr %s5964, 4
      %s5966 = smul.addr %s5965, 8
      %s5967 = scalar_lea.vmem %s2, %s5966
      // Predicated region
      $region29: #{tpu_custom_call.1} parent=27 // pred_check
        %p5968 = pneg %p78
      $region30: #{tpu_custom_call.1} parent=27 // pred_check_branch
        %5970 = sbr.rel (%p5968) target = $region32
      $region31: #{tpu_custom_call.1} parent=27 // pred_region
        _
      $region32: #{tpu_custom_call.1} parent=27 // pred_fallthru
        _
    $region28: #{tpu_custom_call.1} parent=5 // pred_fallthru
      _
    %p5971 = scmp.le.s32.totalorder 2, %s8
    // Predicated region
    $region33: #{tpu_custom_call.1} parent=5 // pred_check
      %p5972 = pneg %p5971
    $region34: #{tpu_custom_call.1} parent=5 // pred_check_branch
      %5974 = sbr.rel (%p5972) target = $region36
    $region35: #{tpu_custom_call.1} parent=5 // pred_region
      %s5975 = ssub.s32 %s8, 2
      // Predicated region
      $region37: #{tpu_custom_call.1} parent=35 // pred_check
        %p5976 = pneg %p84
      $region38: #{tpu_custom_call.1} parent=35 // pred_check_branch
        %5978 = sbr.rel (%p5976) target = $region40
      $region39: #{tpu_custom_call.1} parent=35 // pred_region
        %p5979 = scmp.lt.s32.totalorder %s14, 1
        %s5980 = scalar_select %p5979, %s14, 1
        %s5981 = smul.addr %s5980, 4
        %s5982 = smul.addr %s5981, 8
        %s5983 = scalar_lea.vmem %s2, %s5982
      $region40: #{tpu_custom_call.1} parent=35 // pred_fallthru
        _
    $region36: #{tpu_custom_call.1} parent=5 // pred_fallthru
      _
  $region6: #{tpu_custom_call.1} parent=0 // loop_footer
    %s12 = sadd.s32 1, %s8
  $region7: #{tpu_custom_call.1} parent=0 // loop_footer_branch
    %7 = sbr.rel target = $region3
  $region8: #{tpu_custom_call.1} parent=0 // loop_exit
    _

</llo_original>
